<compile_context>
chip_gen: v7x
topology: tpu7x:2x2x1
jax: 0.10.0
libtpu: 0.0.40
codegen_flags: <defaults>
</compile_context>

<pallas_src>
import functools

import numpy as np
import jax
import jax.numpy as jnp
from jax.experimental import pallas as pl
from jax.experimental.pallas import tpu as pltpu

LN_EPS = 1e-5
_MB = 1024 * 1024


def _round_up(x, m):
    return (x + m - 1) // m * m


def _clamp_vmem(est_bytes, lo=32 * _MB, hi=60 * _MB):
    # Explicit scoped-VMEM request, kept below v7x's 64 MiB physical per-TC VMEM.
    return int(min(hi, max(lo, est_bytes)))


# ---------------------------------------------------------------------------
# Kernel 1: fused LayerNorm + qkv Linear  ->  six per-branch outputs (bf16)
# ---------------------------------------------------------------------------
def _ln_qkv_kernel(x_ref, g_ref, b_ref, w_ref, wb_ref,
                   q0_ref, q1_ref, k0_ref, k1_ref, v0_ref, v1_ref, *, half):
    x = x_ref[...]                                        # (T, C) f32
    mu = jnp.mean(x, axis=-1, keepdims=True)
    var = jnp.mean(jnp.square(x - mu), axis=-1, keepdims=True)
    xn = (x - mu) * jax.lax.rsqrt(var + LN_EPS) * g_ref[...] + b_ref[...]
    y = jnp.dot(xn.astype(jnp.bfloat16), w_ref[...],
                preferred_element_type=jnp.float32) + wb_ref[...]   # (T, 3C) f32
    C = 2 * half
    q0_ref[...] = y[:, :half].astype(jnp.bfloat16)
    q1_ref[...] = y[:, half:C].astype(jnp.bfloat16)
    k0_ref[...] = y[:, C:C + half].astype(jnp.bfloat16)
    k1_ref[...] = y[:, C + half:2 * C].astype(jnp.bfloat16)
    v0_ref[...] = y[:, 2 * C:2 * C + half].astype(jnp.bfloat16)
    v1_ref[...] = y[:, 2 * C + half:].astype(jnp.bfloat16)


def ln_qkv(x2d, gamma, beta, W, bias, *, half, tile_rows=512):
    R, C = x2d.shape
    O = W.shape[1]                                        # 3C

    def est(t):  # rough per-step VMEM bytes (double-buffered weights + row tiles)
        return 4 * C * O + t * (16 * C + 6 * O)

    tile = min(tile_rows, _round_up(R, 8))
    while tile > 128 and est(tile) > 44 * _MB:
        tile //= 2
    Rp = _round_up(R, tile)
    xp = jnp.pad(x2d, ((0, Rp - R), (0, 0))) if Rp != R else x2d

    outs = pl.pallas_call(
        functools.partial(_ln_qkv_kernel, half=half),
        out_shape=tuple(jax.ShapeDtypeStruct((Rp, half), jnp.bfloat16) for _ in range(6)),
        grid=(Rp // tile,),
        in_specs=[
            pl.BlockSpec((tile, C), lambda i: (i, 0)),
            pl.BlockSpec((1, C), lambda i: (0, 0)),
            pl.BlockSpec((1, C), lambda i: (0, 0)),
            pl.BlockSpec((C, O), lambda i: (0, 0)),
            pl.BlockSpec((1, O), lambda i: (0, 0)),
        ],
        out_specs=tuple(pl.BlockSpec((tile, half), lambda i: (i, 0)) for _ in range(6)),
        compiler_params=pltpu.CompilerParams(
            dimension_semantics=("parallel",),
            vmem_limit_bytes=_clamp_vmem(2 * est(tile))),
    )(xp, gamma.reshape(1, C), beta.reshape(1, C),
      W.astype(jnp.bfloat16), bias.reshape(1, O).astype(jnp.float32))
    return tuple(o[:R] for o in outs)


# ---------------------------------------------------------------------------
# Kernel 2: LePE attention over WB cross-shaped windows per grid step.
#   - q/k/v blocks (WB, n, Cb) channels-last (head-major channel split),
#   - softmax(scale * q k^T) v per head (static unroll),
#   - LePE depthwise 3x3 from v via pltpu.roll + precomputed mask*weight tap planes,
#   - output written lane-dense bf16 (WB, n, Cb).
# ---------------------------------------------------------------------------
def _lepe_attn_kernel(q_ref, k_ref, v_ref, mw_ref, b_ref, o_ref, *, head, ch, W_sp, scale):
    q = q_ref[...]                                        # (WB, n, Cb) bf16
    k = k_ref[...]
    v = v_ref[...]
    n = q.shape[1]

    # ---- attention, per head (static unroll over heads) ----
    outs = []
    for h in range(head):
        sl = slice(h * ch, (h + 1) * ch)
        qh, kh, vh = q[:, :, sl], k[:, :, sl], v[:, :, sl]
        s = jnp.einsum('bnc,bmc->bnm', qh, kh,
                       preferred_element_type=jnp.float32) * scale
        s = s - jnp.max(s, axis=-1, keepdims=True)
        p = jnp.exp(s)
        p = p * pl.reciprocal(jnp.sum(p, axis=-1, keepdims=True), approx=True)
        outs.append(jnp.einsum('bnm,bmc->bnc', p.astype(jnp.bfloat16), vh,
                               preferred_element_type=jnp.float32))
    attn_out = jnp.concatenate(outs, axis=-1)             # (WB, n, Cb) f32

    # ---- LePE: depthwise 3x3 per window, zero padded at window borders ----
    # tap t = ki*3+kj ; tap value = v shifted by off = di*W_sp + dj (wrap killed by the
    # precomputed mask folded into the tap weight plane mw[t] = mask_t * w_t).
    v32 = v.astype(jnp.float32)
    lepe = v32 * mw_ref[4][None]                          # centre tap, no shift
    for t in range(9):
        if t == 4:
            continue
        di, dj = t // 3 - 1, t % 3 - 1
        off = di * W_sp + dj
        tap = pltpu.roll(v32, shift=(-off) % n, axis=1)   # XLU sublane rotate
        lepe = lepe + tap * mw_ref[t][None]
    lepe = lepe + b_ref[...][None]                        # conv bias (1, Cb)

    o_ref[...] = (attn_out + lepe).astype(o_ref.dtype)


def lepe_attention(q, k, v, conv_w, conv_b, res, *, H_sp, W_sp, head, scale, wb_target=16):
    B, N, Cb = q.shape
    assert N == res * res, "sequence length must equal resolution**2"
    assert res % H_sp == 0 and res % W_sp == 0, "resolution must be divisible by the split"
    ch = Cb // head
    nh, nw = res // H_sp, res // W_sp
    Bp = B * nh * nw
    n = H_sp * W_sp

    def to_win(t):                                        # (B, N, Cb) -> (Bp, n, Cb)
        t = t.reshape(B, nh, H_sp, nw, W_sp, Cb)
        return t.transpose(0, 1, 3, 2, 4, 5).reshape(Bp, n, Cb)
    # TODO(synk): branch-0's regroup (nw>1) is a real XLA transpose; a pure-BlockSpec gather
    # would need a block whose second-to-last dim is the (generally non-8-aligned) split size,
    # so it stays in XLA for robustness.  Branch 1 (nw==1) is a free reshape.
    qw, kw, vw = to_win(q), to_win(k), to_win(v)

    # Windows per grid step: large steps to amortize per-step overhead, padded windows are
    # overcomputed and dropped; keep >= 2 grid steps when possible (v7x megacore).
    WB = min(wb_target, Bp)
    if Bp > 1 and Bp <= WB:
        WB = (Bp + 1) // 2
    Bpp = _round_up(Bp, WB)
    if Bpp != Bp:
        pad = ((0, Bpp - Bp), (0, 0), (0, 0))
        qw, kw, vw = (jnp.pad(t, pad) for t in (qw, kw, vw))

    # Precomputed (zero-pad mask) x (depthwise 3x3 weight) tap planes, tap t = ki*3 + kj.
    rr = np.arange(n) // W_sp
    cc = np.arange(n) % W_sp
    mask = np.stack([((rr + t // 3 - 1 >= 0) & (rr + t // 3 - 1 < H_sp) &
                      (cc + t % 3 - 1 >= 0) & (cc + t % 3 - 1 < W_sp)).astype(np.float32)
                     for t in range(9)])                                   # (9, n)
    w_taps = conv_w.reshape(Cb, 9).T.astype(jnp.float32)                   # (9, Cb)
    mw = jnp.asarray(mask)[:, :, None] * w_taps[:, None, :]                # (9, n, Cb)
    b_tap = conv_b.reshape(1, Cb).astype(jnp.float32)

    est = 16 * WB * n * Cb + 8 * 9 * n * Cb + 4 * WB * n * (n + 6 * Cb)
    out = pl.pallas_call(
        functools.partial(_lepe_attn_kernel, head=head, ch=ch, W_sp=W_sp, scale=scale),
        out_shape=jax.ShapeDtypeStruct((Bpp, n, Cb), jnp.bfloat16),
        grid=(Bpp // WB,),
        in_specs=[
            pl.BlockSpec((WB, n, Cb), lambda i: (i, 0, 0)),
            pl.BlockSpec((WB, n, Cb), lambda i: (i, 0, 0)),
            pl.BlockSpec((WB, n, Cb), lambda i: (i, 0, 0)),
            pl.BlockSpec((9, n, Cb), lambda i: (0, 0, 0)),
            pl.BlockSpec((1, Cb), lambda i: (0, 0)),
        ],
        out_specs=pl.BlockSpec((WB, n, Cb), lambda i: (i, 0, 0)),
        compiler_params=pltpu.CompilerParams(
            dimension_semantics=("parallel",),
            vmem_limit_bytes=_clamp_vmem(2 * est)),
    )(qw, kw, vw, mw, b_tap)

    # (Bp, n, Cb) with Bp ordered (B, nh, nw) and n ordered (H_sp, W_sp): flattening is
    # exactly the reference's 'b r1 h w r2 c -> b (r1 h w r2) c' rearrange (free reshape).
    return out[:Bp].reshape(B, N, Cb)


# ---------------------------------------------------------------------------
# Kernel 3: fused proj-residual + LayerNorm + MLP-residual.
#   xa = [x1 | x2] (concatenated in VMEM);  y = xa + proj(xa);
#   out = y + fc2(gelu(fc1(norm2(y))))
# ---------------------------------------------------------------------------
def _proj_mlp_kernel(x1_ref, x2_ref, wp_ref, bp_ref, g_ref, bln_ref,
                     w1_ref, b1_ref, w2_ref, b2_ref, o_ref):
    xa_bf = jnp.concatenate([x1_ref[...], x2_ref[...]], axis=-1)   # (T, C) bf16
    xa = xa_bf.astype(jnp.float32)
    # NOTE: per the reference forward, the residual base here is the attention output
    # (the reference reassigns `x` to the attention result before `x = x + proj(x)`).
    y = xa + jnp.dot(xa_bf, wp_ref[...], preferred_element_type=jnp.float32) + bp_ref[...]
    mu = jnp.mean(y, axis=-1, keepdims=True)
    var = jnp.mean(jnp.square(y - mu), axis=-1, keepdims=True)
    h = (y - mu) * jax.lax.rsqrt(var + LN_EPS) * g_ref[...] + bln_ref[...]
    h = jnp.dot(h.astype(jnp.bfloat16), w1_ref[...],
                preferred_element_type=jnp.float32) + b1_ref[...]
    # TODO(synk): MLP class not shown in the reference; Linear-GELU-Linear assumed
    # (tanh-approx GELU; PyTorch default nn.GELU is erf -> tiny numeric drift).
    h = jax.nn.gelu(h, approximate=True)
    o_ref[...] = y + jnp.dot(h.astype(jnp.bfloat16), w2_ref[...],
                             preferred_element_type=jnp.float32) + b2_ref[...]


def proj_mlp(x1, x2, Wp, bp, g2, beta2, W1, b1, W2, b2, *, tile_rows=512):
    R, half = x1.shape
    C = 2 * half
    H = W1.shape[1]

    def est(t):  # rough per-step VMEM bytes (double-buffered weights + row tiles)
        return 4 * (C * C + 2 * C * H) + t * (20 * C + 8 * H)

    tile = min(tile_rows, _round_up(R, 8))
    while tile > 128 and est(tile) > 44 * _MB:
        tile //= 2
    Rp = _round_up(R, tile)
    if Rp != R:
        x1 = jnp.pad(x1, ((0, Rp - R), (0, 0)))
        x2 = jnp.pad(x2, ((0, Rp - R), (0, 0)))

    out = pl.pallas_call(
        _proj_mlp_kernel,
        out_shape=jax.ShapeDtypeStruct((Rp, C), jnp.float32),
        grid=(Rp // tile,),
        in_specs=[
            pl.BlockSpec((tile, half), lambda i: (i, 0)),
            pl.BlockSpec((tile, half), lambda i: (i, 0)),
            pl.BlockSpec((C, C), lambda i: (0, 0)),
            pl.BlockSpec((1, C), lambda i: (0, 0)),
            pl.BlockSpec((1, C), lambda i: (0, 0)),
            pl.BlockSpec((1, C), lambda i: (0, 0)),
            pl.BlockSpec((C, H), lambda i: (0, 0)),
            pl.BlockSpec((1, H), lambda i: (0, 0)),
            pl.BlockSpec((H, C), lambda i: (0, 0)),
            pl.BlockSpec((1, C), lambda i: (0, 0)),
        ],
        out_specs=pl.BlockSpec((tile, C), lambda i: (i, 0)),
        compiler_params=pltpu.CompilerParams(
            dimension_semantics=("parallel",),
            vmem_limit_bytes=_clamp_vmem(2 * est(tile))),
    )(x1, x2, Wp.astype(jnp.bfloat16), bp.reshape(1, C), g2.reshape(1, C), beta2.reshape(1, C),
      W1.astype(jnp.bfloat16), b1.reshape(1, H), W2.astype(jnp.bfloat16), b2.reshape(1, C))
    return out[:R]


# ---------------------------------------------------------------------------
# CSWinBlock forward (two-branch variant, last_stage=False, dpr=0 -> identity)
# ---------------------------------------------------------------------------
def cswin_block(x, p, *, resolution, head, split_size):
    B, N, C = x.shape
    assert N == resolution * resolution, "N must equal resolution**2"
    assert resolution % split_size == 0, "resolution must be divisible by split_size"
    assert C % 2 == 0 and head % 2 == 0
    half, hb = C // 2, head // 2
    ch = half // hb
    scale = float(ch) ** -0.5
    rows = B * N

    q0, q1, k0, k1, v0, v1 = ln_qkv(x.reshape(rows, C), p['g1'], p['b1'],
                                    p['Wqkv'], p['bqkv'], half=half)

    def as3(t):
        return t.reshape(B, N, half)

    x1 = lepe_attention(as3(q0), as3(k0), as3(v0), p['conv_w0'], p['conv_b0'],
                        resolution, H_sp=resolution, W_sp=split_size, head=hb, scale=scale)
    x2 = lepe_attention(as3(q1), as3(k1), as3(v1), p['conv_w1'], p['conv_b1'],
                        resolution, H_sp=split_size, W_sp=resolution, head=hb, scale=scale)

    out = proj_mlp(x1.reshape(rows, half), x2.reshape(rows, half),
                   p['Wp'], p['bp'], p['g2'], p['b2'],
                   p['W1'], p['bfc1'], p['W2'], p['bfc2'])
    return out.reshape(B, N, C)


def init_params(key, dim):
    keys = jax.random.split(key, 16)

    def w(k, shape, s=0.02):
        return s * jax.random.normal(k, shape, jnp.float32)

    half = dim // 2
    return dict(
        g1=jnp.ones((dim,), jnp.float32),
        b1=w(keys[0], (dim,)),
        Wqkv=w(keys[1], (dim, 3 * dim)),
        bqkv=w(keys[2], (3 * dim,)),
        conv_w0=w(keys[3], (half, 1, 3, 3), 0.1),   # depthwise conv weight (out, in/groups, kh, kw)
        conv_b0=w(keys[4], (half,), 0.1),
        conv_w1=w(keys[5], (half, 1, 3, 3), 0.1),
        conv_b1=w(keys[6], (half,), 0.1),
        Wp=w(keys[7], (dim, dim)),
        bp=w(keys[8], (dim,)),
        g2=jnp.ones((dim,), jnp.float32),
        b2=w(keys[9], (dim,)),
        W1=w(keys[10], (dim, 4 * dim)),
        bfc1=w(keys[11], (4 * dim,)),
        W2=w(keys[12], (4 * dim, dim)),
        bfc2=w(keys[13], (dim,)),
    )


if __name__ == "__main__":
    dim, resolution, head, split_size = 32, 8, 4, 4
    B = 2
    N = resolution * resolution

    key = jax.random.PRNGKey(0)
    kx, kp = jax.random.split(key)
    x = jax.random.normal(kx, (B, N, dim), jnp.float32)
    params = init_params(kp, dim)

    fwd = jax.jit(functools.partial(cswin_block, resolution=resolution,
                                    head=head, split_size=split_size))
    y = fwd(x, params)
    jax.block_until_ready(y)
    assert y.shape == (B, N, dim) and y.dtype == jnp.float32
    assert bool(jnp.all(jnp.isfinite(y)))
    print("KERNEL_OK")
</pallas_src>

<mosaic_0001>
module attributes {stable_mosaic.version = 11 : i64} {
  func.func @_ln_qkv_kernel(%arg0: i32, %arg1: memref<128x32xf32, #tpu.memory_space<vmem>>, %arg2: memref<1x32xf32, #tpu.memory_space<vmem>>, %arg3: memref<1x32xf32, #tpu.memory_space<vmem>>, %arg4: memref<32x96xbf16, #tpu.memory_space<vmem>>, %arg5: memref<1x96xf32, #tpu.memory_space<vmem>>, %arg6: memref<128x16xbf16, #tpu.memory_space<vmem>>, %arg7: memref<128x16xbf16, #tpu.memory_space<vmem>>, %arg8: memref<128x16xbf16, #tpu.memory_space<vmem>>, %arg9: memref<128x16xbf16, #tpu.memory_space<vmem>>, %arg10: memref<128x16xbf16, #tpu.memory_space<vmem>>, %arg11: memref<128x16xbf16, #tpu.memory_space<vmem>>) attributes {dimension_semantics = [#tpu.dimension_semantics<parallel>], iteration_bounds = array<i64: 1>, scalar_prefetch = 0 : i64, scratch_operands = 0 : i64, tpu.core_type = #tpu.core_type<tc>, window_params = [{transform_indices = @transform_0, window_bounds = array<i64: 128, 32>}, {pipeline_mode = #tpu.pipeline_mode<synchronous>, transform_indices = @transform_1, window_bounds = array<i64: 1, 32>}, {pipeline_mode = #tpu.pipeline_mode<synchronous>, transform_indices = @transform_2, window_bounds = array<i64: 1, 32>}, {pipeline_mode = #tpu.pipeline_mode<synchronous>, transform_indices = @transform_3, window_bounds = array<i64: 32, 96>}, {pipeline_mode = #tpu.pipeline_mode<synchronous>, transform_indices = @transform_4, window_bounds = array<i64: 1, 96>}, {transform_indices = @transform_5, window_bounds = array<i64: 128, 16>}, {transform_indices = @transform_6, window_bounds = array<i64: 128, 16>}, {transform_indices = @transform_7, window_bounds = array<i64: 128, 16>}, {transform_indices = @transform_8, window_bounds = array<i64: 128, 16>}, {transform_indices = @transform_9, window_bounds = array<i64: 128, 16>}, {transform_indices = @transform_10, window_bounds = array<i64: 128, 16>}]} {
    %c0 = arith.constant 0 : index
    %c0_0 = arith.constant 0 : index
    %0 = vector.load %arg1[%c0, %c0_0] : memref<128x32xf32, #tpu.memory_space<vmem>>, vector<128x32xf32>
    %cst = arith.constant dense<0.000000e+00> : vector<128xf32>
    %1 = vector.multi_reduction <add>, %0, %cst [1] : vector<128x32xf32> to vector<128xf32>
    %2 = vector.shape_cast %1 : vector<128xf32> to vector<128x1xf32>
    %cst_1 = arith.constant 3.200000e+01 : f32
    %3 = vector.broadcast %cst_1 : f32 to vector<128x1xf32>
    %4 = arith.divf %2, %3 : vector<128x1xf32>
    %5 = vector.broadcast %4 : vector<128x1xf32> to vector<128x32xf32>
    %6 = arith.subf %0, %5 : vector<128x32xf32>
    %7 = arith.mulf %6, %6 : vector<128x32xf32>
    %cst_2 = arith.constant dense<0.000000e+00> : vector<128xf32>
    %8 = vector.multi_reduction <add>, %7, %cst_2 [1] : vector<128x32xf32> to vector<128xf32>
    %9 = vector.shape_cast %8 : vector<128xf32> to vector<128x1xf32>
    %cst_3 = arith.constant 3.200000e+01 : f32
    %10 = vector.broadcast %cst_3 : f32 to vector<128x1xf32>
    %11 = arith.divf %9, %10 : vector<128x1xf32>
    %12 = vector.broadcast %4 : vector<128x1xf32> to vector<128x32xf32>
    %13 = arith.subf %0, %12 : vector<128x32xf32>
    %cst_4 = arith.constant 9.99999974E-6 : f32
    %14 = vector.broadcast %cst_4 : f32 to vector<128x1xf32>
    %15 = arith.addf %11, %14 : vector<128x1xf32>
    %16 = math.rsqrt %15 : vector<128x1xf32>
    %17 = vector.broadcast %16 : vector<128x1xf32> to vector<128x32xf32>
    %18 = arith.mulf %13, %17 : vector<128x32xf32>
    %c0_5 = arith.constant 0 : index
    %c0_6 = arith.constant 0 : index
    %19 = vector.load %arg2[%c0_5, %c0_6] : memref<1x32xf32, #tpu.memory_space<vmem>>, vector<1x32xf32>
    %20 = vector.broadcast %19 : vector<1x32xf32> to vector<128x32xf32>
    %21 = arith.mulf %18, %20 : vector<128x32xf32>
    %c0_7 = arith.constant 0 : index
    %c0_8 = arith.constant 0 : index
    %22 = vector.load %arg3[%c0_7, %c0_8] : memref<1x32xf32, #tpu.memory_space<vmem>>, vector<1x32xf32>
    %23 = vector.broadcast %22 : vector<1x32xf32> to vector<128x32xf32>
    %24 = arith.addf %21, %23 : vector<128x32xf32>
    %25 = arith.truncf %24 : vector<128x32xf32> to vector<128x32xbf16>
    %c0_9 = arith.constant 0 : index
    %c0_10 = arith.constant 0 : index
    %26 = vector.load %arg4[%c0_9, %c0_10] : memref<32x96xbf16, #tpu.memory_space<vmem>>, vector<32x96xbf16>
    %cst_11 = arith.constant dense<0.000000e+00> : vector<128x96xf32>
    %27 = tpu.matmul %25, %26, %cst_11 {dimension_numbers = #tpu.dot_dimension_numbers<[1], [0], [0], [1], [0, 0, 1, 1], [], []>} : vector<128x32xbf16>, vector<32x96xbf16>, vector<128x96xf32> -> vector<128x96xf32>
    %c0_12 = arith.constant 0 : index
    %c0_13 = arith.constant 0 : index
    %28 = vector.load %arg5[%c0_12, %c0_13] : memref<1x96xf32, #tpu.memory_space<vmem>>, vector<1x96xf32>
    %29 = vector.broadcast %28 : vector<1x96xf32> to vector<128x96xf32>
    %30 = arith.addf %27, %29 : vector<128x96xf32>
    %31 = vector.extract_strided_slice %30 {offsets = [0, 0], sizes = [128, 16], strides = [1, 1]} : vector<128x96xf32> to vector<128x16xf32>
    %32 = arith.truncf %31 : vector<128x16xf32> to vector<128x16xbf16>
    %c0_14 = arith.constant 0 : index
    %c0_15 = arith.constant 0 : index
    %33 = vector.load %arg6[%c0_14, %c0_15] : memref<128x16xbf16, #tpu.memory_space<vmem>>, vector<128x16xbf16>
    tpu.vector_store %arg6[%c0_14, %c0_15], %32 {strides = array<i32>} : memref<128x16xbf16, #tpu.memory_space<vmem>>, vector<128x16xbf16>,
    %34 = vector.extract_strided_slice %30 {offsets = [0, 16], sizes = [128, 16], strides = [1, 1]} : vector<128x96xf32> to vector<128x16xf32>
    %35 = arith.truncf %34 : vector<128x16xf32> to vector<128x16xbf16>
    %c0_16 = arith.constant 0 : index
    %c0_17 = arith.constant 0 : index
    %36 = vector.load %arg7[%c0_16, %c0_17] : memref<128x16xbf16, #tpu.memory_space<vmem>>, vector<128x16xbf16>
    tpu.vector_store %arg7[%c0_16, %c0_17], %35 {strides = array<i32>} : memref<128x16xbf16, #tpu.memory_space<vmem>>, vector<128x16xbf16>,
    %37 = vector.extract_strided_slice %30 {offsets = [0, 32], sizes = [128, 16], strides = [1, 1]} : vector<128x96xf32> to vector<128x16xf32>
    %38 = arith.truncf %37 : vector<128x16xf32> to vector<128x16xbf16>
    %c0_18 = arith.constant 0 : index
    %c0_19 = arith.constant 0 : index
    %39 = vector.load %arg8[%c0_18, %c0_19] : memref<128x16xbf16, #tpu.memory_space<vmem>>, vector<128x16xbf16>
    tpu.vector_store %arg8[%c0_18, %c0_19], %38 {strides = array<i32>} : memref<128x16xbf16, #tpu.memory_space<vmem>>, vector<128x16xbf16>,
    %40 = vector.extract_strided_slice %30 {offsets = [0, 48], sizes = [128, 16], strides = [1, 1]} : vector<128x96xf32> to vector<128x16xf32>
    %41 = arith.truncf %40 : vector<128x16xf32> to vector<128x16xbf16>
    %c0_20 = arith.constant 0 : index
    %c0_21 = arith.constant 0 : index
    %42 = vector.load %arg9[%c0_20, %c0_21] : memref<128x16xbf16, #tpu.memory_space<vmem>>, vector<128x16xbf16>
    tpu.vector_store %arg9[%c0_20, %c0_21], %41 {strides = array<i32>} : memref<128x16xbf16, #tpu.memory_space<vmem>>, vector<128x16xbf16>,
    %43 = vector.extract_strided_slice %30 {offsets = [0, 64], sizes = [128, 16], strides = [1, 1]} : vector<128x96xf32> to vector<128x16xf32>
    %44 = arith.truncf %43 : vector<128x16xf32> to vector<128x16xbf16>
    %c0_22 = arith.constant 0 : index
    %c0_23 = arith.constant 0 : index
    %45 = vector.load %arg10[%c0_22, %c0_23] : memref<128x16xbf16, #tpu.memory_space<vmem>>, vector<128x16xbf16>
    tpu.vector_store %arg10[%c0_22, %c0_23], %44 {strides = array<i32>} : memref<128x16xbf16, #tpu.memory_space<vmem>>, vector<128x16xbf16>,
    %46 = vector.extract_strided_slice %30 {offsets = [0, 80], sizes = [128, 16], strides = [1, 1]} : vector<128x96xf32> to vector<128x16xf32>
    %47 = arith.truncf %46 : vector<128x16xf32> to vector<128x16xbf16>
    %c0_24 = arith.constant 0 : index
    %c0_25 = arith.constant 0 : index
    %48 = vector.load %arg11[%c0_24, %c0_25] : memref<128x16xbf16, #tpu.memory_space<vmem>>, vector<128x16xbf16>
    tpu.vector_store %arg11[%c0_24, %c0_25], %47 {strides = array<i32>} : memref<128x16xbf16, #tpu.memory_space<vmem>>, vector<128x16xbf16>,
    return
  }
  func.func @transform_0(%arg0: i32) -> (i32, i32) {
    %c0_i32 = arith.constant 0 : i32
    %c0_i32_0 = arith.constant 0 : i32
    return %arg0, %c0_i32 : i32, i32
  }
  func.func @transform_1(%arg0: i32) -> (i32, i32) {
    %c0_i32 = arith.constant 0 : i32
    %c0_i32_0 = arith.constant 0 : i32
    %c0_i32_1 = arith.constant 0 : i32
    return %c0_i32, %c0_i32_0 : i32, i32
  }
  func.func @transform_2(%arg0: i32) -> (i32, i32) {
    %c0_i32 = arith.constant 0 : i32
    %c0_i32_0 = arith.constant 0 : i32
    %c0_i32_1 = arith.constant 0 : i32
    return %c0_i32, %c0_i32_0 : i32, i32
  }
  func.func @transform_3(%arg0: i32) -> (i32, i32) {
    %c0_i32 = arith.constant 0 : i32
    %c0_i32_0 = arith.constant 0 : i32
    %c0_i32_1 = arith.constant 0 : i32
    return %c0_i32, %c0_i32_0 : i32, i32
  }
  func.func @transform_4(%arg0: i32) -> (i32, i32) {
    %c0_i32 = arith.constant 0 : i32
    %c0_i32_0 = arith.constant 0 : i32
    %c0_i32_1 = arith.constant 0 : i32
    return %c0_i32, %c0_i32_0 : i32, i32
  }
  func.func @transform_5(%arg0: i32) -> (i32, i32) {
    %c0_i32 = arith.constant 0 : i32
    %c0_i32_0 = arith.constant 0 : i32
    return %arg0, %c0_i32 : i32, i32
  }
  func.func @transform_6(%arg0: i32) -> (i32, i32) {
    %c0_i32 = arith.constant 0 : i32
    %c0_i32_0 = arith.constant 0 : i32
    return %arg0, %c0_i32 : i32, i32
  }
  func.func @transform_7(%arg0: i32) -> (i32, i32) {
    %c0_i32 = arith.constant 0 : i32
    %c0_i32_0 = arith.constant 0 : i32
    return %arg0, %c0_i32 : i32, i32
  }
  func.func @transform_8(%arg0: i32) -> (i32, i32) {
    %c0_i32 = arith.constant 0 : i32
    %c0_i32_0 = arith.constant 0 : i32
    return %arg0, %c0_i32 : i32, i32
  }
  func.func @transform_9(%arg0: i32) -> (i32, i32) {
    %c0_i32 = arith.constant 0 : i32
    %c0_i32_0 = arith.constant 0 : i32
    return %arg0, %c0_i32 : i32, i32
  }
  func.func @transform_10(%arg0: i32) -> (i32, i32) {
    %c0_i32 = arith.constant 0 : i32
    %c0_i32_0 = arith.constant 0 : i32
    return %arg0, %c0_i32 : i32, i32
  }
}

module attributes {stable_mosaic.version = 11 : i64} {
  func.func @_lepe_attn_kernel(%arg0: i32, %arg1: memref<2x32x16xbf16, #tpu.memory_space<vmem>>, %arg2: memref<2x32x16xbf16, #tpu.memory_space<vmem>>, %arg3: memref<2x32x16xbf16, #tpu.memory_space<vmem>>, %arg4: memref<9x32x16xf32, #tpu.memory_space<vmem>>, %arg5: memref<1x16xf32, #tpu.memory_space<vmem>>, %arg6: memref<2x32x16xbf16, #tpu.memory_space<vmem>>) attributes {dimension_semantics = [#tpu.dimension_semantics<parallel>], iteration_bounds = array<i64: 2>, scalar_prefetch = 0 : i64, scratch_operands = 0 : i64, tpu.core_type = #tpu.core_type<tc>, window_params = [{transform_indices = @transform_0, window_bounds = array<i64: 2, 32, 16>}, {transform_indices = @transform_1, window_bounds = array<i64: 2, 32, 16>}, {transform_indices = @transform_2, window_bounds = array<i64: 2, 32, 16>}, {pipeline_mode = #tpu.pipeline_mode<synchronous>, transform_indices = @transform_3, window_bounds = array<i64: 9, 32, 16>}, {pipeline_mode = #tpu.pipeline_mode<synchronous>, transform_indices = @transform_4, window_bounds = array<i64: 1, 16>}, {transform_indices = @transform_5, window_bounds = array<i64: 2, 32, 16>}]} {
    %c0 = arith.constant 0 : index
    %c0_0 = arith.constant 0 : index
    %c0_1 = arith.constant 0 : index
    %0 = vector.load %arg1[%c0, %c0_0, %c0_1] : memref<2x32x16xbf16, #tpu.memory_space<vmem>>, vector<2x32x16xbf16>
    %c0_2 = arith.constant 0 : index
    %c0_3 = arith.constant 0 : index
    %c0_4 = arith.constant 0 : index
    %1 = vector.load %arg2[%c0_2, %c0_3, %c0_4] : memref<2x32x16xbf16, #tpu.memory_space<vmem>>, vector<2x32x16xbf16>
    %c0_5 = arith.constant 0 : index
    %c0_6 = arith.constant 0 : index
    %c0_7 = arith.constant 0 : index
    %2 = vector.load %arg3[%c0_5, %c0_6, %c0_7] : memref<2x32x16xbf16, #tpu.memory_space<vmem>>, vector<2x32x16xbf16>
    %3 = vector.extract_strided_slice %0 {offsets = [0, 0, 0], sizes = [2, 32, 8], strides = [1, 1, 1]} : vector<2x32x16xbf16> to vector<2x32x8xbf16>
    %4 = vector.extract_strided_slice %1 {offsets = [0, 0, 0], sizes = [2, 32, 8], strides = [1, 1, 1]} : vector<2x32x16xbf16> to vector<2x32x8xbf16>
    %5 = vector.extract_strided_slice %2 {offsets = [0, 0, 0], sizes = [2, 32, 8], strides = [1, 1, 1]} : vector<2x32x16xbf16> to vector<2x32x8xbf16>
    "tpu.trace_start"() <{level = 10 : i32, message = "bnc,bmc->bnm"}> : () -> ()
    %cst = arith.constant dense<0.000000e+00> : vector<2x32x32xf32>
    %6 = tpu.matmul %3, %4, %cst {dimension_numbers = #tpu.dot_dimension_numbers<[2], [2], [1], [1], [0, 0, 0, 1, 1, 1], [0], [0]>} : vector<2x32x8xbf16>, vector<2x32x8xbf16>, vector<2x32x32xf32> -> vector<2x32x32xf32>
    "tpu.trace_stop"() : () -> ()
    %cst_8 = arith.constant 0.353553385 : f32
    %7 = vector.broadcast %cst_8 : f32 to vector<2x32x32xf32>
    %8 = arith.mulf %6, %7 : vector<2x32x32xf32>
    %cst_9 = arith.constant dense<0xFF800000> : vector<2x32xf32>
    %9 = vector.multi_reduction <maximumf>, %8, %cst_9 [2] : vector<2x32x32xf32> to vector<2x32xf32>
    %10 = vector.shape_cast %9 : vector<2x32xf32> to vector<2x32x1xf32>
    %11 = vector.broadcast %10 : vector<2x32x1xf32> to vector<2x32x32xf32>
    %12 = arith.subf %8, %11 : vector<2x32x32xf32>
    %13 = math.exp %12 : vector<2x32x32xf32>
    %cst_10 = arith.constant dense<0.000000e+00> : vector<2x32xf32>
    %14 = vector.multi_reduction <add>, %13, %cst_10 [2] : vector<2x32x32xf32> to vector<2x32xf32>
    %15 = vector.shape_cast %14 : vector<2x32xf32> to vector<2x32x1xf32>
    %16 = tpu.reciprocal %15 {approx = true} : vector<2x32x1xf32> -> vector<2x32x1xf32>
    %17 = vector.broadcast %16 : vector<2x32x1xf32> to vector<2x32x32xf32>
    %18 = arith.mulf %13, %17 : vector<2x32x32xf32>
    %19 = arith.truncf %18 : vector<2x32x32xf32> to vector<2x32x32xbf16>
    "tpu.trace_start"() <{level = 10 : i32, message = "bnm,bmc->bnc"}> : () -> ()
    %cst_11 = arith.constant dense<0.000000e+00> : vector<2x32x8xf32>
    %20 = tpu.matmul %19, %5, %cst_11 {dimension_numbers = #tpu.dot_dimension_numbers<[2], [1], [1], [2], [0, 0, 0, 1, 1, 2], [0], [0]>} : vector<2x32x32xbf16>, vector<2x32x8xbf16>, vector<2x32x8xf32> -> vector<2x32x8xf32>
    "tpu.trace_stop"() : () -> ()
    %21 = vector.extract_strided_slice %0 {offsets = [0, 0, 8], sizes = [2, 32, 8], strides = [1, 1, 1]} : vector<2x32x16xbf16> to vector<2x32x8xbf16>
    %22 = vector.extract_strided_slice %1 {offsets = [0, 0, 8], sizes = [2, 32, 8], strides = [1, 1, 1]} : vector<2x32x16xbf16> to vector<2x32x8xbf16>
    %23 = vector.extract_strided_slice %2 {offsets = [0, 0, 8], sizes = [2, 32, 8], strides = [1, 1, 1]} : vector<2x32x16xbf16> to vector<2x32x8xbf16>
    "tpu.trace_start"() <{level = 10 : i32, message = "bnc,bmc->bnm"}> : () -> ()
    %cst_12 = arith.constant dense<0.000000e+00> : vector<2x32x32xf32>
    %24 = tpu.matmul %21, %22, %cst_12 {dimension_numbers = #tpu.dot_dimension_numbers<[2], [2], [1], [1], [0, 0, 0, 1, 1, 1], [0], [0]>} : vector<2x32x8xbf16>, vector<2x32x8xbf16>, vector<2x32x32xf32> -> vector<2x32x32xf32>
    "tpu.trace_stop"() : () -> ()
    %cst_13 = arith.constant 0.353553385 : f32
    %25 = vector.broadcast %cst_13 : f32 to vector<2x32x32xf32>
    %26 = arith.mulf %24, %25 : vector<2x32x32xf32>
    %cst_14 = arith.constant dense<0xFF800000> : vector<2x32xf32>
    %27 = vector.multi_reduction <maximumf>, %26, %cst_14 [2] : vector<2x32x32xf32> to vector<2x32xf32>
    %28 = vector.shape_cast %27 : vector<2x32xf32> to vector<2x32x1xf32>
    %29 = vector.broadcast %28 : vector<2x32x1xf32> to vector<2x32x32xf32>
    %30 = arith.subf %26, %29 : vector<2x32x32xf32>
    %31 = math.exp %30 : vector<2x32x32xf32>
    %cst_15 = arith.constant dense<0.000000e+00> : vector<2x32xf32>
    %32 = vector.multi_reduction <add>, %31, %cst_15 [2] : vector<2x32x32xf32> to vector<2x32xf32>
    %33 = vector.shape_cast %32 : vector<2x32xf32> to vector<2x32x1xf32>
    %34 = tpu.reciprocal %33 {approx = true} : vector<2x32x1xf32> -> vector<2x32x1xf32>
    %35 = vector.broadcast %34 : vector<2x32x1xf32> to vector<2x32x32xf32>
    %36 = arith.mulf %31, %35 : vector<2x32x32xf32>
    %37 = arith.truncf %36 : vector<2x32x32xf32> to vector<2x32x32xbf16>
    "tpu.trace_start"() <{level = 10 : i32, message = "bnm,bmc->bnc"}> : () -> ()
    %cst_16 = arith.constant dense<0.000000e+00> : vector<2x32x8xf32>
    %38 = tpu.matmul %37, %23, %cst_16 {dimension_numbers = #tpu.dot_dimension_numbers<[2], [1], [1], [2], [0, 0, 0, 1, 1, 2], [0], [0]>} : vector<2x32x32xbf16>, vector<2x32x8xbf16>, vector<2x32x8xf32> -> vector<2x32x8xf32>
    "tpu.trace_stop"() : () -> ()
    %39 = tpu.concatenate %20, %38 in 2 : vector<2x32x8xf32>, vector<2x32x8xf32> -> vector<2x32x16xf32>
    %40 = arith.extf %2 : vector<2x32x16xbf16> to vector<2x32x16xf32>
    %c4 = arith.constant 4 : index
    %c0_17 = arith.constant 0 : index
    %c0_18 = arith.constant 0 : index
    %41 = vector.load %arg4[%c4, %c0_17, %c0_18] : memref<9x32x16xf32, #tpu.memory_space<vmem>>, vector<1x32x16xf32>
    %42 = vector.shape_cast %41 : vector<1x32x16xf32> to vector<32x16xf32>
    %43 = vector.shape_cast %42 : vector<32x16xf32> to vector<1x32x16xf32>
    %44 = vector.broadcast %43 : vector<1x32x16xf32> to vector<2x32x16xf32>
    %45 = arith.mulf %40, %44 : vector<2x32x16xf32>
    %c9_i32 = arith.constant 9 : i32
    %46 = tpu.dynamic_rotate %40 by %c9_i32 dim 1 : vector<2x32x16xf32>, i32 -> vector<2x32x16xf32>
    %c0_19 = arith.constant 0 : index
    %c0_20 = arith.constant 0 : index
    %c0_21 = arith.constant 0 : index
    %47 = vector.load %arg4[%c0_19, %c0_20, %c0_21] : memref<9x32x16xf32, #tpu.memory_space<vmem>>, vector<1x32x16xf32>
    %48 = vector.shape_cast %47 : vector<1x32x16xf32> to vector<32x16xf32>
    %49 = vector.shape_cast %48 : vector<32x16xf32> to vector<1x32x16xf32>
    %50 = vector.broadcast %49 : vector<1x32x16xf32> to vector<2x32x16xf32>
    %51 = arith.mulf %46, %50 : vector<2x32x16xf32>
    %52 = arith.addf %45, %51 : vector<2x32x16xf32>
    %c8_i32 = arith.constant 8 : i32
    %53 = tpu.dynamic_rotate %40 by %c8_i32 dim 1 : vector<2x32x16xf32>, i32 -> vector<2x32x16xf32>
    %c1 = arith.constant 1 : index
    %c0_22 = arith.constant 0 : index
    %c0_23 = arith.constant 0 : index
    %54 = vector.load %arg4[%c1, %c0_22, %c0_23] : memref<9x32x16xf32, #tpu.memory_space<vmem>>, vector<1x32x16xf32>
    %55 = vector.shape_cast %54 : vector<1x32x16xf32> to vector<32x16xf32>
    %56 = vector.shape_cast %55 : vector<32x16xf32> to vector<1x32x16xf32>
    %57 = vector.broadcast %56 : vector<1x32x16xf32> to vector<2x32x16xf32>
    %58 = arith.mulf %53, %57 : vector<2x32x16xf32>
    %59 = arith.addf %52, %58 : vector<2x32x16xf32>
    %c7_i32 = arith.constant 7 : i32
    %60 = tpu.dynamic_rotate %40 by %c7_i32 dim 1 : vector<2x32x16xf32>, i32 -> vector<2x32x16xf32>
    %c2 = arith.constant 2 : index
    %c0_24 = arith.constant 0 : index
    %c0_25 = arith.constant 0 : index
    %61 = vector.load %arg4[%c2, %c0_24, %c0_25] : memref<9x32x16xf32, #tpu.memory_space<vmem>>, vector<1x32x16xf32>
    %62 = vector.shape_cast %61 : vector<1x32x16xf32> to vector<32x16xf32>
    %63 = vector.shape_cast %62 : vector<32x16xf32> to vector<1x32x16xf32>
    %64 = vector.broadcast %63 : vector<1x32x16xf32> to vector<2x32x16xf32>
    %65 = arith.mulf %60, %64 : vector<2x32x16xf32>
    %66 = arith.addf %59, %65 : vector<2x32x16xf32>
    %c1_i32 = arith.constant 1 : i32
    %67 = tpu.dynamic_rotate %40 by %c1_i32 dim 1 : vector<2x32x16xf32>, i32 -> vector<2x32x16xf32>
    %c3 = arith.constant 3 : index
    %c0_26 = arith.constant 0 : index
    %c0_27 = arith.constant 0 : index
    %68 = vector.load %arg4[%c3, %c0_26, %c0_27] : memref<9x32x16xf32, #tpu.memory_space<vmem>>, vector<1x32x16xf32>
    %69 = vector.shape_cast %68 : vector<1x32x16xf32> to vector<32x16xf32>
    %70 = vector.shape_cast %69 : vector<32x16xf32> to vector<1x32x16xf32>
    %71 = vector.broadcast %70 : vector<1x32x16xf32> to vector<2x32x16xf32>
    %72 = arith.mulf %67, %71 : vector<2x32x16xf32>
    %73 = arith.addf %66, %72 : vector<2x32x16xf32>
    %c31_i32 = arith.constant 31 : i32
    %74 = tpu.dynamic_rotate %40 by %c31_i32 dim 1 : vector<2x32x16xf32>, i32 -> vector<2x32x16xf32>
    %c5 = arith.constant 5 : index
    %c0_28 = arith.constant 0 : index
    %c0_29 = arith.constant 0 : index
    %75 = vector.load %arg4[%c5, %c0_28, %c0_29] : memref<9x32x16xf32, #tpu.memory_space<vmem>>, vector<1x32x16xf32>
    %76 = vector.shape_cast %75 : vector<1x32x16xf32> to vector<32x16xf32>
    %77 = vector.shape_cast %76 : vector<32x16xf32> to vector<1x32x16xf32>
    %78 = vector.broadcast %77 : vector<1x32x16xf32> to vector<2x32x16xf32>
    %79 = arith.mulf %74, %78 : vector<2x32x16xf32>
    %80 = arith.addf %73, %79 : vector<2x32x16xf32>
    %c25_i32 = arith.constant 25 : i32
    %81 = tpu.dynamic_rotate %40 by %c25_i32 dim 1 : vector<2x32x16xf32>, i32 -> vector<2x32x16xf32>
    %c6 = arith.constant 6 : index
    %c0_30 = arith.constant 0 : index
    %c0_31 = arith.constant 0 : index
    %82 = vector.load %arg4[%c6, %c0_30, %c0_31] : memref<9x32x16xf32, #tpu.memory_space<vmem>>, vector<1x32x16xf32>
    %83 = vector.shape_cast %82 : vector<1x32x16xf32> to vector<32x16xf32>
    %84 = vector.shape_cast %83 : vector<32x16xf32> to vector<1x32x16xf32>
    %85 = vector.broadcast %84 : vector<1x32x16xf32> to vector<2x32x16xf32>
    %86 = arith.mulf %81, %85 : vector<2x32x16xf32>
    %87 = arith.addf %80, %86 : vector<2x32x16xf32>
    %c24_i32 = arith.constant 24 : i32
    %88 = tpu.dynamic_rotate %40 by %c24_i32 dim 1 : vector<2x32x16xf32>, i32 -> vector<2x32x16xf32>
    %c7 = arith.constant 7 : index
    %c0_32 = arith.constant 0 : index
    %c0_33 = arith.constant 0 : index
    %89 = vector.load %arg4[%c7, %c0_32, %c0_33] : memref<9x32x16xf32, #tpu.memory_space<vmem>>, vector<1x32x16xf32>
    %90 = vector.shape_cast %89 : vector<1x32x16xf32> to vector<32x16xf32>
    %91 = vector.shape_cast %90 : vector<32x16xf32> to vector<1x32x16xf32>
    %92 = vector.broadcast %91 : vector<1x32x16xf32> to vector<2x32x16xf32>
    %93 = arith.mulf %88, %92 : vector<2x32x16xf32>
    %94 = arith.addf %87, %93 : vector<2x32x16xf32>
    %c23_i32 = arith.constant 23 : i32
    %95 = tpu.dynamic_rotate %40 by %c23_i32 dim 1 : vector<2x32x16xf32>, i32 -> vector<2x32x16xf32>
    %c8 = arith.constant 8 : index
    %c0_34 = arith.constant 0 : index
    %c0_35 = arith.constant 0 : index
    %96 = vector.load %arg4[%c8, %c0_34, %c0_35] : memref<9x32x16xf32, #tpu.memory_space<vmem>>, vector<1x32x16xf32>
    %97 = vector.shape_cast %96 : vector<1x32x16xf32> to vector<32x16xf32>
    %98 = vector.shape_cast %97 : vector<32x16xf32> to vector<1x32x16xf32>
    %99 = vector.broadcast %98 : vector<1x32x16xf32> to vector<2x32x16xf32>
    %100 = arith.mulf %95, %99 : vector<2x32x16xf32>
    %101 = arith.addf %94, %100 : vector<2x32x16xf32>
    %c0_36 = arith.constant 0 : index
    %c0_37 = arith.constant 0 : index
    %102 = vector.load %arg5[%c0_36, %c0_37] : memref<1x16xf32, #tpu.memory_space<vmem>>, vector<1x16xf32>
    %103 = vector.shape_cast %102 : vector<1x16xf32> to vector<1x1x16xf32>
    %104 = vector.broadcast %103 : vector<1x1x16xf32> to vector<2x32x16xf32>
    %105 = arith.addf %101, %104 : vector<2x32x16xf32>
    %106 = arith.addf %39, %105 : vector<2x32x16xf32>
    %107 = arith.truncf %106 : vector<2x32x16xf32> to vector<2x32x16xbf16>
    %c0_38 = arith.constant 0 : index
    %c0_39 = arith.constant 0 : index
    %c0_40 = arith.constant 0 : index
    %108 = vector.load %arg6[%c0_38, %c0_39, %c0_40] : memref<2x32x16xbf16, #tpu.memory_space<vmem>>, vector<2x32x16xbf16>
    tpu.vector_store %arg6[%c0_38, %c0_39, %c0_40], %107 {strides = array<i32>} : memref<2x32x16xbf16, #tpu.memory_space<vmem>>, vector<2x32x16xbf16>,
    return
  }
  func.func @transform_0(%arg0: i32) -> (i32, i32, i32) {
    %c0_i32 = arith.constant 0 : i32
    %c0_i32_0 = arith.constant 0 : i32
    %c0_i32_1 = arith.constant 0 : i32
    return %arg0, %c0_i32, %c0_i32_0 : i32, i32, i32
  }
  func.func @transform_1(%arg0: i32) -> (i32, i32, i32) {
    %c0_i32 = arith.constant 0 : i32
    %c0_i32_0 = arith.constant 0 : i32
    %c0_i32_1 = arith.constant 0 : i32
    return %arg0, %c0_i32, %c0_i32_0 : i32, i32, i32
  }
  func.func @transform_2(%arg0: i32) -> (i32, i32, i32) {
    %c0_i32 = arith.constant 0 : i32
    %c0_i32_0 = arith.constant 0 : i32
    %c0_i32_1 = arith.constant 0 : i32
    return %arg0, %c0_i32, %c0_i32_0 : i32, i32, i32
  }
  func.func @transform_3(%arg0: i32) -> (i32, i32, i32) {
    %c0_i32 = arith.constant 0 : i32
    %c0_i32_0 = arith.constant 0 : i32
    %c0_i32_1 = arith.constant 0 : i32
    %c0_i32_2 = arith.constant 0 : i32
    return %c0_i32, %c0_i32_0, %c0_i32_1 : i32, i32, i32
  }
  func.func @transform_4(%arg0: i32) -> (i32, i32) {
    %c0_i32 = arith.constant 0 : i32
    %c0_i32_0 = arith.constant 0 : i32
    %c0_i32_1 = arith.constant 0 : i32
    return %c0_i32, %c0_i32_0 : i32, i32
  }
  func.func @transform_5(%arg0: i32) -> (i32, i32, i32) {
    %c0_i32 = arith.constant 0 : i32
    %c0_i32_0 = arith.constant 0 : i32
    %c0_i32_1 = arith.constant 0 : i32
    return %arg0, %c0_i32, %c0_i32_0 : i32, i32, i32
  }
}

module attributes {stable_mosaic.version = 11 : i64} {
  func.func @_lepe_attn_kernel(%arg0: i32, %arg1: memref<2x32x16xbf16, #tpu.memory_space<vmem>>, %arg2: memref<2x32x16xbf16, #tpu.memory_space<vmem>>, %arg3: memref<2x32x16xbf16, #tpu.memory_space<vmem>>, %arg4: memref<9x32x16xf32, #tpu.memory_space<vmem>>, %arg5: memref<1x16xf32, #tpu.memory_space<vmem>>, %arg6: memref<2x32x16xbf16, #tpu.memory_space<vmem>>) attributes {dimension_semantics = [#tpu.dimension_semantics<parallel>], iteration_bounds = array<i64: 2>, scalar_prefetch = 0 : i64, scratch_operands = 0 : i64, tpu.core_type = #tpu.core_type<tc>, window_params = [{transform_indices = @transform_0, window_bounds = array<i64: 2, 32, 16>}, {transform_indices = @transform_1, window_bounds = array<i64: 2, 32, 16>}, {transform_indices = @transform_2, window_bounds = array<i64: 2, 32, 16>}, {pipeline_mode = #tpu.pipeline_mode<synchronous>, transform_indices = @transform_3, window_bounds = array<i64: 9, 32, 16>}, {pipeline_mode = #tpu.pipeline_mode<synchronous>, transform_indices = @transform_4, window_bounds = array<i64: 1, 16>}, {transform_indices = @transform_5, window_bounds = array<i64: 2, 32, 16>}]} {
    %c0 = arith.constant 0 : index
    %c0_0 = arith.constant 0 : index
    %c0_1 = arith.constant 0 : index
    %0 = vector.load %arg1[%c0, %c0_0, %c0_1] : memref<2x32x16xbf16, #tpu.memory_space<vmem>>, vector<2x32x16xbf16>
    %c0_2 = arith.constant 0 : index
    %c0_3 = arith.constant 0 : index
    %c0_4 = arith.constant 0 : index
    %1 = vector.load %arg2[%c0_2, %c0_3, %c0_4] : memref<2x32x16xbf16, #tpu.memory_space<vmem>>, vector<2x32x16xbf16>
    %c0_5 = arith.constant 0 : index
    %c0_6 = arith.constant 0 : index
    %c0_7 = arith.constant 0 : index
    %2 = vector.load %arg3[%c0_5, %c0_6, %c0_7] : memref<2x32x16xbf16, #tpu.memory_space<vmem>>, vector<2x32x16xbf16>
    %3 = vector.extract_strided_slice %0 {offsets = [0, 0, 0], sizes = [2, 32, 8], strides = [1, 1, 1]} : vector<2x32x16xbf16> to vector<2x32x8xbf16>
    %4 = vector.extract_strided_slice %1 {offsets = [0, 0, 0], sizes = [2, 32, 8], strides = [1, 1, 1]} : vector<2x32x16xbf16> to vector<2x32x8xbf16>
    %5 = vector.extract_strided_slice %2 {offsets = [0, 0, 0], sizes = [2, 32, 8], strides = [1, 1, 1]} : vector<2x32x16xbf16> to vector<2x32x8xbf16>
    "tpu.trace_start"() <{level = 10 : i32, message = "bnc,bmc->bnm"}> : () -> ()
    %cst = arith.constant dense<0.000000e+00> : vector<2x32x32xf32>
    %6 = tpu.matmul %3, %4, %cst {dimension_numbers = #tpu.dot_dimension_numbers<[2], [2], [1], [1], [0, 0, 0, 1, 1, 1], [0], [0]>} : vector<2x32x8xbf16>, vector<2x32x8xbf16>, vector<2x32x32xf32> -> vector<2x32x32xf32>
    "tpu.trace_stop"() : () -> ()
    %cst_8 = arith.constant 0.353553385 : f32
    %7 = vector.broadcast %cst_8 : f32 to vector<2x32x32xf32>
    %8 = arith.mulf %6, %7 : vector<2x32x32xf32>
    %cst_9 = arith.constant dense<0xFF800000> : vector<2x32xf32>
    %9 = vector.multi_reduction <maximumf>, %8, %cst_9 [2] : vector<2x32x32xf32> to vector<2x32xf32>
    %10 = vector.shape_cast %9 : vector<2x32xf32> to vector<2x32x1xf32>
    %11 = vector.broadcast %10 : vector<2x32x1xf32> to vector<2x32x32xf32>
    %12 = arith.subf %8, %11 : vector<2x32x32xf32>
    %13 = math.exp %12 : vector<2x32x32xf32>
    %cst_10 = arith.constant dense<0.000000e+00> : vector<2x32xf32>
    %14 = vector.multi_reduction <add>, %13, %cst_10 [2] : vector<2x32x32xf32> to vector<2x32xf32>
    %15 = vector.shape_cast %14 : vector<2x32xf32> to vector<2x32x1xf32>
    %16 = tpu.reciprocal %15 {approx = true} : vector<2x32x1xf32> -> vector<2x32x1xf32>
    %17 = vector.broadcast %16 : vector<2x32x1xf32> to vector<2x32x32xf32>
    %18 = arith.mulf %13, %17 : vector<2x32x32xf32>
    %19 = arith.truncf %18 : vector<2x32x32xf32> to vector<2x32x32xbf16>
    "tpu.trace_start"() <{level = 10 : i32, message = "bnm,bmc->bnc"}> : () -> ()
    %cst_11 = arith.constant dense<0.000000e+00> : vector<2x32x8xf32>
    %20 = tpu.matmul %19, %5, %cst_11 {dimension_numbers = #tpu.dot_dimension_numbers<[2], [1], [1], [2], [0, 0, 0, 1, 1, 2], [0], [0]>} : vector<2x32x32xbf16>, vector<2x32x8xbf16>, vector<2x32x8xf32> -> vector<2x32x8xf32>
    "tpu.trace_stop"() : () -> ()
    %21 = vector.extract_strided_slice %0 {offsets = [0, 0, 8], sizes = [2, 32, 8], strides = [1, 1, 1]} : vector<2x32x16xbf16> to vector<2x32x8xbf16>
    %22 = vector.extract_strided_slice %1 {offsets = [0, 0, 8], sizes = [2, 32, 8], strides = [1, 1, 1]} : vector<2x32x16xbf16> to vector<2x32x8xbf16>
    %23 = vector.extract_strided_slice %2 {offsets = [0, 0, 8], sizes = [2, 32, 8], strides = [1, 1, 1]} : vector<2x32x16xbf16> to vector<2x32x8xbf16>
    "tpu.trace_start"() <{level = 10 : i32, message = "bnc,bmc->bnm"}> : () -> ()
    %cst_12 = arith.constant dense<0.000000e+00> : vector<2x32x32xf32>
    %24 = tpu.matmul %21, %22, %cst_12 {dimension_numbers = #tpu.dot_dimension_numbers<[2], [2], [1], [1], [0, 0, 0, 1, 1, 1], [0], [0]>} : vector<2x32x8xbf16>, vector<2x32x8xbf16>, vector<2x32x32xf32> -> vector<2x32x32xf32>
    "tpu.trace_stop"() : () -> ()
    %cst_13 = arith.constant 0.353553385 : f32
    %25 = vector.broadcast %cst_13 : f32 to vector<2x32x32xf32>
    %26 = arith.mulf %24, %25 : vector<2x32x32xf32>
    %cst_14 = arith.constant dense<0xFF800000> : vector<2x32xf32>
    %27 = vector.multi_reduction <maximumf>, %26, %cst_14 [2] : vector<2x32x32xf32> to vector<2x32xf32>
    %28 = vector.shape_cast %27 : vector<2x32xf32> to vector<2x32x1xf32>
    %29 = vector.broadcast %28 : vector<2x32x1xf32> to vector<2x32x32xf32>
    %30 = arith.subf %26, %29 : vector<2x32x32xf32>
    %31 = math.exp %30 : vector<2x32x32xf32>
    %cst_15 = arith.constant dense<0.000000e+00> : vector<2x32xf32>
    %32 = vector.multi_reduction <add>, %31, %cst_15 [2] : vector<2x32x32xf32> to vector<2x32xf32>
    %33 = vector.shape_cast %32 : vector<2x32xf32> to vector<2x32x1xf32>
    %34 = tpu.reciprocal %33 {approx = true} : vector<2x32x1xf32> -> vector<2x32x1xf32>
    %35 = vector.broadcast %34 : vector<2x32x1xf32> to vector<2x32x32xf32>
    %36 = arith.mulf %31, %35 : vector<2x32x32xf32>
    %37 = arith.truncf %36 : vector<2x32x32xf32> to vector<2x32x32xbf16>
    "tpu.trace_start"() <{level = 10 : i32, message = "bnm,bmc->bnc"}> : () -> ()
    %cst_16 = arith.constant dense<0.000000e+00> : vector<2x32x8xf32>
    %38 = tpu.matmul %37, %23, %cst_16 {dimension_numbers = #tpu.dot_dimension_numbers<[2], [1], [1], [2], [0, 0, 0, 1, 1, 2], [0], [0]>} : vector<2x32x32xbf16>, vector<2x32x8xbf16>, vector<2x32x8xf32> -> vector<2x32x8xf32>
    "tpu.trace_stop"() : () -> ()
    %39 = tpu.concatenate %20, %38 in 2 : vector<2x32x8xf32>, vector<2x32x8xf32> -> vector<2x32x16xf32>
    %40 = arith.extf %2 : vector<2x32x16xbf16> to vector<2x32x16xf32>
    %c4 = arith.constant 4 : index
    %c0_17 = arith.constant 0 : index
    %c0_18 = arith.constant 0 : index
    %41 = vector.load %arg4[%c4, %c0_17, %c0_18] : memref<9x32x16xf32, #tpu.memory_space<vmem>>, vector<1x32x16xf32>
    %42 = vector.shape_cast %41 : vector<1x32x16xf32> to vector<32x16xf32>
    %43 = vector.shape_cast %42 : vector<32x16xf32> to vector<1x32x16xf32>
    %44 = vector.broadcast %43 : vector<1x32x16xf32> to vector<2x32x16xf32>
    %45 = arith.mulf %40, %44 : vector<2x32x16xf32>
    %c5_i32 = arith.constant 5 : i32
    %46 = tpu.dynamic_rotate %40 by %c5_i32 dim 1 : vector<2x32x16xf32>, i32 -> vector<2x32x16xf32>
    %c0_19 = arith.constant 0 : index
    %c0_20 = arith.constant 0 : index
    %c0_21 = arith.constant 0 : index
    %47 = vector.load %arg4[%c0_19, %c0_20, %c0_21] : memref<9x32x16xf32, #tpu.memory_space<vmem>>, vector<1x32x16xf32>
    %48 = vector.shape_cast %47 : vector<1x32x16xf32> to vector<32x16xf32>
    %49 = vector.shape_cast %48 : vector<32x16xf32> to vector<1x32x16xf32>
    %50 = vector.broadcast %49 : vector<1x32x16xf32> to vector<2x32x16xf32>
    %51 = arith.mulf %46, %50 : vector<2x32x16xf32>
    %52 = arith.addf %45, %51 : vector<2x32x16xf32>
    %c4_i32 = arith.constant 4 : i32
    %53 = tpu.dynamic_rotate %40 by %c4_i32 dim 1 : vector<2x32x16xf32>, i32 -> vector<2x32x16xf32>
    %c1 = arith.constant 1 : index
    %c0_22 = arith.constant 0 : index
    %c0_23 = arith.constant 0 : index
    %54 = vector.load %arg4[%c1, %c0_22, %c0_23] : memref<9x32x16xf32, #tpu.memory_space<vmem>>, vector<1x32x16xf32>
    %55 = vector.shape_cast %54 : vector<1x32x16xf32> to vector<32x16xf32>
    %56 = vector.shape_cast %55 : vector<32x16xf32> to vector<1x32x16xf32>
    %57 = vector.broadcast %56 : vector<1x32x16xf32> to vector<2x32x16xf32>
    %58 = arith.mulf %53, %57 : vector<2x32x16xf32>
    %59 = arith.addf %52, %58 : vector<2x32x16xf32>
    %c3_i32 = arith.constant 3 : i32
    %60 = tpu.dynamic_rotate %40 by %c3_i32 dim 1 : vector<2x32x16xf32>, i32 -> vector<2x32x16xf32>
    %c2 = arith.constant 2 : index
    %c0_24 = arith.constant 0 : index
    %c0_25 = arith.constant 0 : index
    %61 = vector.load %arg4[%c2, %c0_24, %c0_25] : memref<9x32x16xf32, #tpu.memory_space<vmem>>, vector<1x32x16xf32>
    %62 = vector.shape_cast %61 : vector<1x32x16xf32> to vector<32x16xf32>
    %63 = vector.shape_cast %62 : vector<32x16xf32> to vector<1x32x16xf32>
    %64 = vector.broadcast %63 : vector<1x32x16xf32> to vector<2x32x16xf32>
    %65 = arith.mulf %60, %64 : vector<2x32x16xf32>
    %66 = arith.addf %59, %65 : vector<2x32x16xf32>
    %c1_i32 = arith.constant 1 : i32
    %67 = tpu.dynamic_rotate %40 by %c1_i32 dim 1 : vector<2x32x16xf32>, i32 -> vector<2x32x16xf32>
    %c3 = arith.constant 3 : index
    %c0_26 = arith.constant 0 : index
    %c0_27 = arith.constant 0 : index
    %68 = vector.load %arg4[%c3, %c0_26, %c0_27] : memref<9x32x16xf32, #tpu.memory_space<vmem>>, vector<1x32x16xf32>
    %69 = vector.shape_cast %68 : vector<1x32x16xf32> to vector<32x16xf32>
    %70 = vector.shape_cast %69 : vector<32x16xf32> to vector<1x32x16xf32>
    %71 = vector.broadcast %70 : vector<1x32x16xf32> to vector<2x32x16xf32>
    %72 = arith.mulf %67, %71 : vector<2x32x16xf32>
    %73 = arith.addf %66, %72 : vector<2x32x16xf32>
    %c31_i32 = arith.constant 31 : i32
    %74 = tpu.dynamic_rotate %40 by %c31_i32 dim 1 : vector<2x32x16xf32>, i32 -> vector<2x32x16xf32>
    %c5 = arith.constant 5 : index
    %c0_28 = arith.constant 0 : index
    %c0_29 = arith.constant 0 : index
    %75 = vector.load %arg4[%c5, %c0_28, %c0_29] : memref<9x32x16xf32, #tpu.memory_space<vmem>>, vector<1x32x16xf32>
    %76 = vector.shape_cast %75 : vector<1x32x16xf32> to vector<32x16xf32>
    %77 = vector.shape_cast %76 : vector<32x16xf32> to vector<1x32x16xf32>
    %78 = vector.broadcast %77 : vector<1x32x16xf32> to vector<2x32x16xf32>
    %79 = arith.mulf %74, %78 : vector<2x32x16xf32>
    %80 = arith.addf %73, %79 : vector<2x32x16xf32>
    %c29_i32 = arith.constant 29 : i32
    %81 = tpu.dynamic_rotate %40 by %c29_i32 dim 1 : vector<2x32x16xf32>, i32 -> vector<2x32x16xf32>
    %c6 = arith.constant 6 : index
    %c0_30 = arith.constant 0 : index
    %c0_31 = arith.constant 0 : index
    %82 = vector.load %arg4[%c6, %c0_30, %c0_31] : memref<9x32x16xf32, #tpu.memory_space<vmem>>, vector<1x32x16xf32>
    %83 = vector.shape_cast %82 : vector<1x32x16xf32> to vector<32x16xf32>
    %84 = vector.shape_cast %83 : vector<32x16xf32> to vector<1x32x16xf32>
    %85 = vector.broadcast %84 : vector<1x32x16xf32> to vector<2x32x16xf32>
    %86 = arith.mulf %81, %85 : vector<2x32x16xf32>
    %87 = arith.addf %80, %86 : vector<2x32x16xf32>
    %c28_i32 = arith.constant 28 : i32
    %88 = tpu.dynamic_rotate %40 by %c28_i32 dim 1 : vector<2x32x16xf32>, i32 -> vector<2x32x16xf32>
    %c7 = arith.constant 7 : index
    %c0_32 = arith.constant 0 : index
    %c0_33 = arith.constant 0 : index
    %89 = vector.load %arg4[%c7, %c0_32, %c0_33] : memref<9x32x16xf32, #tpu.memory_space<vmem>>, vector<1x32x16xf32>
    %90 = vector.shape_cast %89 : vector<1x32x16xf32> to vector<32x16xf32>
    %91 = vector.shape_cast %90 : vector<32x16xf32> to vector<1x32x16xf32>
    %92 = vector.broadcast %91 : vector<1x32x16xf32> to vector<2x32x16xf32>
    %93 = arith.mulf %88, %92 : vector<2x32x16xf32>
    %94 = arith.addf %87, %93 : vector<2x32x16xf32>
    %c27_i32 = arith.constant 27 : i32
    %95 = tpu.dynamic_rotate %40 by %c27_i32 dim 1 : vector<2x32x16xf32>, i32 -> vector<2x32x16xf32>
    %c8 = arith.constant 8 : index
    %c0_34 = arith.constant 0 : index
    %c0_35 = arith.constant 0 : index
    %96 = vector.load %arg4[%c8, %c0_34, %c0_35] : memref<9x32x16xf32, #tpu.memory_space<vmem>>, vector<1x32x16xf32>
    %97 = vector.shape_cast %96 : vector<1x32x16xf32> to vector<32x16xf32>
    %98 = vector.shape_cast %97 : vector<32x16xf32> to vector<1x32x16xf32>
    %99 = vector.broadcast %98 : vector<1x32x16xf32> to vector<2x32x16xf32>
    %100 = arith.mulf %95, %99 : vector<2x32x16xf32>
    %101 = arith.addf %94, %100 : vector<2x32x16xf32>
    %c0_36 = arith.constant 0 : index
    %c0_37 = arith.constant 0 : index
    %102 = vector.load %arg5[%c0_36, %c0_37] : memref<1x16xf32, #tpu.memory_space<vmem>>, vector<1x16xf32>
    %103 = vector.shape_cast %102 : vector<1x16xf32> to vector<1x1x16xf32>
    %104 = vector.broadcast %103 : vector<1x1x16xf32> to vector<2x32x16xf32>
    %105 = arith.addf %101, %104 : vector<2x32x16xf32>
    %106 = arith.addf %39, %105 : vector<2x32x16xf32>
    %107 = arith.truncf %106 : vector<2x32x16xf32> to vector<2x32x16xbf16>
    %c0_38 = arith.constant 0 : index
    %c0_39 = arith.constant 0 : index
    %c0_40 = arith.constant 0 : index
    %108 = vector.load %arg6[%c0_38, %c0_39, %c0_40] : memref<2x32x16xbf16, #tpu.memory_space<vmem>>, vector<2x32x16xbf16>
    tpu.vector_store %arg6[%c0_38, %c0_39, %c0_40], %107 {strides = array<i32>} : memref<2x32x16xbf16, #tpu.memory_space<vmem>>, vector<2x32x16xbf16>,
    return
  }
  func.func @transform_0(%arg0: i32) -> (i32, i32, i32) {
    %c0_i32 = arith.constant 0 : i32
    %c0_i32_0 = arith.constant 0 : i32
    %c0_i32_1 = arith.constant 0 : i32
    return %arg0, %c0_i32, %c0_i32_0 : i32, i32, i32
  }
  func.func @transform_1(%arg0: i32) -> (i32, i32, i32) {
    %c0_i32 = arith.constant 0 : i32
    %c0_i32_0 = arith.constant 0 : i32
    %c0_i32_1 = arith.constant 0 : i32
    return %arg0, %c0_i32, %c0_i32_0 : i32, i32, i32
  }
  func.func @transform_2(%arg0: i32) -> (i32, i32, i32) {
    %c0_i32 = arith.constant 0 : i32
    %c0_i32_0 = arith.constant 0 : i32
    %c0_i32_1 = arith.constant 0 : i32
    return %arg0, %c0_i32, %c0_i32_0 : i32, i32, i32
  }
  func.func @transform_3(%arg0: i32) -> (i32, i32, i32) {
    %c0_i32 = arith.constant 0 : i32
    %c0_i32_0 = arith.constant 0 : i32
    %c0_i32_1 = arith.constant 0 : i32
    %c0_i32_2 = arith.constant 0 : i32
    return %c0_i32, %c0_i32_0, %c0_i32_1 : i32, i32, i32
  }
  func.func @transform_4(%arg0: i32) -> (i32, i32) {
    %c0_i32 = arith.constant 0 : i32
    %c0_i32_0 = arith.constant 0 : i32
    %c0_i32_1 = arith.constant 0 : i32
    return %c0_i32, %c0_i32_0 : i32, i32
  }
  func.func @transform_5(%arg0: i32) -> (i32, i32, i32) {
    %c0_i32 = arith.constant 0 : i32
    %c0_i32_0 = arith.constant 0 : i32
    %c0_i32_1 = arith.constant 0 : i32
    return %arg0, %c0_i32, %c0_i32_0 : i32, i32, i32
  }
}

module attributes {stable_mosaic.version = 11 : i64} {
  func.func @_proj_mlp_kernel(%arg0: i32, %arg1: memref<128x16xbf16, #tpu.memory_space<vmem>>, %arg2: memref<128x16xbf16, #tpu.memory_space<vmem>>, %arg3: memref<32x32xbf16, #tpu.memory_space<vmem>>, %arg4: memref<1x32xf32, #tpu.memory_space<vmem>>, %arg5: memref<1x32xf32, #tpu.memory_space<vmem>>, %arg6: memref<1x32xf32, #tpu.memory_space<vmem>>, %arg7: memref<32x128xbf16, #tpu.memory_space<vmem>>, %arg8: memref<1x128xf32, #tpu.memory_space<vmem>>, %arg9: memref<128x32xbf16, #tpu.memory_space<vmem>>, %arg10: memref<1x32xf32, #tpu.memory_space<vmem>>, %arg11: memref<128x32xf32, #tpu.memory_space<vmem>>) attributes {dimension_semantics = [#tpu.dimension_semantics<parallel>], iteration_bounds = array<i64: 1>, scalar_prefetch = 0 : i64, scratch_operands = 0 : i64, tpu.core_type = #tpu.core_type<tc>, window_params = [{transform_indices = @transform_0, window_bounds = array<i64: 128, 16>}, {transform_indices = @transform_1, window_bounds = array<i64: 128, 16>}, {pipeline_mode = #tpu.pipeline_mode<synchronous>, transform_indices = @transform_2, window_bounds = array<i64: 32, 32>}, {pipeline_mode = #tpu.pipeline_mode<synchronous>, transform_indices = @transform_3, window_bounds = array<i64: 1, 32>}, {pipeline_mode = #tpu.pipeline_mode<synchronous>, transform_indices = @transform_4, window_bounds = array<i64: 1, 32>}, {pipeline_mode = #tpu.pipeline_mode<synchronous>, transform_indices = @transform_5, window_bounds = array<i64: 1, 32>}, {pipeline_mode = #tpu.pipeline_mode<synchronous>, transform_indices = @transform_6, window_bounds = array<i64: 32, 128>}, {pipeline_mode = #tpu.pipeline_mode<synchronous>, transform_indices = @transform_7, window_bounds = array<i64: 1, 128>}, {pipeline_mode = #tpu.pipeline_mode<synchronous>, transform_indices = @transform_8, window_bounds = array<i64: 128, 32>}, {pipeline_mode = #tpu.pipeline_mode<synchronous>, transform_indices = @transform_9, window_bounds = array<i64: 1, 32>}, {transform_indices = @transform_10, window_bounds = array<i64: 128, 32>}]} {
    %c0 = arith.constant 0 : index
    %c0_0 = arith.constant 0 : index
    %0 = vector.load %arg1[%c0, %c0_0] : memref<128x16xbf16, #tpu.memory_space<vmem>>, vector<128x16xbf16>
    %c0_1 = arith.constant 0 : index
    %c0_2 = arith.constant 0 : index
    %1 = vector.load %arg2[%c0_1, %c0_2] : memref<128x16xbf16, #tpu.memory_space<vmem>>, vector<128x16xbf16>
    %2 = tpu.concatenate %0, %1 in 1 : vector<128x16xbf16>, vector<128x16xbf16> -> vector<128x32xbf16>
    %3 = arith.extf %2 : vector<128x32xbf16> to vector<128x32xf32>
    %c0_3 = arith.constant 0 : index
    %c0_4 = arith.constant 0 : index
    %4 = vector.load %arg3[%c0_3, %c0_4] : memref<32x32xbf16, #tpu.memory_space<vmem>>, vector<32x32xbf16>
    %cst = arith.constant dense<0.000000e+00> : vector<128x32xf32>
    %5 = tpu.matmul %2, %4, %cst {dimension_numbers = #tpu.dot_dimension_numbers<[1], [0], [0], [1], [0, 0, 1, 1], [], []>} : vector<128x32xbf16>, vector<32x32xbf16>, vector<128x32xf32> -> vector<128x32xf32>
    %6 = arith.addf %3, %5 : vector<128x32xf32>
    %c0_5 = arith.constant 0 : index
    %c0_6 = arith.constant 0 : index
    %7 = vector.load %arg4[%c0_5, %c0_6] : memref<1x32xf32, #tpu.memory_space<vmem>>, vector<1x32xf32>
    %8 = vector.broadcast %7 : vector<1x32xf32> to vector<128x32xf32>
    %9 = arith.addf %6, %8 : vector<128x32xf32>
    %cst_7 = arith.constant dense<0.000000e+00> : vector<128xf32>
    %10 = vector.multi_reduction <add>, %9, %cst_7 [1] : vector<128x32xf32> to vector<128xf32>
    %11 = vector.shape_cast %10 : vector<128xf32> to vector<128x1xf32>
    %cst_8 = arith.constant 3.200000e+01 : f32
    %12 = vector.broadcast %cst_8 : f32 to vector<128x1xf32>
    %13 = arith.divf %11, %12 : vector<128x1xf32>
    %14 = vector.broadcast %13 : vector<128x1xf32> to vector<128x32xf32>
    %15 = arith.subf %9, %14 : vector<128x32xf32>
    %16 = arith.mulf %15, %15 : vector<128x32xf32>
    %cst_9 = arith.constant dense<0.000000e+00> : vector<128xf32>
    %17 = vector.multi_reduction <add>, %16, %cst_9 [1] : vector<128x32xf32> to vector<128xf32>
    %18 = vector.shape_cast %17 : vector<128xf32> to vector<128x1xf32>
    %cst_10 = arith.constant 3.200000e+01 : f32
    %19 = vector.broadcast %cst_10 : f32 to vector<128x1xf32>
    %20 = arith.divf %18, %19 : vector<128x1xf32>
    %21 = vector.broadcast %13 : vector<128x1xf32> to vector<128x32xf32>
    %22 = arith.subf %9, %21 : vector<128x32xf32>
    %cst_11 = arith.constant 9.99999974E-6 : f32
    %23 = vector.broadcast %cst_11 : f32 to vector<128x1xf32>
    %24 = arith.addf %20, %23 : vector<128x1xf32>
    %25 = math.rsqrt %24 : vector<128x1xf32>
    %26 = vector.broadcast %25 : vector<128x1xf32> to vector<128x32xf32>
    %27 = arith.mulf %22, %26 : vector<128x32xf32>
    %c0_12 = arith.constant 0 : index
    %c0_13 = arith.constant 0 : index
    %28 = vector.load %arg5[%c0_12, %c0_13] : memref<1x32xf32, #tpu.memory_space<vmem>>, vector<1x32xf32>
    %29 = vector.broadcast %28 : vector<1x32xf32> to vector<128x32xf32>
    %30 = arith.mulf %27, %29 : vector<128x32xf32>
    %c0_14 = arith.constant 0 : index
    %c0_15 = arith.constant 0 : index
    %31 = vector.load %arg6[%c0_14, %c0_15] : memref<1x32xf32, #tpu.memory_space<vmem>>, vector<1x32xf32>
    %32 = vector.broadcast %31 : vector<1x32xf32> to vector<128x32xf32>
    %33 = arith.addf %30, %32 : vector<128x32xf32>
    %34 = arith.truncf %33 : vector<128x32xf32> to vector<128x32xbf16>
    %c0_16 = arith.constant 0 : index
    %c0_17 = arith.constant 0 : index
    %35 = vector.load %arg7[%c0_16, %c0_17] : memref<32x128xbf16, #tpu.memory_space<vmem>>, vector<32x128xbf16>
    %cst_18 = arith.constant dense<0.000000e+00> : vector<128x128xf32>
    %36 = tpu.matmul %34, %35, %cst_18 {dimension_numbers = #tpu.dot_dimension_numbers<[1], [0], [0], [1], [0, 0, 1, 1], [], []>} : vector<128x32xbf16>, vector<32x128xbf16>, vector<128x128xf32> -> vector<128x128xf32>
    %c0_19 = arith.constant 0 : index
    %c0_20 = arith.constant 0 : index
    %37 = vector.load %arg8[%c0_19, %c0_20] : memref<1x128xf32, #tpu.memory_space<vmem>>, vector<1x128xf32>
    %38 = vector.broadcast %37 : vector<1x128xf32> to vector<128x128xf32>
    %39 = arith.addf %36, %38 : vector<128x128xf32>
    %40 = arith.mulf %39, %39 : vector<128x128xf32>
    %41 = arith.mulf %39, %40 : vector<128x128xf32>
    %cst_21 = arith.constant 4.471500e-02 : f32
    %42 = vector.broadcast %cst_21 : f32 to vector<128x128xf32>
    %43 = arith.mulf %42, %41 : vector<128x128xf32>
    %44 = arith.addf %39, %43 : vector<128x128xf32>
    %cst_22 = arith.constant 0.797884583 : f32
    %45 = vector.broadcast %cst_22 : f32 to vector<128x128xf32>
    %46 = arith.mulf %45, %44 : vector<128x128xf32>
    %47 = math.tanh %46 : vector<128x128xf32>
    %cst_23 = arith.constant 1.000000e+00 : f32
    %48 = vector.broadcast %cst_23 : f32 to vector<128x128xf32>
    %49 = arith.addf %48, %47 : vector<128x128xf32>
    %cst_24 = arith.constant 5.000000e-01 : f32
    %50 = vector.broadcast %cst_24 : f32 to vector<128x128xf32>
    %51 = arith.mulf %50, %49 : vector<128x128xf32>
    %52 = arith.mulf %39, %51 : vector<128x128xf32>
    %53 = arith.truncf %52 : vector<128x128xf32> to vector<128x128xbf16>
    %c0_25 = arith.constant 0 : index
    %c0_26 = arith.constant 0 : index
    %54 = vector.load %arg9[%c0_25, %c0_26] : memref<128x32xbf16, #tpu.memory_space<vmem>>, vector<128x32xbf16>
    %cst_27 = arith.constant dense<0.000000e+00> : vector<128x32xf32>
    %55 = tpu.matmul %53, %54, %cst_27 {dimension_numbers = #tpu.dot_dimension_numbers<[1], [0], [0], [1], [0, 0, 1, 1], [], []>} : vector<128x128xbf16>, vector<128x32xbf16>, vector<128x32xf32> -> vector<128x32xf32>
    %56 = arith.addf %9, %55 : vector<128x32xf32>
    %c0_28 = arith.constant 0 : index
    %c0_29 = arith.constant 0 : index
    %57 = vector.load %arg10[%c0_28, %c0_29] : memref<1x32xf32, #tpu.memory_space<vmem>>, vector<1x32xf32>
    %58 = vector.broadcast %57 : vector<1x32xf32> to vector<128x32xf32>
    %59 = arith.addf %56, %58 : vector<128x32xf32>
    %c0_30 = arith.constant 0 : index
    %c0_31 = arith.constant 0 : index
    %60 = vector.load %arg11[%c0_30, %c0_31] : memref<128x32xf32, #tpu.memory_space<vmem>>, vector<128x32xf32>
    tpu.vector_store %arg11[%c0_30, %c0_31], %59 {strides = array<i32>} : memref<128x32xf32, #tpu.memory_space<vmem>>, vector<128x32xf32>,
    return
  }
  func.func @transform_0(%arg0: i32) -> (i32, i32) {
    %c0_i32 = arith.constant 0 : i32
    %c0_i32_0 = arith.constant 0 : i32
    return %arg0, %c0_i32 : i32, i32
  }
  func.func @transform_1(%arg0: i32) -> (i32, i32) {
    %c0_i32 = arith.constant 0 : i32
    %c0_i32_0 = arith.constant 0 : i32
    return %arg0, %c0_i32 : i32, i32
  }
  func.func @transform_2(%arg0: i32) -> (i32, i32) {
    %c0_i32 = arith.constant 0 : i32
    %c0_i32_0 = arith.constant 0 : i32
    %c0_i32_1 = arith.constant 0 : i32
    return %c0_i32, %c0_i32_0 : i32, i32
  }
  func.func @transform_3(%arg0: i32) -> (i32, i32) {
    %c0_i32 = arith.constant 0 : i32
    %c0_i32_0 = arith.constant 0 : i32
    %c0_i32_1 = arith.constant 0 : i32
    return %c0_i32, %c0_i32_0 : i32, i32
  }
  func.func @transform_4(%arg0: i32) -> (i32, i32) {
    %c0_i32 = arith.constant 0 : i32
    %c0_i32_0 = arith.constant 0 : i32
    %c0_i32_1 = arith.constant 0 : i32
    return %c0_i32, %c0_i32_0 : i32, i32
  }
  func.func @transform_5(%arg0: i32) -> (i32, i32) {
    %c0_i32 = arith.constant 0 : i32
    %c0_i32_0 = arith.constant 0 : i32
    %c0_i32_1 = arith.constant 0 : i32
    return %c0_i32, %c0_i32_0 : i32, i32
  }
  func.func @transform_6(%arg0: i32) -> (i32, i32) {
    %c0_i32 = arith.constant 0 : i32
    %c0_i32_0 = arith.constant 0 : i32
    %c0_i32_1 = arith.constant 0 : i32
    return %c0_i32, %c0_i32_0 : i32, i32
  }
  func.func @transform_7(%arg0: i32) -> (i32, i32) {
    %c0_i32 = arith.constant 0 : i32
    %c0_i32_0 = arith.constant 0 : i32
    %c0_i32_1 = arith.constant 0 : i32
    return %c0_i32, %c0_i32_0 : i32, i32
  }
  func.func @transform_8(%arg0: i32) -> (i32, i32) {
    %c0_i32 = arith.constant 0 : i32
    %c0_i32_0 = arith.constant 0 : i32
    %c0_i32_1 = arith.constant 0 : i32
    return %c0_i32, %c0_i32_0 : i32, i32
  }
  func.func @transform_9(%arg0: i32) -> (i32, i32) {
    %c0_i32 = arith.constant 0 : i32
    %c0_i32_0 = arith.constant 0 : i32
    %c0_i32_1 = arith.constant 0 : i32
    return %c0_i32, %c0_i32_0 : i32, i32
  }
  func.func @transform_10(%arg0: i32) -> (i32, i32) {
    %c0_i32 = arith.constant 0 : i32
    %c0_i32_0 = arith.constant 0 : i32
    return %arg0, %c0_i32 : i32, i32
  }
}

</mosaic_0001>

<llo_original>
// kernel: cswin_block.4
$region0: #{cswin_block.4}
  #allocation0 [shape = 'u32[]', space=smem, size = 0x4, offset = 0x4, fixed_abs, tag = 'smem constant byte address 0x4 - core index']
  #allocation1 [shape = 'u32[144,128]{1,0:T(1,128)}', space=vmem, size = 0x12000, scoped, tag = 'internal scratch']
  %s0 = inlined_call_operand.vmem [shape: f32[128,32], index: 0, kind: input, shape index: {}]
  %s1 = inlined_call_operand.vmem [shape: f32[1,32], index: 1, kind: input, shape index: {}]
  %s2 = inlined_call_operand.vmem [shape: f32[1,32], index: 2, kind: input, shape index: {}]
  %s3 = inlined_call_operand.vmem [shape: bf16[32,96], index: 3, kind: input, shape index: {}]
  %s4 = inlined_call_operand.vmem [shape: f32[1,96], index: 4, kind: input, shape index: {}]
  %s5 = inlined_call_operand.vmem [shape: bf16[128,16], index: 5, kind: output, shape index: {0}]
  %s6 = inlined_call_operand.vmem [shape: bf16[128,16], index: 6, kind: output, shape index: {1}]
  %s7 = inlined_call_operand.vmem [shape: bf16[128,16], index: 7, kind: output, shape index: {2}]
  %s8 = inlined_call_operand.vmem [shape: bf16[128,16], index: 8, kind: output, shape index: {3}]
  %s9 = inlined_call_operand.vmem [shape: bf16[128,16], index: 9, kind: output, shape index: {4}]
  %s10 = inlined_call_operand.vmem [shape: bf16[128,16], index: 10, kind: output, shape index: {5}]
  %11 = xla_tuple %s5, %s6, %s7, %s8, %s9, %s10
  %s12 = sld [smem:[#allocation0]]
  $region70: #{cswin_block.4} parent=0
    _
  %s14 = ssub.s32 1, %s12
  %s15 = scalar_select 0, %s14, %s12
  // Predicated region
  $region2: #{cswin_block.4} parent=0 // pred_check
    _
  $region3: #{cswin_block.4} parent=0 // pred_check_branch
    %17 = sbr.rel (0) target = $region5
  $region4: #{cswin_block.4} parent=0 // pred_region
    _
  $region5: #{cswin_block.4} parent=0 // pred_fallthru
    _
  // Predicated region
  $region6: #{cswin_block.4} parent=0 // pred_check
    _
  $region7: #{cswin_block.4} parent=0 // pred_check_branch
    %19 = sbr.rel (0) target = $region9
  $region8: #{cswin_block.4} parent=0 // pred_region
    _
  $region9: #{cswin_block.4} parent=0 // pred_fallthru
    _
  // Predicated region
  $region10: #{cswin_block.4} parent=0 // pred_check
    _
  $region11: #{cswin_block.4} parent=0 // pred_check_branch
    %21 = sbr.rel (0) target = $region13
  $region12: #{cswin_block.4} parent=0 // pred_region
    _
  $region13: #{cswin_block.4} parent=0 // pred_fallthru
    _
  // Predicated region
  $region14: #{cswin_block.4} parent=0 // pred_check
    _
  $region15: #{cswin_block.4} parent=0 // pred_check_branch
    %23 = sbr.rel (0) target = $region17
  $region16: #{cswin_block.4} parent=0 // pred_region
    _
  $region17: #{cswin_block.4} parent=0 // pred_fallthru
    _
  // Predicated region
  $region18: #{cswin_block.4} parent=0 // pred_check
    _
  $region19: #{cswin_block.4} parent=0 // pred_check_branch
    %25 = sbr.rel (0) target = $region21
  $region20: #{cswin_block.4} parent=0 // pred_region
    _
  $region21: #{cswin_block.4} parent=0 // pred_fallthru
    _
  %v27 = vld [vmem:[%s0] sm:$0xff]
  %v28 = vld [vmem:[%s0 + $0x8] sm:$0xff]
  %v29 = vld [vmem:[%s0 + $0x10] sm:$0xff]
  %v30 = vld [vmem:[%s0 + $0x18] sm:$0xff]
  %v31 = vld [vmem:[%s0 + $0x20] sm:$0xff]
  %v32 = vld [vmem:[%s0 + $0x28] sm:$0xff]
  %v33 = vld [vmem:[%s0 + $0x30] sm:$0xff]
  %v34 = vld [vmem:[%s0 + $0x38] sm:$0xff]
  %v35 = vld [vmem:[%s0 + $0x40] sm:$0xff]
  %v36 = vld [vmem:[%s0 + $0x48] sm:$0xff]
  %v37 = vld [vmem:[%s0 + $0x50] sm:$0xff]
  %v38 = vld [vmem:[%s0 + $0x58] sm:$0xff]
  %v39 = vld [vmem:[%s0 + $0x60] sm:$0xff]
  %v40 = vld [vmem:[%s0 + $0x68] sm:$0xff]
  %v41 = vld [vmem:[%s0 + $0x70] sm:$0xff]
  %v42 = vld [vmem:[%s0 + $0x78] sm:$0xff]
  %vm43 = vcmask 261120
  %v44 = vsel %vm43, %v27, 0.0
  %45 = vadd.xlane.f32.xlu0 %v44
  %v46 = vpop.xlane.xlu0 %45
  %v47 = vsel %vm43, %v28, 0.0
  %48 = vadd.xlane.f32.xlu0 %v47
  %v49 = vpop.xlane.xlu0 %48
  %v50 = vsel %vm43, %v29, 0.0
  %51 = vadd.xlane.f32.xlu0 %v50
  %v52 = vpop.xlane.xlu0 %51
  %v53 = vsel %vm43, %v30, 0.0
  %54 = vadd.xlane.f32.xlu0 %v53
  %v55 = vpop.xlane.xlu0 %54
  %v56 = vsel %vm43, %v31, 0.0
  %57 = vadd.xlane.f32.xlu0 %v56
  %v58 = vpop.xlane.xlu0 %57
  %v59 = vsel %vm43, %v32, 0.0
  %60 = vadd.xlane.f32.xlu0 %v59
  %v61 = vpop.xlane.xlu0 %60
  %v62 = vsel %vm43, %v33, 0.0
  %63 = vadd.xlane.f32.xlu0 %v62
  %v64 = vpop.xlane.xlu0 %63
  %v65 = vsel %vm43, %v34, 0.0
  %66 = vadd.xlane.f32.xlu0 %v65
  %v67 = vpop.xlane.xlu0 %66
  %v68 = vsel %vm43, %v35, 0.0
  %69 = vadd.xlane.f32.xlu0 %v68
  %v70 = vpop.xlane.xlu0 %69
  %v71 = vsel %vm43, %v36, 0.0
  %72 = vadd.xlane.f32.xlu0 %v71
  %v73 = vpop.xlane.xlu0 %72
  %v74 = vsel %vm43, %v37, 0.0
  %75 = vadd.xlane.f32.xlu0 %v74
  %v76 = vpop.xlane.xlu0 %75
  %v77 = vsel %vm43, %v38, 0.0
  %78 = vadd.xlane.f32.xlu0 %v77
  %v79 = vpop.xlane.xlu0 %78
  %v80 = vsel %vm43, %v39, 0.0
  %81 = vadd.xlane.f32.xlu0 %v80
  %v82 = vpop.xlane.xlu0 %81
  %v83 = vsel %vm43, %v40, 0.0
  %84 = vadd.xlane.f32.xlu0 %v83
  %v85 = vpop.xlane.xlu0 %84
  %v86 = vsel %vm43, %v41, 0.0
  %87 = vadd.xlane.f32.xlu0 %v86
  %v88 = vpop.xlane.xlu0 %87
  %v89 = vsel %vm43, %v42, 0.0
  %90 = vadd.xlane.f32.xlu0 %v89
  %v91 = vpop.xlane.xlu0 %90
  %v92 = vrcp.pop 32.0
  %v93 = vmul.f32 %v46, %v92
  %v94 = vmul.f32 %v49, %v92
  %v95 = vmul.f32 %v52, %v92
  %v96 = vmul.f32 %v55, %v92
  %v97 = vmul.f32 %v58, %v92
  %v98 = vmul.f32 %v61, %v92
  %v99 = vmul.f32 %v64, %v92
  %v100 = vmul.f32 %v67, %v92
  %v101 = vmul.f32 %v70, %v92
  %v102 = vmul.f32 %v73, %v92
  %v103 = vmul.f32 %v76, %v92
  %v104 = vmul.f32 %v79, %v92
  %v105 = vmul.f32 %v82, %v92
  %v106 = vmul.f32 %v85, %v92
  %v107 = vmul.f32 %v88, %v92
  %v108 = vmul.f32 %v91, %v92
  %v109 = vsub.f32 %v27, %v93
  %v110 = vsub.f32 %v28, %v94
  %v111 = vsub.f32 %v29, %v95
  %v112 = vsub.f32 %v30, %v96
  %v113 = vsub.f32 %v31, %v97
  %v114 = vsub.f32 %v32, %v98
  %v115 = vsub.f32 %v33, %v99
  %v116 = vsub.f32 %v34, %v100
  %v117 = vsub.f32 %v35, %v101
  %v118 = vsub.f32 %v36, %v102
  %v119 = vsub.f32 %v37, %v103
  %v120 = vsub.f32 %v38, %v104
  %v121 = vsub.f32 %v39, %v105
  %v122 = vsub.f32 %v40, %v106
  %v123 = vsub.f32 %v41, %v107
  %v124 = vsub.f32 %v42, %v108
  %v125 = vmul.f32 %v109, %v109
  %v126 = vmul.f32 %v110, %v110
  %v127 = vmul.f32 %v111, %v111
  %v128 = vmul.f32 %v112, %v112
  %v129 = vmul.f32 %v113, %v113
  %v130 = vmul.f32 %v114, %v114
  %v131 = vmul.f32 %v115, %v115
  %v132 = vmul.f32 %v116, %v116
  %v133 = vmul.f32 %v117, %v117
  %v134 = vmul.f32 %v118, %v118
  %v135 = vmul.f32 %v119, %v119
  %v136 = vmul.f32 %v120, %v120
  %v137 = vmul.f32 %v121, %v121
  %v138 = vmul.f32 %v122, %v122
  %v139 = vmul.f32 %v123, %v123
  %v140 = vmul.f32 %v124, %v124
  %v141 = vsel %vm43, %v125, 0.0
  %142 = vadd.xlane.f32.xlu0 %v141
  %v143 = vpop.xlane.xlu0 %142
  %v144 = vsel %vm43, %v126, 0.0
  %145 = vadd.xlane.f32.xlu0 %v144
  %v146 = vpop.xlane.xlu0 %145
  %v147 = vsel %vm43, %v127, 0.0
  %148 = vadd.xlane.f32.xlu0 %v147
  %v149 = vpop.xlane.xlu0 %148
  %v150 = vsel %vm43, %v128, 0.0
  %151 = vadd.xlane.f32.xlu0 %v150
  %v152 = vpop.xlane.xlu0 %151
  %v153 = vsel %vm43, %v129, 0.0
  %154 = vadd.xlane.f32.xlu0 %v153
  %v155 = vpop.xlane.xlu0 %154
  %v156 = vsel %vm43, %v130, 0.0
  %157 = vadd.xlane.f32.xlu0 %v156
  %v158 = vpop.xlane.xlu0 %157
  %v159 = vsel %vm43, %v131, 0.0
  %160 = vadd.xlane.f32.xlu0 %v159
  %v161 = vpop.xlane.xlu0 %160
  %v162 = vsel %vm43, %v132, 0.0
  %163 = vadd.xlane.f32.xlu0 %v162
  %v164 = vpop.xlane.xlu0 %163
  %v165 = vsel %vm43, %v133, 0.0
  %166 = vadd.xlane.f32.xlu0 %v165
  %v167 = vpop.xlane.xlu0 %166
  %v168 = vsel %vm43, %v134, 0.0
  %169 = vadd.xlane.f32.xlu0 %v168
  %v170 = vpop.xlane.xlu0 %169
  %v171 = vsel %vm43, %v135, 0.0
  %172 = vadd.xlane.f32.xlu0 %v171
  %v173 = vpop.xlane.xlu0 %172
  %v174 = vsel %vm43, %v136, 0.0
  %175 = vadd.xlane.f32.xlu0 %v174
  %v176 = vpop.xlane.xlu0 %175
  %v177 = vsel %vm43, %v137, 0.0
  %178 = vadd.xlane.f32.xlu0 %v177
  %v179 = vpop.xlane.xlu0 %178
  %v180 = vsel %vm43, %v138, 0.0
  %181 = vadd.xlane.f32.xlu0 %v180
  %v182 = vpop.xlane.xlu0 %181
  %v183 = vsel %vm43, %v139, 0.0
  %184 = vadd.xlane.f32.xlu0 %v183
  %v185 = vpop.xlane.xlu0 %184
  %v186 = vsel %vm43, %v140, 0.0
  %187 = vadd.xlane.f32.xlu0 %v186
  %v188 = vpop.xlane.xlu0 %187
  %v189 = vmul.f32 %v143, %v92
  %v190 = vmul.f32 %v146, %v92
  %v191 = vmul.f32 %v149, %v92
  %v192 = vmul.f32 %v152, %v92
  %v193 = vmul.f32 %v155, %v92
  %v194 = vmul.f32 %v158, %v92
  %v195 = vmul.f32 %v161, %v92
  %v196 = vmul.f32 %v164, %v92
  %v197 = vmul.f32 %v167, %v92
  %v198 = vmul.f32 %v170, %v92
  %v199 = vmul.f32 %v173, %v92
  %v200 = vmul.f32 %v176, %v92
  %v201 = vmul.f32 %v179, %v92
  %v202 = vmul.f32 %v182, %v92
  %v203 = vmul.f32 %v185, %v92
  %v204 = vmul.f32 %v188, %v92
  %v205 = vadd.f32 %v189, 1e-05
  %v206 = vadd.f32 %v190, 1e-05
  %v207 = vadd.f32 %v191, 1e-05
  %v208 = vadd.f32 %v192, 1e-05
  %v209 = vadd.f32 %v193, 1e-05
  %v210 = vadd.f32 %v194, 1e-05
  %v211 = vadd.f32 %v195, 1e-05
  %v212 = vadd.f32 %v196, 1e-05
  %v213 = vadd.f32 %v197, 1e-05
  %v214 = vadd.f32 %v198, 1e-05
  %v215 = vadd.f32 %v199, 1e-05
  %v216 = vadd.f32 %v200, 1e-05
  %v217 = vadd.f32 %v201, 1e-05
  %v218 = vadd.f32 %v202, 1e-05
  %v219 = vadd.f32 %v203, 1e-05
  %v220 = vadd.f32 %v204, 1e-05
  %v221 = vrsqrt.pop %v205
  %v222 = vrsqrt.pop %v206
  %v223 = vrsqrt.pop %v207
  %v224 = vrsqrt.pop %v208
  %v225 = vrsqrt.pop %v209
  %v226 = vrsqrt.pop %v210
  %v227 = vrsqrt.pop %v211
  %v228 = vrsqrt.pop %v212
  %v229 = vrsqrt.pop %v213
  %v230 = vrsqrt.pop %v214
  %v231 = vrsqrt.pop %v215
  %v232 = vrsqrt.pop %v216
  %v233 = vrsqrt.pop %v217
  %v234 = vrsqrt.pop %v218
  %v235 = vrsqrt.pop %v219
  %v236 = vrsqrt.pop %v220
  %v237 = vmul.f32 %v109, %v221
  %v238 = vmul.f32 %v110, %v222
  %v239 = vmul.f32 %v111, %v223
  %v240 = vmul.f32 %v112, %v224
  %v241 = vmul.f32 %v113, %v225
  %v242 = vmul.f32 %v114, %v226
  %v243 = vmul.f32 %v115, %v227
  %v244 = vmul.f32 %v116, %v228
  %v245 = vmul.f32 %v117, %v229
  %v246 = vmul.f32 %v118, %v230
  %v247 = vmul.f32 %v119, %v231
  %v248 = vmul.f32 %v120, %v232
  %v249 = vmul.f32 %v121, %v233
  %v250 = vmul.f32 %v122, %v234
  %v251 = vmul.f32 %v123, %v235
  %v252 = vmul.f32 %v124, %v236
  %v253 = vld [vmem:[%s1] sm:$0x1]
  %v255 = vlaneseq
  %v256 = vshrl.u32 %v255, 7
  %v257 = vsub.s32 0, %v256
  %v258 = vrot.slane %v253, %v257
  %v260 = vmul.f32 %v237, %v258
  %v261 = vmul.f32 %v238, %v258
  %v262 = vmul.f32 %v239, %v258
  %v263 = vmul.f32 %v240, %v258
  %v264 = vmul.f32 %v241, %v258
  %v265 = vmul.f32 %v242, %v258
  %v266 = vmul.f32 %v243, %v258
  %v267 = vmul.f32 %v244, %v258
  %v268 = vmul.f32 %v245, %v258
  %v269 = vmul.f32 %v246, %v258
  %v270 = vmul.f32 %v247, %v258
  %v271 = vmul.f32 %v248, %v258
  %v272 = vmul.f32 %v249, %v258
  %v273 = vmul.f32 %v250, %v258
  %v274 = vmul.f32 %v251, %v258
  %v275 = vmul.f32 %v252, %v258
  %v276 = vld [vmem:[%s2] sm:$0x1]
  %v278 = vlaneseq
  %v279 = vshrl.u32 %v278, 7
  %v280 = vsub.s32 0, %v279
  %v281 = vrot.slane %v276, %v280
  %v283 = vadd.f32 %v260, %v281
  %v284 = vadd.f32 %v261, %v281
  %v285 = vadd.f32 %v262, %v281
  %v286 = vadd.f32 %v263, %v281
  %v287 = vadd.f32 %v264, %v281
  %v288 = vadd.f32 %v265, %v281
  %v289 = vadd.f32 %v266, %v281
  %v290 = vadd.f32 %v267, %v281
  %v291 = vadd.f32 %v268, %v281
  %v292 = vadd.f32 %v269, %v281
  %v293 = vadd.f32 %v270, %v281
  %v294 = vadd.f32 %v271, %v281
  %v295 = vadd.f32 %v272, %v281
  %v296 = vadd.f32 %v273, %v281
  %v297 = vadd.f32 %v274, %v281
  %v298 = vadd.f32 %v275, %v281
  %v299 = vpack.c.bf16 %v284, %v283
  %v300 = vpack.c.bf16 %v286, %v285
  %v301 = vpack.c.bf16 %v288, %v287
  %v302 = vpack.c.bf16 %v290, %v289
  %v303 = vpack.c.bf16 %v292, %v291
  %v304 = vpack.c.bf16 %v294, %v293
  %v305 = vpack.c.bf16 %v296, %v295
  %v306 = vpack.c.bf16 %v298, %v297
  %v307 = vld [vmem:[%s3] sm:$0xf]
  %v308 = vld [vmem:[%s3 + $0x4] sm:$0xf]
  %v309 = vld [vmem:[%s3 + $0x8] sm:$0xf]
  %v310 = vld [vmem:[%s3 + $0xc] sm:$0xf]
  %v311 = vld [vmem:[%s4] sm:$0x1]
  %v313 = vlaneseq
  %v314 = vshrl.u32 %v313, 7
  %v315 = vsub.s32 0, %v314
  %v316 = vrot.slane %v311, %v315
  %v322 = vunpack.c.l.b16 %v307
  %v323 = vunpack.c.l.b16 %v308
  %v324 = vunpack.c.l.b16 %v309
  %v325 = vunpack.c.l.b16 %v310
  %v326 = vpack.c.b16 %v323, %v322
  %v327 = vpack.c.b16 %v325, %v324
  %v331 = vsel %vm43, %v299, 0
  %v334 = vsel %vm43, %v300, 0
  %v337 = vsel %vm43, %v301, 0
  %v340 = vsel %vm43, %v302, 0
  %v343 = vsel %vm43, %v303, 0
  %v346 = vsel %vm43, %v304, 0
  %v349 = vsel %vm43, %v305, 0
  %v352 = vsel %vm43, %v306, 0
  %354 = vmatprep.subr.bf16.mxu0 0
  %355 = vmatpush1.bf16.msra.mxu0 %v326
  %356 = vmatprep.subr.bf16.mxu0 0
  %357 = vmatpush1.bf16.msra.mxu0 %v327
  %358 = vmatprep.subr.bf16.mxu0 0
  %359 = vmatpush1.bf16.msra.mxu0 0
  %360 = vmatprep.subr.bf16.mxu0 0
  %361 = vmatpush1.bf16.msra.mxu0 0
  %362 = vmatprep.subr.bf16.mxu0 0
  %363 = vmatpush1.bf16.msra.mxu0 0
  %364 = vmatprep.subr.bf16.mxu0 0
  %365 = vmatpush1.bf16.msra.mxu0 0
  %366 = vmatprep.subr.bf16.mxu0 0
  %367 = vmatpush1.bf16.msra.mxu0 0
  %368 = vmatprep.subr.bf16.mxu0 0
  %369 = vmatpush1.bf16.msra.mxu0 0
  %370 = vmatprep.subr.bf16.mxu0 0
  %371 = vmatpush1.bf16.msra.mxu0 0
  %372 = vmatprep.subr.bf16.mxu0 0
  %373 = vmatpush1.bf16.msra.mxu0 0
  %374 = vmatprep.subr.bf16.mxu0 0
  %375 = vmatpush1.bf16.msra.mxu0 0
  %376 = vmatprep.subr.bf16.mxu0 0
  %377 = vmatpush1.bf16.msra.mxu0 0
  %378 = vmatprep.subr.bf16.mxu0 0
  %379 = vmatpush1.bf16.msra.mxu0 0
  %380 = vmatprep.subr.bf16.mxu0 0
  %381 = vmatpush1.bf16.msra.mxu0 0
  %382 = vmatprep.subr.bf16.mxu0 0
  %383 = vmatpush1.bf16.msra.mxu0 0
  %384 = vmatprep.subr.bf16.mxu0 0
  %385 = vmatpush1.bf16.msra.mxu0 0
  %386 = vmatprep.mubr.bf16.mxu0 0
  %387 = vmatmul.mubr.bf16.gmra.mrb[0].mxu0 %v331
  %v388 = vpop.f32.mrb[0].mxu0
  %v389 = vadd.f32 %v316, %v388
  %v390 = vpop.f32.mrb[0].mxu0
  %v391 = vpop.f32.mrb[0].mxu0
  %v392 = vadd.f32 %v316, %v391
  %v393 = vpop.f32.mrb[0].mxu0
  %394 = vmatprep.mubr.bf16.mxu0 0
  %395 = vmatmul.mubr.bf16.gmra.mrb[0].mxu0 %v334
  %v396 = vpop.f32.mrb[0].mxu0
  %v397 = vadd.f32 %v316, %v396
  %v398 = vpop.f32.mrb[0].mxu0
  %v399 = vpop.f32.mrb[0].mxu0
  %v400 = vadd.f32 %v316, %v399
  %v401 = vpop.f32.mrb[0].mxu0
  %402 = vmatprep.mubr.bf16.mxu0 0
  %403 = vmatmul.mubr.bf16.gmra.mrb[0].mxu0 %v337
  %v404 = vpop.f32.mrb[0].mxu0
  %v405 = vadd.f32 %v316, %v404
  %v406 = vpop.f32.mrb[0].mxu0
  %v407 = vpop.f32.mrb[0].mxu0
  %v408 = vadd.f32 %v316, %v407
  %v409 = vpop.f32.mrb[0].mxu0
  %410 = vmatprep.mubr.bf16.mxu0 0
  %411 = vmatmul.mubr.bf16.gmra.mrb[0].mxu0 %v340
  %v412 = vpop.f32.mrb[0].mxu0
  %v413 = vadd.f32 %v316, %v412
  %v414 = vpop.f32.mrb[0].mxu0
  %v415 = vpop.f32.mrb[0].mxu0
  %v416 = vadd.f32 %v316, %v415
  %v417 = vpop.f32.mrb[0].mxu0
  %418 = vmatprep.mubr.bf16.mxu0 0
  %419 = vmatmul.mubr.bf16.gmra.mrb[0].mxu0 %v343
  %v420 = vpop.f32.mrb[0].mxu0
  %v421 = vadd.f32 %v316, %v420
  %v422 = vpop.f32.mrb[0].mxu0
  %v423 = vpop.f32.mrb[0].mxu0
  %v424 = vadd.f32 %v316, %v423
  %v425 = vpop.f32.mrb[0].mxu0
  %426 = vmatprep.mubr.bf16.mxu0 0
  %427 = vmatmul.mubr.bf16.gmra.mrb[0].mxu0 %v346
  %v428 = vpop.f32.mrb[0].mxu0
  %v429 = vadd.f32 %v316, %v428
  %v430 = vpop.f32.mrb[0].mxu0
  %v431 = vpop.f32.mrb[0].mxu0
  %v432 = vadd.f32 %v316, %v431
  %v433 = vpop.f32.mrb[0].mxu0
  %434 = vmatprep.mubr.bf16.mxu0 0
  %435 = vmatmul.mubr.bf16.gmra.mrb[0].mxu0 %v349
  %v436 = vpop.f32.mrb[0].mxu0
  %v437 = vadd.f32 %v316, %v436
  %v438 = vpop.f32.mrb[0].mxu0
  %v439 = vpop.f32.mrb[0].mxu0
  %v440 = vadd.f32 %v316, %v439
  %v441 = vpop.f32.mrb[0].mxu0
  %442 = vmatprep.mubr.bf16.mxu0 0
  %443 = vmatmul.mubr.bf16.gmra.mrb[0].mxu0 %v352
  %v444 = vpop.f32.mrb[0].mxu0
  %v445 = vadd.f32 %v316, %v444
  %v446 = vpop.f32.mrb[0].mxu0
  %v447 = vpop.f32.mrb[0].mxu0
  %v448 = vadd.f32 %v316, %v447
  %v449 = vpop.f32.mrb[0].mxu0
  %450 = vdwg.mxu0
  %v451 = vpack.c.bf16 %v392, %v389
  %v452 = vpack.c.bf16 %v400, %v397
  %v453 = vpack.c.bf16 %v408, %v405
  %v454 = vpack.c.bf16 %v416, %v413
  %v455 = vpack.c.bf16 %v424, %v421
  %v456 = vpack.c.bf16 %v432, %v429
  %v457 = vpack.c.bf16 %v440, %v437
  %v458 = vpack.c.bf16 %v448, %v445
  %v467 = vunpack.c.l.b16 %v451
  %v468 = vunpack.c.h.b16 %v451
  %v469 = vunpack.c.l.b16 %v452
  %v470 = vunpack.c.h.b16 %v452
  %v471 = vunpack.c.l.b16 %v453
  %v472 = vunpack.c.h.b16 %v453
  %v473 = vunpack.c.l.b16 %v454
  %v474 = vunpack.c.h.b16 %v454
  %v475 = vunpack.c.l.b16 %v455
  %v476 = vunpack.c.h.b16 %v455
  %v477 = vunpack.c.l.b16 %v456
  %v478 = vunpack.c.h.b16 %v456
  %v479 = vunpack.c.l.b16 %v457
  %v480 = vunpack.c.h.b16 %v457
  %v481 = vunpack.c.l.b16 %v458
  %v482 = vunpack.c.h.b16 %v458
  %v483 = vpack.c.b16 %v467, %v467
  %v484 = vpack.c.b16 %v468, %v468
  %v485 = vpack.c.b16 %v469, %v469
  %v486 = vpack.c.b16 %v470, %v470
  %v487 = vpack.c.b16 %v471, %v471
  %v488 = vpack.c.b16 %v472, %v472
  %v489 = vpack.c.b16 %v473, %v473
  %v490 = vpack.c.b16 %v474, %v474
  %v491 = vpack.c.b16 %v475, %v475
  %v492 = vpack.c.b16 %v476, %v476
  %v493 = vpack.c.b16 %v477, %v477
  %v494 = vpack.c.b16 %v478, %v478
  %v495 = vpack.c.b16 %v479, %v479
  %v496 = vpack.c.b16 %v480, %v480
  %v497 = vpack.c.b16 %v481, %v481
  %v498 = vpack.c.b16 %v482, %v482
  %vm515 = vcmask 125952
  %516 = vst.msk [vmem:[%s5] sm:$0xf] %vm515, %v483
  %517 = vst.msk [vmem:[%s5 + $0x4] sm:$0xf] %vm515, %v484
  %518 = vst.msk [vmem:[%s5 + $0x8] sm:$0xf] %vm515, %v485
  %519 = vst.msk [vmem:[%s5 + $0xc] sm:$0xf] %vm515, %v486
  %520 = vst.msk [vmem:[%s5 + $0x10] sm:$0xf] %vm515, %v487
  %521 = vst.msk [vmem:[%s5 + $0x14] sm:$0xf] %vm515, %v488
  %522 = vst.msk [vmem:[%s5 + $0x18] sm:$0xf] %vm515, %v489
  %523 = vst.msk [vmem:[%s5 + $0x1c] sm:$0xf] %vm515, %v490
  %524 = vst.msk [vmem:[%s5 + $0x20] sm:$0xf] %vm515, %v491
  %525 = vst.msk [vmem:[%s5 + $0x24] sm:$0xf] %vm515, %v492
  %526 = vst.msk [vmem:[%s5 + $0x28] sm:$0xf] %vm515, %v493
  %527 = vst.msk [vmem:[%s5 + $0x2c] sm:$0xf] %vm515, %v494
  %528 = vst.msk [vmem:[%s5 + $0x30] sm:$0xf] %vm515, %v495
  %529 = vst.msk [vmem:[%s5 + $0x34] sm:$0xf] %vm515, %v496
  %530 = vst.msk [vmem:[%s5 + $0x38] sm:$0xf] %vm515, %v497
  %531 = vst.msk [vmem:[%s5 + $0x3c] sm:$0xf] %vm515, %v498
  %532 = vrot.lane.b32.xlu0 %v483, 112
  %v533 = vpop.permute.xlu0 %532
  %534 = vrot.lane.b32.xlu0 %v484, 112
  %v535 = vpop.permute.xlu0 %534
  %536 = vrot.lane.b32.xlu0 %v485, 112
  %v537 = vpop.permute.xlu0 %536
  %538 = vrot.lane.b32.xlu0 %v486, 112
  %v539 = vpop.permute.xlu0 %538
  %540 = vrot.lane.b32.xlu0 %v487, 112
  %v541 = vpop.permute.xlu0 %540
  %542 = vrot.lane.b32.xlu0 %v488, 112
  %v543 = vpop.permute.xlu0 %542
  %544 = vrot.lane.b32.xlu0 %v489, 112
  %v545 = vpop.permute.xlu0 %544
  %546 = vrot.lane.b32.xlu0 %v490, 112
  %v547 = vpop.permute.xlu0 %546
  %548 = vrot.lane.b32.xlu0 %v491, 112
  %v549 = vpop.permute.xlu0 %548
  %550 = vrot.lane.b32.xlu0 %v492, 112
  %v551 = vpop.permute.xlu0 %550
  %552 = vrot.lane.b32.xlu0 %v493, 112
  %v553 = vpop.permute.xlu0 %552
  %554 = vrot.lane.b32.xlu0 %v494, 112
  %v555 = vpop.permute.xlu0 %554
  %556 = vrot.lane.b32.xlu0 %v495, 112
  %v557 = vpop.permute.xlu0 %556
  %558 = vrot.lane.b32.xlu0 %v496, 112
  %v559 = vpop.permute.xlu0 %558
  %560 = vrot.lane.b32.xlu0 %v497, 112
  %v561 = vpop.permute.xlu0 %560
  %562 = vrot.lane.b32.xlu0 %v498, 112
  %v563 = vpop.permute.xlu0 %562
  %580 = vst.msk [vmem:[%s6] sm:$0xf] %vm515, %v533
  %581 = vst.msk [vmem:[%s6 + $0x4] sm:$0xf] %vm515, %v535
  %582 = vst.msk [vmem:[%s6 + $0x8] sm:$0xf] %vm515, %v537
  %583 = vst.msk [vmem:[%s6 + $0xc] sm:$0xf] %vm515, %v539
  %584 = vst.msk [vmem:[%s6 + $0x10] sm:$0xf] %vm515, %v541
  %585 = vst.msk [vmem:[%s6 + $0x14] sm:$0xf] %vm515, %v543
  %586 = vst.msk [vmem:[%s6 + $0x18] sm:$0xf] %vm515, %v545
  %587 = vst.msk [vmem:[%s6 + $0x1c] sm:$0xf] %vm515, %v547
  %588 = vst.msk [vmem:[%s6 + $0x20] sm:$0xf] %vm515, %v549
  %589 = vst.msk [vmem:[%s6 + $0x24] sm:$0xf] %vm515, %v551
  %590 = vst.msk [vmem:[%s6 + $0x28] sm:$0xf] %vm515, %v553
  %591 = vst.msk [vmem:[%s6 + $0x2c] sm:$0xf] %vm515, %v555
  %592 = vst.msk [vmem:[%s6 + $0x30] sm:$0xf] %vm515, %v557
  %593 = vst.msk [vmem:[%s6 + $0x34] sm:$0xf] %vm515, %v559
  %594 = vst.msk [vmem:[%s6 + $0x38] sm:$0xf] %vm515, %v561
  %595 = vst.msk [vmem:[%s6 + $0x3c] sm:$0xf] %vm515, %v563
  %596 = vrot.lane.b32.xlu0 %v483, 96
  %v597 = vpop.permute.xlu0 %596
  %598 = vrot.lane.b32.xlu0 %v484, 96
  %v599 = vpop.permute.xlu0 %598
  %600 = vrot.lane.b32.xlu0 %v485, 96
  %v601 = vpop.permute.xlu0 %600
  %602 = vrot.lane.b32.xlu0 %v486, 96
  %v603 = vpop.permute.xlu0 %602
  %604 = vrot.lane.b32.xlu0 %v487, 96
  %v605 = vpop.permute.xlu0 %604
  %606 = vrot.lane.b32.xlu0 %v488, 96
  %v607 = vpop.permute.xlu0 %606
  %608 = vrot.lane.b32.xlu0 %v489, 96
  %v609 = vpop.permute.xlu0 %608
  %610 = vrot.lane.b32.xlu0 %v490, 96
  %v611 = vpop.permute.xlu0 %610
  %612 = vrot.lane.b32.xlu0 %v491, 96
  %v613 = vpop.permute.xlu0 %612
  %614 = vrot.lane.b32.xlu0 %v492, 96
  %v615 = vpop.permute.xlu0 %614
  %616 = vrot.lane.b32.xlu0 %v493, 96
  %v617 = vpop.permute.xlu0 %616
  %618 = vrot.lane.b32.xlu0 %v494, 96
  %v619 = vpop.permute.xlu0 %618
  %620 = vrot.lane.b32.xlu0 %v495, 96
  %v621 = vpop.permute.xlu0 %620
  %622 = vrot.lane.b32.xlu0 %v496, 96
  %v623 = vpop.permute.xlu0 %622
  %624 = vrot.lane.b32.xlu0 %v497, 96
  %v625 = vpop.permute.xlu0 %624
  %626 = vrot.lane.b32.xlu0 %v498, 96
  %v627 = vpop.permute.xlu0 %626
  %644 = vst.msk [vmem:[%s7] sm:$0xf] %vm515, %v597
  %645 = vst.msk [vmem:[%s7 + $0x4] sm:$0xf] %vm515, %v599
  %646 = vst.msk [vmem:[%s7 + $0x8] sm:$0xf] %vm515, %v601
  %647 = vst.msk [vmem:[%s7 + $0xc] sm:$0xf] %vm515, %v603
  %648 = vst.msk [vmem:[%s7 + $0x10] sm:$0xf] %vm515, %v605
  %649 = vst.msk [vmem:[%s7 + $0x14] sm:$0xf] %vm515, %v607
  %650 = vst.msk [vmem:[%s7 + $0x18] sm:$0xf] %vm515, %v609
  %651 = vst.msk [vmem:[%s7 + $0x1c] sm:$0xf] %vm515, %v611
  %652 = vst.msk [vmem:[%s7 + $0x20] sm:$0xf] %vm515, %v613
  %653 = vst.msk [vmem:[%s7 + $0x24] sm:$0xf] %vm515, %v615
  %654 = vst.msk [vmem:[%s7 + $0x28] sm:$0xf] %vm515, %v617
  %655 = vst.msk [vmem:[%s7 + $0x2c] sm:$0xf] %vm515, %v619
  %656 = vst.msk [vmem:[%s7 + $0x30] sm:$0xf] %vm515, %v621
  %657 = vst.msk [vmem:[%s7 + $0x34] sm:$0xf] %vm515, %v623
  %658 = vst.msk [vmem:[%s7 + $0x38] sm:$0xf] %vm515, %v625
  %659 = vst.msk [vmem:[%s7 + $0x3c] sm:$0xf] %vm515, %v627
  %660 = vrot.lane.b32.xlu0 %v483, 80
  %v661 = vpop.permute.xlu0 %660
  %662 = vrot.lane.b32.xlu0 %v484, 80
  %v663 = vpop.permute.xlu0 %662
  %664 = vrot.lane.b32.xlu0 %v485, 80
  %v665 = vpop.permute.xlu0 %664
  %666 = vrot.lane.b32.xlu0 %v486, 80
  %v667 = vpop.permute.xlu0 %666
  %668 = vrot.lane.b32.xlu0 %v487, 80
  %v669 = vpop.permute.xlu0 %668
  %670 = vrot.lane.b32.xlu0 %v488, 80
  %v671 = vpop.permute.xlu0 %670
  %672 = vrot.lane.b32.xlu0 %v489, 80
  %v673 = vpop.permute.xlu0 %672
  %674 = vrot.lane.b32.xlu0 %v490, 80
  %v675 = vpop.permute.xlu0 %674
  %676 = vrot.lane.b32.xlu0 %v491, 80
  %v677 = vpop.permute.xlu0 %676
  %678 = vrot.lane.b32.xlu0 %v492, 80
  %v679 = vpop.permute.xlu0 %678
  %680 = vrot.lane.b32.xlu0 %v493, 80
  %v681 = vpop.permute.xlu0 %680
  %682 = vrot.lane.b32.xlu0 %v494, 80
  %v683 = vpop.permute.xlu0 %682
  %684 = vrot.lane.b32.xlu0 %v495, 80
  %v685 = vpop.permute.xlu0 %684
  %686 = vrot.lane.b32.xlu0 %v496, 80
  %v687 = vpop.permute.xlu0 %686
  %688 = vrot.lane.b32.xlu0 %v497, 80
  %v689 = vpop.permute.xlu0 %688
  %690 = vrot.lane.b32.xlu0 %v498, 80
  %v691 = vpop.permute.xlu0 %690
  %708 = vst.msk [vmem:[%s8] sm:$0xf] %vm515, %v661
  %709 = vst.msk [vmem:[%s8 + $0x4] sm:$0xf] %vm515, %v663
  %710 = vst.msk [vmem:[%s8 + $0x8] sm:$0xf] %vm515, %v665
  %711 = vst.msk [vmem:[%s8 + $0xc] sm:$0xf] %vm515, %v667
  %712 = vst.msk [vmem:[%s8 + $0x10] sm:$0xf] %vm515, %v669
  %713 = vst.msk [vmem:[%s8 + $0x14] sm:$0xf] %vm515, %v671
  %714 = vst.msk [vmem:[%s8 + $0x18] sm:$0xf] %vm515, %v673
  %715 = vst.msk [vmem:[%s8 + $0x1c] sm:$0xf] %vm515, %v675
  %716 = vst.msk [vmem:[%s8 + $0x20] sm:$0xf] %vm515, %v677
  %717 = vst.msk [vmem:[%s8 + $0x24] sm:$0xf] %vm515, %v679
  %718 = vst.msk [vmem:[%s8 + $0x28] sm:$0xf] %vm515, %v681
  %719 = vst.msk [vmem:[%s8 + $0x2c] sm:$0xf] %vm515, %v683
  %720 = vst.msk [vmem:[%s8 + $0x30] sm:$0xf] %vm515, %v685
  %721 = vst.msk [vmem:[%s8 + $0x34] sm:$0xf] %vm515, %v687
  %722 = vst.msk [vmem:[%s8 + $0x38] sm:$0xf] %vm515, %v689
  %723 = vst.msk [vmem:[%s8 + $0x3c] sm:$0xf] %vm515, %v691
  %724 = vrot.lane.b32.xlu0 %v483, 64
  %v725 = vpop.permute.xlu0 %724
  %726 = vrot.lane.b32.xlu0 %v484, 64
  %v727 = vpop.permute.xlu0 %726
  %728 = vrot.lane.b32.xlu0 %v485, 64
  %v729 = vpop.permute.xlu0 %728
  %730 = vrot.lane.b32.xlu0 %v486, 64
  %v731 = vpop.permute.xlu0 %730
  %732 = vrot.lane.b32.xlu0 %v487, 64
  %v733 = vpop.permute.xlu0 %732
  %734 = vrot.lane.b32.xlu0 %v488, 64
  %v735 = vpop.permute.xlu0 %734
  %736 = vrot.lane.b32.xlu0 %v489, 64
  %v737 = vpop.permute.xlu0 %736
  %738 = vrot.lane.b32.xlu0 %v490, 64
  %v739 = vpop.permute.xlu0 %738
  %740 = vrot.lane.b32.xlu0 %v491, 64
  %v741 = vpop.permute.xlu0 %740
  %742 = vrot.lane.b32.xlu0 %v492, 64
  %v743 = vpop.permute.xlu0 %742
  %744 = vrot.lane.b32.xlu0 %v493, 64
  %v745 = vpop.permute.xlu0 %744
  %746 = vrot.lane.b32.xlu0 %v494, 64
  %v747 = vpop.permute.xlu0 %746
  %748 = vrot.lane.b32.xlu0 %v495, 64
  %v749 = vpop.permute.xlu0 %748
  %750 = vrot.lane.b32.xlu0 %v496, 64
  %v751 = vpop.permute.xlu0 %750
  %752 = vrot.lane.b32.xlu0 %v497, 64
  %v753 = vpop.permute.xlu0 %752
  %754 = vrot.lane.b32.xlu0 %v498, 64
  %v755 = vpop.permute.xlu0 %754
  %772 = vst.msk [vmem:[%s9] sm:$0xf] %vm515, %v725
  %773 = vst.msk [vmem:[%s9 + $0x4] sm:$0xf] %vm515, %v727
  %774 = vst.msk [vmem:[%s9 + $0x8] sm:$0xf] %vm515, %v729
  %775 = vst.msk [vmem:[%s9 + $0xc] sm:$0xf] %vm515, %v731
  %776 = vst.msk [vmem:[%s9 + $0x10] sm:$0xf] %vm515, %v733
  %777 = vst.msk [vmem:[%s9 + $0x14] sm:$0xf] %vm515, %v735
  %778 = vst.msk [vmem:[%s9 + $0x18] sm:$0xf] %vm515, %v737
  %779 = vst.msk [vmem:[%s9 + $0x1c] sm:$0xf] %vm515, %v739
  %780 = vst.msk [vmem:[%s9 + $0x20] sm:$0xf] %vm515, %v741
  %781 = vst.msk [vmem:[%s9 + $0x24] sm:$0xf] %vm515, %v743
  %782 = vst.msk [vmem:[%s9 + $0x28] sm:$0xf] %vm515, %v745
  %783 = vst.msk [vmem:[%s9 + $0x2c] sm:$0xf] %vm515, %v747
  %784 = vst.msk [vmem:[%s9 + $0x30] sm:$0xf] %vm515, %v749
  %785 = vst.msk [vmem:[%s9 + $0x34] sm:$0xf] %vm515, %v751
  %786 = vst.msk [vmem:[%s9 + $0x38] sm:$0xf] %vm515, %v753
  %787 = vst.msk [vmem:[%s9 + $0x3c] sm:$0xf] %vm515, %v755
  %788 = vrot.lane.b32.xlu0 %v483, 48
  %v789 = vpop.permute.xlu0 %788
  %790 = vrot.lane.b32.xlu0 %v484, 48
  %v791 = vpop.permute.xlu0 %790
  %792 = vrot.lane.b32.xlu0 %v485, 48
  %v793 = vpop.permute.xlu0 %792
  %794 = vrot.lane.b32.xlu0 %v486, 48
  %v795 = vpop.permute.xlu0 %794
  %796 = vrot.lane.b32.xlu0 %v487, 48
  %v797 = vpop.permute.xlu0 %796
  %798 = vrot.lane.b32.xlu0 %v488, 48
  %v799 = vpop.permute.xlu0 %798
  %800 = vrot.lane.b32.xlu0 %v489, 48
  %v801 = vpop.permute.xlu0 %800
  %802 = vrot.lane.b32.xlu0 %v490, 48
  %v803 = vpop.permute.xlu0 %802
  %804 = vrot.lane.b32.xlu0 %v491, 48
  %v805 = vpop.permute.xlu0 %804
  %806 = vrot.lane.b32.xlu0 %v492, 48
  %v807 = vpop.permute.xlu0 %806
  %808 = vrot.lane.b32.xlu0 %v493, 48
  %v809 = vpop.permute.xlu0 %808
  %810 = vrot.lane.b32.xlu0 %v494, 48
  %v811 = vpop.permute.xlu0 %810
  %812 = vrot.lane.b32.xlu0 %v495, 48
  %v813 = vpop.permute.xlu0 %812
  %814 = vrot.lane.b32.xlu0 %v496, 48
  %v815 = vpop.permute.xlu0 %814
  %816 = vrot.lane.b32.xlu0 %v497, 48
  %v817 = vpop.permute.xlu0 %816
  %818 = vrot.lane.b32.xlu0 %v498, 48
  %v819 = vpop.permute.xlu0 %818
  %836 = vst.msk [vmem:[%s10] sm:$0xf] %vm515, %v789
  %837 = vst.msk [vmem:[%s10 + $0x4] sm:$0xf] %vm515, %v791
  %838 = vst.msk [vmem:[%s10 + $0x8] sm:$0xf] %vm515, %v793
  %839 = vst.msk [vmem:[%s10 + $0xc] sm:$0xf] %vm515, %v795
  %840 = vst.msk [vmem:[%s10 + $0x10] sm:$0xf] %vm515, %v797
  %841 = vst.msk [vmem:[%s10 + $0x14] sm:$0xf] %vm515, %v799
  %842 = vst.msk [vmem:[%s10 + $0x18] sm:$0xf] %vm515, %v801
  %843 = vst.msk [vmem:[%s10 + $0x1c] sm:$0xf] %vm515, %v803
  %844 = vst.msk [vmem:[%s10 + $0x20] sm:$0xf] %vm515, %v805
  %845 = vst.msk [vmem:[%s10 + $0x24] sm:$0xf] %vm515, %v807
  %846 = vst.msk [vmem:[%s10 + $0x28] sm:$0xf] %vm515, %v809
  %847 = vst.msk [vmem:[%s10 + $0x2c] sm:$0xf] %vm515, %v811
  %848 = vst.msk [vmem:[%s10 + $0x30] sm:$0xf] %vm515, %v813
  %849 = vst.msk [vmem:[%s10 + $0x34] sm:$0xf] %vm515, %v815
  %850 = vst.msk [vmem:[%s10 + $0x38] sm:$0xf] %vm515, %v817
  %851 = vst.msk [vmem:[%s10 + $0x3c] sm:$0xf] %vm515, %v819
  // Predicated region
  $region22: #{cswin_block.4} parent=0 // pred_check
    _
  $region23: #{cswin_block.4} parent=0 // pred_check_branch
    %853 = sbr.rel (0) target = $region25
  $region24: #{cswin_block.4} parent=0 // pred_region
    _
  $region25: #{cswin_block.4} parent=0 // pred_fallthru
    _
  // Predicated region
  $region26: #{cswin_block.4} parent=0 // pred_check
    _
  $region27: #{cswin_block.4} parent=0 // pred_check_branch
    %855 = sbr.rel (0) target = $region29
  $region28: #{cswin_block.4} parent=0 // pred_region
    _
  $region29: #{cswin_block.4} parent=0 // pred_fallthru
    _
  // Predicated region
  $region30: #{cswin_block.4} parent=0 // pred_check
    _
  $region31: #{cswin_block.4} parent=0 // pred_check_branch
    %857 = sbr.rel (0) target = $region33
  $region32: #{cswin_block.4} parent=0 // pred_region
    _
  $region33: #{cswin_block.4} parent=0 // pred_fallthru
    _
  // Predicated region
  $region34: #{cswin_block.4} parent=0 // pred_check
    _
  $region35: #{cswin_block.4} parent=0 // pred_check_branch
    %859 = sbr.rel (0) target = $region37
  $region36: #{cswin_block.4} parent=0 // pred_region
    _
  $region37: #{cswin_block.4} parent=0 // pred_fallthru
    _
  // Predicated region
  $region38: #{cswin_block.4} parent=0 // pred_check
    _
  $region39: #{cswin_block.4} parent=0 // pred_check_branch
    %861 = sbr.rel (0) target = $region41
  $region40: #{cswin_block.4} parent=0 // pred_region
    _
  $region41: #{cswin_block.4} parent=0 // pred_fallthru
    _
  // Predicated region
  $region42: #{cswin_block.4} parent=0 // pred_check
    _
  $region43: #{cswin_block.4} parent=0 // pred_check_branch
    %863 = sbr.rel (0) target = $region45
  $region44: #{cswin_block.4} parent=0 // pred_region
    _
  $region45: #{cswin_block.4} parent=0 // pred_fallthru
    _
  // Predicated region
  $region46: #{cswin_block.4} parent=0 // pred_check
    _
  $region47: #{cswin_block.4} parent=0 // pred_check_branch
    %865 = sbr.rel (0) target = $region49
  $region48: #{cswin_block.4} parent=0 // pred_region
    _
  $region49: #{cswin_block.4} parent=0 // pred_fallthru
    _
  // Predicated region
  $region50: #{cswin_block.4} parent=0 // pred_check
    _
  $region51: #{cswin_block.4} parent=0 // pred_check_branch
    %867 = sbr.rel (0) target = $region53
  $region52: #{cswin_block.4} parent=0 // pred_region
    _
  $region53: #{cswin_block.4} parent=0 // pred_fallthru
    _
  // Predicated region
  $region54: #{cswin_block.4} parent=0 // pred_check
    _
  $region55: #{cswin_block.4} parent=0 // pred_check_branch
    %869 = sbr.rel (0) target = $region57
  $region56: #{cswin_block.4} parent=0 // pred_region
    _
  $region57: #{cswin_block.4} parent=0 // pred_fallthru
    _
  // Predicated region
  $region58: #{cswin_block.4} parent=0 // pred_check
    _
  $region59: #{cswin_block.4} parent=0 // pred_check_branch
    %871 = sbr.rel (0) target = $region61
  $region60: #{cswin_block.4} parent=0 // pred_region
    _
  $region61: #{cswin_block.4} parent=0 // pred_fallthru
    _
  // Predicated region
  $region62: #{cswin_block.4} parent=0 // pred_check
    _
  $region63: #{cswin_block.4} parent=0 // pred_check_branch
    %873 = sbr.rel (0) target = $region65
  $region64: #{cswin_block.4} parent=0 // pred_region
    _
  $region65: #{cswin_block.4} parent=0 // pred_fallthru
    _
  // Predicated region
  $region66: #{cswin_block.4} parent=0 // pred_check
    _
  $region67: #{cswin_block.4} parent=0 // pred_check_branch
    %875 = sbr.rel (0) target = $region69
  $region68: #{cswin_block.4} parent=0 // pred_region
    _
  $region69: #{cswin_block.4} parent=0 // pred_fallthru
    _

// kernel: cswin_block.6
$region0: #{cswin_block.6}
  #allocation0 [shape = 'u32[]', space=smem, size = 0x4, offset = 0x4, fixed_abs, tag = 'smem constant byte address 0x4 - core index']
  #allocation1 [shape = 'u32[144,128]{1,0:T(1,128)}', space=vmem, size = 0x12000, scoped, tag = 'internal scratch']
  %s0 = inlined_call_operand.vmem [shape: bf16[4,32,16], index: 0, kind: input, shape index: {}]
  %s1 = inlined_call_operand.vmem [shape: bf16[4,32,16], index: 1, kind: input, shape index: {}]
  %s2 = inlined_call_operand.vmem [shape: bf16[4,32,16], index: 2, kind: input, shape index: {}]
  %s3 = inlined_call_operand.vmem [shape: f32[9,32,16], index: 3, kind: input, shape index: {}]
  %s4 = inlined_call_operand.vmem [shape: f32[1,16], index: 4, kind: input, shape index: {}]
  %s5 = inlined_call_operand.vmem [shape: bf16[4,32,16], index: 5, kind: output, shape index: {}]
  %s6 = sld [smem:[#allocation0]]
  $region53: #{cswin_block.6} parent=0
    _
  %s8 = ssub.s32 1, %s6
  %s9 = scalar_select 0, %s8, %s6
  loop: start=0, step=1, limit=4
  $region2: #{cswin_block.6} parent=0 // loop_pre_header
    _
  $region3: #{cswin_block.6} parent=0 // loop_header
    %s11 = sphi 0, %s15
    %p12 = scmp.ge.s32.totalorder %s11, 4
    %s21 = sphi 0, %s23
    %s24 = sphi 0, %s21
    %s25 = sphi 0, %s24
    %s41 = sphi 0, %s25
    %s47 = sphi 0, %s49
    %s50 = sphi 0, %s47
    %s51 = sphi 0, %s50
    %s67 = sphi 0, %s51
    %s73 = sphi 0, %s75
    %s76 = sphi 0, %s73
    %s77 = sphi 0, %s76
    %s93 = sphi 0, %s77
    %s97 = sphi 0, %s97
    %s99 = sphi 0, %s97
    %s100 = sphi 0, %s99
    %s114 = sphi 0, %s100
    %s118 = sphi 0, %s118
    %s120 = sphi 0, %s118
    %s121 = sphi 0, %s120
    %s135 = sphi 0, %s121
    %s141 = sphi 0, %s143
    %s144 = sphi 0, %s141
    %s145 = sphi 0, %s144
    %s161 = sphi 0, %s145
  $region4: #{cswin_block.6} parent=0 // loop_header_branch
    %14 = sbr.rel (%p12) target = $region8
  $region5: #{cswin_block.6} parent=0 // loop_body
    %s16 = ssub.s32 %s11, 1
    %s17 = ssub.s32 %s11, 2
    %s18 = sadd.s32 %s11, 1
    %s19 = ssub.s32 %s11, %s18
    %p20 = scmp.eq.s32.totalorder %s19, 0
    %s22 = sadd.s32 %s21, 1
    %s23 = scalar_select %p20, %s21, %s22
    %p26 = pneg %p20
    %p27 = scmp.eq.s32.totalorder %s11, 1
    %p28 = por %p26, %p27
    %p29 = scmp.ne.s32.totalorder %s21, %s24
    %p30 = scmp.eq.s32.totalorder %s11, 0
    %p31 = por %p29, %p30
    %p32 = scmp.ne.s32.totalorder %s21, %s24
    %p33 = scmp.eq.s32.totalorder %s16, 1
    %p34 = por %p32, %p33
    %p35 = scmp.ne.s32.totalorder %s24, %s25
    %p36 = scmp.eq.s32.totalorder %s16, 0
    %p37 = por %p35, %p36
    %p38 = scmp.ne.s32.totalorder %s24, %s25
    %p39 = scmp.eq.s32.totalorder %s17, 1
    %p40 = por %p38, %p39
    %p42 = scmp.ne.s32.totalorder %s25, %s41
    %p43 = scmp.eq.s32.totalorder %s17, 0
    %p44 = por %p42, %p43
    %s45 = ssub.s32 %s11, %s18
    %p46 = scmp.eq.s32.totalorder %s45, 0
    %s48 = sadd.s32 %s47, 1
    %s49 = scalar_select %p46, %s47, %s48
    %p52 = pneg %p46
    %p53 = scmp.eq.s32.totalorder %s11, 1
    %p54 = por %p52, %p53
    %p55 = scmp.ne.s32.totalorder %s47, %s50
    %p56 = scmp.eq.s32.totalorder %s11, 0
    %p57 = por %p55, %p56
    %p58 = scmp.ne.s32.totalorder %s47, %s50
    %p59 = scmp.eq.s32.totalorder %s16, 1
    %p60 = por %p58, %p59
    %p61 = scmp.ne.s32.totalorder %s50, %s51
    %p62 = scmp.eq.s32.totalorder %s16, 0
    %p63 = por %p61, %p62
    %p64 = scmp.ne.s32.totalorder %s50, %s51
    %p65 = scmp.eq.s32.totalorder %s17, 1
    %p66 = por %p64, %p65
    %p68 = scmp.ne.s32.totalorder %s51, %s67
    %p69 = scmp.eq.s32.totalorder %s17, 0
    %p70 = por %p68, %p69
    %s71 = ssub.s32 %s11, %s18
    %p72 = scmp.eq.s32.totalorder %s71, 0
    %s74 = sadd.s32 %s73, 1
    %s75 = scalar_select %p72, %s73, %s74
    %p78 = pneg %p72
    %p79 = scmp.eq.s32.totalorder %s11, 1
    %p80 = por %p78, %p79
    %p81 = scmp.ne.s32.totalorder %s73, %s76
    %p82 = scmp.eq.s32.totalorder %s11, 0
    %p83 = por %p81, %p82
    %p84 = scmp.ne.s32.totalorder %s73, %s76
    %p85 = scmp.eq.s32.totalorder %s16, 1
    %p86 = por %p84, %p85
    %p87 = scmp.ne.s32.totalorder %s76, %s77
    %p88 = scmp.eq.s32.totalorder %s16, 0
    %p89 = por %p87, %p88
    %p90 = scmp.ne.s32.totalorder %s76, %s77
    %p91 = scmp.eq.s32.totalorder %s17, 1
    %p92 = por %p90, %p91
    %p94 = scmp.ne.s32.totalorder %s77, %s93
    %p95 = scmp.eq.s32.totalorder %s17, 0
    %p96 = por %p94, %p95
    %s98 = sadd.s32 %s97, 1
    %p101 = scmp.eq.s32.totalorder %s11, 1
    %p102 = scmp.ne.s32.totalorder %s97, %s99
    %p103 = scmp.eq.s32.totalorder %s11, 0
    %p104 = por %p102, %p103
    %p105 = scmp.ne.s32.totalorder %s97, %s99
    %p106 = scmp.eq.s32.totalorder %s16, 1
    %p107 = por %p105, %p106
    %p108 = scmp.ne.s32.totalorder %s99, %s100
    %p109 = scmp.eq.s32.totalorder %s16, 0
    %p110 = por %p108, %p109
    %p111 = scmp.ne.s32.totalorder %s99, %s100
    %p112 = scmp.eq.s32.totalorder %s17, 1
    %p113 = por %p111, %p112
    %p115 = scmp.ne.s32.totalorder %s100, %s114
    %p116 = scmp.eq.s32.totalorder %s17, 0
    %p117 = por %p115, %p116
    %s119 = sadd.s32 %s118, 1
    %p122 = scmp.eq.s32.totalorder %s11, 1
    %p123 = scmp.ne.s32.totalorder %s118, %s120
    %p124 = scmp.eq.s32.totalorder %s11, 0
    %p125 = por %p123, %p124
    %p126 = scmp.ne.s32.totalorder %s118, %s120
    %p127 = scmp.eq.s32.totalorder %s16, 1
    %p128 = por %p126, %p127
    %p129 = scmp.ne.s32.totalorder %s120, %s121
    %p130 = scmp.eq.s32.totalorder %s16, 0
    %p131 = por %p129, %p130
    %p132 = scmp.ne.s32.totalorder %s120, %s121
    %p133 = scmp.eq.s32.totalorder %s17, 1
    %p134 = por %p132, %p133
    %p136 = scmp.ne.s32.totalorder %s121, %s135
    %p137 = scmp.eq.s32.totalorder %s17, 0
    %p138 = por %p136, %p137
    %s139 = ssub.s32 %s11, %s18
    %p140 = scmp.eq.s32.totalorder %s139, 0
    %s142 = sadd.s32 %s141, 1
    %s143 = scalar_select %p140, %s141, %s142
    %p146 = pneg %p140
    %p147 = scmp.eq.s32.totalorder %s11, 1
    %p148 = por %p146, %p147
    %p149 = scmp.ne.s32.totalorder %s141, %s144
    %p150 = scmp.eq.s32.totalorder %s11, 0
    %p151 = por %p149, %p150
    %p152 = scmp.ne.s32.totalorder %s141, %s144
    %p153 = scmp.eq.s32.totalorder %s16, 1
    %p154 = por %p152, %p153
    %p155 = scmp.ne.s32.totalorder %s144, %s145
    %p156 = scmp.eq.s32.totalorder %s16, 0
    %p157 = por %p155, %p156
    %p158 = scmp.ne.s32.totalorder %s144, %s145
    %p159 = scmp.eq.s32.totalorder %s17, 1
    %p160 = por %p158, %p159
    %p162 = scmp.ne.s32.totalorder %s145, %s161
    %p163 = scmp.eq.s32.totalorder %s17, 0
    %p164 = por %p162, %p163
    %p165 = scmp.le.s32.totalorder 1, %s11
    %p166 = scmp.lt.s32.totalorder %s11, 3
    %p167 = pnand %p165, %p166
    %p168 = pneg %p167
    // Predicated region
    $region9: #{cswin_block.6} parent=5 // pred_check
      _
    $region10: #{cswin_block.6} parent=5 // pred_check_branch
      %170 = sbr.rel (%p167) target = $region12
    $region11: #{cswin_block.6} parent=5 // pred_region
      %s171 = ssub.s32 %s11, 1
      // Predicated region
      $region13: #{cswin_block.6} parent=11 // pred_check
        %p172 = pneg %p110
      $region14: #{cswin_block.6} parent=11 // pred_check_branch
        %174 = sbr.rel (%p172) target = $region16
      $region15: #{cswin_block.6} parent=11 // pred_region
        _
      $region16: #{cswin_block.6} parent=11 // pred_fallthru
        _
      // Predicated region
      $region17: #{cswin_block.6} parent=11 // pred_check
        %p175 = pneg %p131
      $region18: #{cswin_block.6} parent=11 // pred_check_branch
        %177 = sbr.rel (%p175) target = $region20
      $region19: #{cswin_block.6} parent=11 // pred_region
        _
      $region20: #{cswin_block.6} parent=11 // pred_fallthru
        _
    $region12: #{cswin_block.6} parent=5 // pred_fallthru
      _
    %p178 = scmp.lt.s32.totalorder %s11, 2
    // Predicated region
    $region21: #{cswin_block.6} parent=5 // pred_check
      %p179 = pneg %p178
    $region22: #{cswin_block.6} parent=5 // pred_check_branch
      %181 = sbr.rel (%p179) target = $region24
    $region23: #{cswin_block.6} parent=5 // pred_region
      // Predicated region
      $region25: #{cswin_block.6} parent=23 // pred_check
        %p182 = pneg %p31
      $region26: #{cswin_block.6} parent=23 // pred_check_branch
        %184 = sbr.rel (%p182) target = $region28
      $region27: #{cswin_block.6} parent=23 // pred_region
        %s185 = smul.u32 2, %s11
        %p186 = scmp.lt.s32.totalorder %s185, 3
        %s187 = scalar_select %p186, %s185, 3
        %s188 = smul.addr %s187, 4
        %s189 = smul.addr %s188, 4
        %s190 = scalar_lea.vmem %s0, %s189
        %s191 = smul.u32 2, %s11
      $region28: #{cswin_block.6} parent=23 // pred_fallthru
        _
      // Predicated region
      $region29: #{cswin_block.6} parent=23 // pred_check
        %p192 = pneg %p57
      $region30: #{cswin_block.6} parent=23 // pred_check_branch
        %194 = sbr.rel (%p192) target = $region32
      $region31: #{cswin_block.6} parent=23 // pred_region
        %s195 = smul.u32 2, %s11
        %p196 = scmp.lt.s32.totalorder %s195, 3
        %s197 = scalar_select %p196, %s195, 3
        %s198 = smul.addr %s197, 4
        %s199 = smul.addr %s198, 4
        %s200 = scalar_lea.vmem %s1, %s199
        %s201 = smul.u32 2, %s11
      $region32: #{cswin_block.6} parent=23 // pred_fallthru
        _
      // Predicated region
      $region33: #{cswin_block.6} parent=23 // pred_check
        %p202 = pneg %p83
      $region34: #{cswin_block.6} parent=23 // pred_check_branch
        %204 = sbr.rel (%p202) target = $region36
      $region35: #{cswin_block.6} parent=23 // pred_region
        %s205 = smul.u32 2, %s11
        %p206 = scmp.lt.s32.totalorder %s205, 3
        %s207 = scalar_select %p206, %s205, 3
        %s208 = smul.addr %s207, 4
        %s209 = smul.addr %s208, 4
        %s210 = scalar_lea.vmem %s2, %s209
        %s211 = smul.u32 2, %s11
      $region36: #{cswin_block.6} parent=23 // pred_fallthru
        _
    $region24: #{cswin_block.6} parent=5 // pred_fallthru
      _
    %p212 = scmp.le.s32.totalorder 1, %s11
    %p213 = scmp.lt.s32.totalorder %s11, 3
    %p214 = pnand %p212, %p213
    %p215 = pneg %p214
    // Predicated region
    $region37: #{cswin_block.6} parent=5 // pred_check
      _
    $region38: #{cswin_block.6} parent=5 // pred_check_branch
      %217 = sbr.rel (%p214) target = $region40
    $region39: #{cswin_block.6} parent=5 // pred_region
      %s218 = ssub.s32 %s11, 1
      %s219 = smul.u32 2, %s16
      %p220 = scmp.lt.s32.totalorder %s219, 3
      %s221 = scalar_select %p220, %s219, 3
      %s222 = smul.addr %s221, 4
      %s223 = smul.addr %s222, 4
      %s224 = scalar_lea.vmem %s0, %s223
      %p225 = pneg %p37
      %p226 = pneg %p34
      %s227 = smul.u32 2, %s16
      %p228 = scmp.lt.s32.totalorder %s227, 3
      %s229 = scalar_select %p228, %s227, 3
      %s230 = smul.addr %s229, 4
      %s231 = smul.addr %s230, 4
      %s232 = scalar_lea.vmem %s1, %s231
      %p233 = pneg %p63
      %p234 = pneg %p60
      %s235 = smul.u32 2, %s16
      %p236 = scmp.lt.s32.totalorder %s235, 3
      %s237 = scalar_select %p236, %s235, 3
      %s238 = smul.addr %s237, 4
      %s239 = smul.addr %s238, 4
      %s240 = scalar_lea.vmem %s2, %s239
      %p241 = pneg %p89
      %p242 = pneg %p86
      %p243 = pneg %p110
      %p244 = pneg %p107
      %p245 = pneg %p131
      %p246 = pneg %p128
      %p247 = pneg %p157
      %p248 = pneg %p154
      %s249 = smul.u32 2, %s16
      %p250 = scmp.lt.s32.totalorder %s249, 3
      %s251 = scalar_select %p250, %s249, 3
      %s252 = smul.addr %s251, 4
      %s253 = smul.addr %s252, 4
      %s254 = scalar_lea.vmem %s5, %s253
      %s255 = smul.u32 2, %s16
      %p256 = scmp.lt.s32.totalorder %s255, 3
      %s257 = scalar_select %p256, %s255, 3
      %s258 = smul.addr %s257, 4
      %s259 = smul.addr %s258, 4
      %s260 = scalar_lea.vmem %s0, %s259
      %s261 = smul.u32 2, %s16
      %s262 = smul.u32 2, %s16
      %p263 = scmp.lt.s32.totalorder %s262, 3
      %s264 = scalar_select %p263, %s262, 3
      %s265 = smul.addr %s264, 4
      %s266 = smul.addr %s265, 4
      %s267 = scalar_lea.vmem %s1, %s266
      %s268 = smul.u32 2, %s16
      %s269 = smul.u32 2, %s16
      %p270 = scmp.lt.s32.totalorder %s269, 3
      %s271 = scalar_select %p270, %s269, 3
      %s272 = smul.addr %s271, 4
      %s273 = smul.addr %s272, 4
      %s274 = scalar_lea.vmem %s2, %s273
      %s275 = smul.u32 2, %s16
      %s276 = smul.u32 2, %s16
      %p277 = scmp.lt.s32.totalorder %s276, 3
      %s278 = scalar_select %p277, %s276, 3
      %s279 = smul.addr %s278, 4
      %s280 = smul.addr %s279, 4
      %s281 = scalar_lea.vmem %s5, %s280
      %s282 = smul.u32 2, %s16
      %v284 = vld [vmem:[%s260] sm:$0xf]
      %v285 = vld [vmem:[%s260 + $0x4] sm:$0xf]
      %v286 = vld [vmem:[%s260 + $0x8] sm:$0xf]
      %v287 = vld [vmem:[%s260 + $0xc] sm:$0xf]
      %v288 = vld [vmem:[%s260 + $0x10] sm:$0xf]
      %v289 = vld [vmem:[%s260 + $0x14] sm:$0xf]
      %v290 = vld [vmem:[%s260 + $0x18] sm:$0xf]
      %v291 = vld [vmem:[%s260 + $0x1c] sm:$0xf]
      %v292 = vld [vmem:[%s267] sm:$0xf]
      %v293 = vld [vmem:[%s267 + $0x4] sm:$0xf]
      %v294 = vld [vmem:[%s267 + $0x8] sm:$0xf]
      %v295 = vld [vmem:[%s267 + $0xc] sm:$0xf]
      %v296 = vld [vmem:[%s267 + $0x10] sm:$0xf]
      %v297 = vld [vmem:[%s267 + $0x14] sm:$0xf]
      %v298 = vld [vmem:[%s267 + $0x18] sm:$0xf]
      %v299 = vld [vmem:[%s267 + $0x1c] sm:$0xf]
      %v300 = vld [vmem:[%s274] sm:$0xf]
      %v301 = vld [vmem:[%s274 + $0x4] sm:$0xf]
      %v302 = vld [vmem:[%s274 + $0x8] sm:$0xf]
      %v303 = vld [vmem:[%s274 + $0xc] sm:$0xf]
      %v304 = vld [vmem:[%s274 + $0x10] sm:$0xf]
      %v305 = vld [vmem:[%s274 + $0x14] sm:$0xf]
      %v306 = vld [vmem:[%s274 + $0x18] sm:$0xf]
      %v307 = vld [vmem:[%s274 + $0x1c] sm:$0xf]
      %v312 = vunpack.c.l.b16 %v284
      %v313 = vunpack.c.l.b16 %v285
      %v314 = vunpack.c.l.b16 %v286
      %v315 = vunpack.c.l.b16 %v287
      %v316 = vpack.c.b16 %v313, %v312
      %v317 = vpack.c.b16 %v315, %v314
      %v322 = vunpack.c.l.b16 %v292
      %v323 = vunpack.c.l.b16 %v293
      %v324 = vunpack.c.l.b16 %v294
      %v325 = vunpack.c.l.b16 %v295
      %v326 = vpack.c.b16 %v323, %v322
      %v327 = vpack.c.b16 %v325, %v324
      %vm328 = vcmask 64512
      %v330 = vsel %vm328, %v316, 0
      %v333 = vsel %vm328, %v317, 0
      %v336 = vsel %vm328, %v326, 0
      %v339 = vsel %vm328, %v327, 0
      %341 = vmatprep.subr.bf16.mxu0 0
      %342 = vmatpush1.bf16.xpose.msra.mxu0 %v336
      %343 = vmatprep.subr.bf16.mxu0 0
      %344 = vmatpush1.bf16.xpose.msra.mxu0 %v339
      %345 = vmatprep.subr.bf16.mxu0 0
      %346 = vmatpush1.bf16.xpose.msra.mxu0 0
      %347 = vmatprep.subr.bf16.mxu0 0
      %348 = vmatpush1.bf16.xpose.msra.mxu0 0
      %349 = vmatprep.subr.bf16.mxu0 0
      %350 = vmatpush1.bf16.xpose.msra.mxu0 0
      %351 = vmatprep.subr.bf16.mxu0 0
      %352 = vmatpush1.bf16.xpose.msra.mxu0 0
      %353 = vmatprep.subr.bf16.mxu0 0
      %354 = vmatpush1.bf16.xpose.msra.mxu0 0
      %355 = vmatprep.subr.bf16.mxu0 0
      %356 = vmatpush1.bf16.xpose.msra.mxu0 0
      %357 = vmatprep.subr.bf16.mxu0 0
      %358 = vmatpush1.bf16.xpose.msra.mxu0 0
      %359 = vmatprep.subr.bf16.mxu0 0
      %360 = vmatpush1.bf16.xpose.msra.mxu0 0
      %361 = vmatprep.subr.bf16.mxu0 0
      %362 = vmatpush1.bf16.xpose.msra.mxu0 0
      %363 = vmatprep.subr.bf16.mxu0 0
      %364 = vmatpush1.bf16.xpose.msra.mxu0 0
      %365 = vmatprep.subr.bf16.mxu0 0
      %366 = vmatpush1.bf16.xpose.msra.mxu0 0
      %367 = vmatprep.subr.bf16.mxu0 0
      %368 = vmatpush1.bf16.xpose.msra.mxu0 0
      %369 = vmatprep.subr.bf16.mxu0 0
      %370 = vmatpush1.bf16.xpose.msra.mxu0 0
      %371 = vmatprep.subr.bf16.mxu0 0
      %372 = vmatpush1.bf16.xpose.msra.mxu0 0
      %373 = vmatprep.mubr.bf16.mxu0 0
      %374 = vmatmul.mubr.bf16.gmra.mrb[0].mxu0 %v330
      %v375 = vpop.f32.mrb[0].mxu0
      %v376 = vadd.f32 0.0, %v375
      %v377 = vpop.f32.mrb[0].mxu0
      %v378 = vpop.f32.mrb[0].mxu0
      %v379 = vadd.f32 0.0, %v378
      %v380 = vpop.f32.mrb[0].mxu0
      %381 = vmatprep.mubr.bf16.mxu0 0
      %382 = vmatmul.mubr.bf16.gmra.mrb[0].mxu0 %v333
      %v383 = vpop.f32.mrb[0].mxu0
      %v384 = vadd.f32 0.0, %v383
      %v385 = vpop.f32.mrb[0].mxu0
      %v386 = vpop.f32.mrb[0].mxu0
      %v387 = vadd.f32 0.0, %v386
      %v388 = vpop.f32.mrb[0].mxu0
      %389 = vdwg.mxu0
      %v394 = vunpack.c.l.b16 %v288
      %v395 = vunpack.c.l.b16 %v289
      %v396 = vunpack.c.l.b16 %v290
      %v397 = vunpack.c.l.b16 %v291
      %v398 = vpack.c.b16 %v395, %v394
      %v399 = vpack.c.b16 %v397, %v396
      %v404 = vunpack.c.l.b16 %v296
      %v405 = vunpack.c.l.b16 %v297
      %v406 = vunpack.c.l.b16 %v298
      %v407 = vunpack.c.l.b16 %v299
      %v408 = vpack.c.b16 %v405, %v404
      %v409 = vpack.c.b16 %v407, %v406
      %v411 = vsel %vm328, %v398, 0
      %v414 = vsel %vm328, %v399, 0
      %v417 = vsel %vm328, %v408, 0
      %v420 = vsel %vm328, %v409, 0
      %422 = vmatprep.subr.bf16.mxu0 0
      %423 = vmatpush1.bf16.xpose.msra.mxu0 %v417
      %424 = vmatprep.subr.bf16.mxu0 0
      %425 = vmatpush1.bf16.xpose.msra.mxu0 %v420
      %426 = vmatprep.subr.bf16.mxu0 0
      %427 = vmatpush1.bf16.xpose.msra.mxu0 0
      %428 = vmatprep.subr.bf16.mxu0 0
      %429 = vmatpush1.bf16.xpose.msra.mxu0 0
      %430 = vmatprep.subr.bf16.mxu0 0
      %431 = vmatpush1.bf16.xpose.msra.mxu0 0
      %432 = vmatprep.subr.bf16.mxu0 0
      %433 = vmatpush1.bf16.xpose.msra.mxu0 0
      %434 = vmatprep.subr.bf16.mxu0 0
      %435 = vmatpush1.bf16.xpose.msra.mxu0 0
      %436 = vmatprep.subr.bf16.mxu0 0
      %437 = vmatpush1.bf16.xpose.msra.mxu0 0
      %438 = vmatprep.subr.bf16.mxu0 0
      %439 = vmatpush1.bf16.xpose.msra.mxu0 0
      %440 = vmatprep.subr.bf16.mxu0 0
      %441 = vmatpush1.bf16.xpose.msra.mxu0 0
      %442 = vmatprep.subr.bf16.mxu0 0
      %443 = vmatpush1.bf16.xpose.msra.mxu0 0
      %444 = vmatprep.subr.bf16.mxu0 0
      %445 = vmatpush1.bf16.xpose.msra.mxu0 0
      %446 = vmatprep.subr.bf16.mxu0 0
      %447 = vmatpush1.bf16.xpose.msra.mxu0 0
      %448 = vmatprep.subr.bf16.mxu0 0
      %449 = vmatpush1.bf16.xpose.msra.mxu0 0
      %450 = vmatprep.subr.bf16.mxu0 0
      %451 = vmatpush1.bf16.xpose.msra.mxu0 0
      %452 = vmatprep.subr.bf16.mxu0 0
      %453 = vmatpush1.bf16.xpose.msra.mxu0 0
      %454 = vmatprep.mubr.bf16.mxu0 0
      %455 = vmatmul.mubr.bf16.gmra.mrb[0].mxu0 %v411
      %v456 = vpop.f32.mrb[0].mxu0
      %v457 = vadd.f32 0.0, %v456
      %v458 = vpop.f32.mrb[0].mxu0
      %v459 = vpop.f32.mrb[0].mxu0
      %v460 = vadd.f32 0.0, %v459
      %v461 = vpop.f32.mrb[0].mxu0
      %462 = vmatprep.mubr.bf16.mxu0 0
      %463 = vmatmul.mubr.bf16.gmra.mrb[0].mxu0 %v414
      %v464 = vpop.f32.mrb[0].mxu0
      %v465 = vadd.f32 0.0, %v464
      %v466 = vpop.f32.mrb[0].mxu0
      %v467 = vpop.f32.mrb[0].mxu0
      %v468 = vadd.f32 0.0, %v467
      %v469 = vpop.f32.mrb[0].mxu0
      %470 = vdwg.mxu0
      %v471 = vmul.f32 %v376, 0.35355338
      %v472 = vmul.f32 %v379, 0.35355338
      %v473 = vmul.f32 %v384, 0.35355338
      %v474 = vmul.f32 %v387, 0.35355338
      %v475 = vmul.f32 %v457, 0.35355338
      %v476 = vmul.f32 %v460, 0.35355338
      %v477 = vmul.f32 %v465, 0.35355338
      %v478 = vmul.f32 %v468, 0.35355338
      %vm479 = vcmask 261120
      %v480 = vsel %vm479, %v471, -inf
      %481 = vmax.xlane.f32.xlu0 %v480
      %v482 = vpop.xlane.xlu0 %481
      %v483 = vsel %vm479, %v472, -inf
      %484 = vmax.xlane.f32.xlu0 %v483
      %v485 = vpop.xlane.xlu0 %484
      %v486 = vsel %vm479, %v473, -inf
      %487 = vmax.xlane.f32.xlu0 %v486
      %v488 = vpop.xlane.xlu0 %487
      %v489 = vsel %vm479, %v474, -inf
      %490 = vmax.xlane.f32.xlu0 %v489
      %v491 = vpop.xlane.xlu0 %490
      %v492 = vsel %vm479, %v475, -inf
      %493 = vmax.xlane.f32.xlu0 %v492
      %v494 = vpop.xlane.xlu0 %493
      %v495 = vsel %vm479, %v476, -inf
      %496 = vmax.xlane.f32.xlu0 %v495
      %v497 = vpop.xlane.xlu0 %496
      %v498 = vsel %vm479, %v477, -inf
      %499 = vmax.xlane.f32.xlu0 %v498
      %v500 = vpop.xlane.xlu0 %499
      %v501 = vsel %vm479, %v478, -inf
      %502 = vmax.xlane.f32.xlu0 %v501
      %v503 = vpop.xlane.xlu0 %502
      %v504 = vsub.f32 %v471, %v482
      %v505 = vsub.f32 %v472, %v485
      %v506 = vsub.f32 %v473, %v488
      %v507 = vsub.f32 %v474, %v491
      %v508 = vsub.f32 %v475, %v494
      %v509 = vsub.f32 %v476, %v497
      %v510 = vsub.f32 %v477, %v500
      %v511 = vsub.f32 %v478, %v503
      %v512 = vmul.f32 %v504, 1.442695
      %v513 = vpow.pop %v512
      %v514 = vmul.f32 %v505, 1.442695
      %v515 = vpow.pop %v514
      %v516 = vmul.f32 %v506, 1.442695
      %v517 = vpow.pop %v516
      %v518 = vmul.f32 %v507, 1.442695
      %v519 = vpow.pop %v518
      %v520 = vmul.f32 %v508, 1.442695
      %v521 = vpow.pop %v520
      %v522 = vmul.f32 %v509, 1.442695
      %v523 = vpow.pop %v522
      %v524 = vmul.f32 %v510, 1.442695
      %v525 = vpow.pop %v524
      %v526 = vmul.f32 %v511, 1.442695
      %v527 = vpow.pop %v526
      %v528 = vsel %vm479, %v513, 0.0
      %529 = vadd.xlane.f32.xlu0 %v528
      %v530 = vpop.xlane.xlu0 %529
      %v531 = vsel %vm479, %v515, 0.0
      %532 = vadd.xlane.f32.xlu0 %v531
      %v533 = vpop.xlane.xlu0 %532
      %v534 = vsel %vm479, %v517, 0.0
      %535 = vadd.xlane.f32.xlu0 %v534
      %v536 = vpop.xlane.xlu0 %535
      %v537 = vsel %vm479, %v519, 0.0
      %538 = vadd.xlane.f32.xlu0 %v537
      %v539 = vpop.xlane.xlu0 %538
      %v540 = vsel %vm479, %v521, 0.0
      %541 = vadd.xlane.f32.xlu0 %v540
      %v542 = vpop.xlane.xlu0 %541
      %v543 = vsel %vm479, %v523, 0.0
      %544 = vadd.xlane.f32.xlu0 %v543
      %v545 = vpop.xlane.xlu0 %544
      %v546 = vsel %vm479, %v525, 0.0
      %547 = vadd.xlane.f32.xlu0 %v546
      %v548 = vpop.xlane.xlu0 %547
      %v549 = vsel %vm479, %v527, 0.0
      %550 = vadd.xlane.f32.xlu0 %v549
      %v551 = vpop.xlane.xlu0 %550
      %v552 = vrcp.pop %v530
      %v553 = vrcp.pop %v533
      %v554 = vrcp.pop %v536
      %v555 = vrcp.pop %v539
      %v556 = vrcp.pop %v542
      %v557 = vrcp.pop %v545
      %v558 = vrcp.pop %v548
      %v559 = vrcp.pop %v551
      %v560 = vmul.f32 %v513, %v552
      %v561 = vmul.f32 %v515, %v553
      %v562 = vmul.f32 %v517, %v554
      %v563 = vmul.f32 %v519, %v555
      %v564 = vmul.f32 %v521, %v556
      %v565 = vmul.f32 %v523, %v557
      %v566 = vmul.f32 %v525, %v558
      %v567 = vmul.f32 %v527, %v559
      %v568 = vpack.c.bf16 %v561, %v560
      %v569 = vpack.c.bf16 %v563, %v562
      %v570 = vpack.c.bf16 %v565, %v564
      %v571 = vpack.c.bf16 %v567, %v566
      %v576 = vunpack.c.l.b16 %v300
      %v577 = vunpack.c.l.b16 %v301
      %v578 = vunpack.c.l.b16 %v302
      %v579 = vunpack.c.l.b16 %v303
      %v580 = vpack.c.b16 %v577, %v576
      %v581 = vpack.c.b16 %v579, %v578
      %v585 = vsel %vm479, %v568, 0
      %v588 = vsel %vm479, %v569, 0
      %590 = vmatprep.subr.bf16.mxu0 0
      %591 = vmatpush1.bf16.msra.mxu0 %v580
      %592 = vmatprep.subr.bf16.mxu0 0
      %593 = vmatpush1.bf16.msra.mxu0 %v581
      %594 = vmatprep.subr.bf16.mxu0 0
      %595 = vmatpush1.bf16.msra.mxu0 0
      %596 = vmatprep.subr.bf16.mxu0 0
      %597 = vmatpush1.bf16.msra.mxu0 0
      %598 = vmatprep.subr.bf16.mxu0 0
      %599 = vmatpush1.bf16.msra.mxu0 0
      %600 = vmatprep.subr.bf16.mxu0 0
      %601 = vmatpush1.bf16.msra.mxu0 0
      %602 = vmatprep.subr.bf16.mxu0 0
      %603 = vmatpush1.bf16.msra.mxu0 0
      %604 = vmatprep.subr.bf16.mxu0 0
      %605 = vmatpush1.bf16.msra.mxu0 0
      %606 = vmatprep.subr.bf16.mxu0 0
      %607 = vmatpush1.bf16.msra.mxu0 0
      %608 = vmatprep.subr.bf16.mxu0 0
      %609 = vmatpush1.bf16.msra.mxu0 0
      %610 = vmatprep.subr.bf16.mxu0 0
      %611 = vmatpush1.bf16.msra.mxu0 0
      %612 = vmatprep.subr.bf16.mxu0 0
      %613 = vmatpush1.bf16.msra.mxu0 0
      %614 = vmatprep.subr.bf16.mxu0 0
      %615 = vmatpush1.bf16.msra.mxu0 0
      %616 = vmatprep.subr.bf16.mxu0 0
      %617 = vmatpush1.bf16.msra.mxu0 0
      %618 = vmatprep.subr.bf16.mxu0 0
      %619 = vmatpush1.bf16.msra.mxu0 0
      %620 = vmatprep.subr.bf16.mxu0 0
      %621 = vmatpush1.bf16.msra.mxu0 0
      %622 = vmatprep.mubr.bf16.mxu0 0
      %623 = vmatmul.mubr.bf16.gmra.mrb[0].mxu0 %v585
      %v624 = vpop.f32.mrb[0].mxu0
      %v625 = vadd.f32 0.0, %v624
      %v626 = vpop.f32.mrb[0].mxu0
      %v627 = vpop.f32.mrb[0].mxu0
      %v628 = vadd.f32 0.0, %v627
      %v629 = vpop.f32.mrb[0].mxu0
      %630 = vmatprep.mubr.bf16.mxu0 0
      %631 = vmatmul.mubr.bf16.gmra.mrb[0].mxu0 %v588
      %v632 = vpop.f32.mrb[0].mxu0
      %v633 = vadd.f32 0.0, %v632
      %v634 = vpop.f32.mrb[0].mxu0
      %v635 = vpop.f32.mrb[0].mxu0
      %v636 = vadd.f32 0.0, %v635
      %v637 = vpop.f32.mrb[0].mxu0
      %638 = vdwg.mxu0
      %v643 = vunpack.c.l.b16 %v304
      %v644 = vunpack.c.l.b16 %v305
      %v645 = vunpack.c.l.b16 %v306
      %v646 = vunpack.c.l.b16 %v307
      %v647 = vpack.c.b16 %v644, %v643
      %v648 = vpack.c.b16 %v646, %v645
      %v652 = vsel %vm479, %v570, 0
      %v655 = vsel %vm479, %v571, 0
      %657 = vmatprep.subr.bf16.mxu0 0
      %658 = vmatpush1.bf16.msra.mxu0 %v647
      %659 = vmatprep.subr.bf16.mxu0 0
      %660 = vmatpush1.bf16.msra.mxu0 %v648
      %661 = vmatprep.subr.bf16.mxu0 0
      %662 = vmatpush1.bf16.msra.mxu0 0
      %663 = vmatprep.subr.bf16.mxu0 0
      %664 = vmatpush1.bf16.msra.mxu0 0
      %665 = vmatprep.subr.bf16.mxu0 0
      %666 = vmatpush1.bf16.msra.mxu0 0
      %667 = vmatprep.subr.bf16.mxu0 0
      %668 = vmatpush1.bf16.msra.mxu0 0
      %669 = vmatprep.subr.bf16.mxu0 0
      %670 = vmatpush1.bf16.msra.mxu0 0
      %671 = vmatprep.subr.bf16.mxu0 0
      %672 = vmatpush1.bf16.msra.mxu0 0
      %673 = vmatprep.subr.bf16.mxu0 0
      %674 = vmatpush1.bf16.msra.mxu0 0
      %675 = vmatprep.subr.bf16.mxu0 0
      %676 = vmatpush1.bf16.msra.mxu0 0
      %677 = vmatprep.subr.bf16.mxu0 0
      %678 = vmatpush1.bf16.msra.mxu0 0
      %679 = vmatprep.subr.bf16.mxu0 0
      %680 = vmatpush1.bf16.msra.mxu0 0
      %681 = vmatprep.subr.bf16.mxu0 0
      %682 = vmatpush1.bf16.msra.mxu0 0
      %683 = vmatprep.subr.bf16.mxu0 0
      %684 = vmatpush1.bf16.msra.mxu0 0
      %685 = vmatprep.subr.bf16.mxu0 0
      %686 = vmatpush1.bf16.msra.mxu0 0
      %687 = vmatprep.subr.bf16.mxu0 0
      %688 = vmatpush1.bf16.msra.mxu0 0
      %689 = vmatprep.mubr.bf16.mxu0 0
      %690 = vmatmul.mubr.bf16.gmra.mrb[0].mxu0 %v652
      %v691 = vpop.f32.mrb[0].mxu0
      %v692 = vadd.f32 0.0, %v691
      %v693 = vpop.f32.mrb[0].mxu0
      %v694 = vpop.f32.mrb[0].mxu0
      %v695 = vadd.f32 0.0, %v694
      %v696 = vpop.f32.mrb[0].mxu0
      %697 = vmatprep.mubr.bf16.mxu0 0
      %698 = vmatmul.mubr.bf16.gmra.mrb[0].mxu0 %v655
      %v699 = vpop.f32.mrb[0].mxu0
      %v700 = vadd.f32 0.0, %v699
      %v701 = vpop.f32.mrb[0].mxu0
      %v702 = vpop.f32.mrb[0].mxu0
      %v703 = vadd.f32 0.0, %v702
      %v704 = vpop.f32.mrb[0].mxu0
      %705 = vdwg.mxu0
      %706 = vrot.lane.b32.xlu0 %v316, 120
      %v707 = vpop.permute.xlu0 %706
      %708 = vrot.lane.b32.xlu0 %v317, 120
      %v709 = vpop.permute.xlu0 %708
      %710 = vrot.lane.b32.xlu0 %v326, 120
      %v711 = vpop.permute.xlu0 %710
      %712 = vrot.lane.b32.xlu0 %v327, 120
      %v713 = vpop.permute.xlu0 %712
      %v715 = vsel %vm328, %v707, 0
      %v718 = vsel %vm328, %v709, 0
      %v721 = vsel %vm328, %v711, 0
      %v724 = vsel %vm328, %v713, 0
      %726 = vmatprep.subr.bf16.mxu0 0
      %727 = vmatpush1.bf16.xpose.msra.mxu0 %v721
      %728 = vmatprep.subr.bf16.mxu0 0
      %729 = vmatpush1.bf16.xpose.msra.mxu0 %v724
      %730 = vmatprep.subr.bf16.mxu0 0
      %731 = vmatpush1.bf16.xpose.msra.mxu0 0
      %732 = vmatprep.subr.bf16.mxu0 0
      %733 = vmatpush1.bf16.xpose.msra.mxu0 0
      %734 = vmatprep.subr.bf16.mxu0 0
      %735 = vmatpush1.bf16.xpose.msra.mxu0 0
      %736 = vmatprep.subr.bf16.mxu0 0
      %737 = vmatpush1.bf16.xpose.msra.mxu0 0
      %738 = vmatprep.subr.bf16.mxu0 0
      %739 = vmatpush1.bf16.xpose.msra.mxu0 0
      %740 = vmatprep.subr.bf16.mxu0 0
      %741 = vmatpush1.bf16.xpose.msra.mxu0 0
      %742 = vmatprep.subr.bf16.mxu0 0
      %743 = vmatpush1.bf16.xpose.msra.mxu0 0
      %744 = vmatprep.subr.bf16.mxu0 0
      %745 = vmatpush1.bf16.xpose.msra.mxu0 0
      %746 = vmatprep.subr.bf16.mxu0 0
      %747 = vmatpush1.bf16.xpose.msra.mxu0 0
      %748 = vmatprep.subr.bf16.mxu0 0
      %749 = vmatpush1.bf16.xpose.msra.mxu0 0
      %750 = vmatprep.subr.bf16.mxu0 0
      %751 = vmatpush1.bf16.xpose.msra.mxu0 0
      %752 = vmatprep.subr.bf16.mxu0 0
      %753 = vmatpush1.bf16.xpose.msra.mxu0 0
      %754 = vmatprep.subr.bf16.mxu0 0
      %755 = vmatpush1.bf16.xpose.msra.mxu0 0
      %756 = vmatprep.subr.bf16.mxu0 0
      %757 = vmatpush1.bf16.xpose.msra.mxu0 0
      %758 = vmatprep.mubr.bf16.mxu0 0
      %759 = vmatmul.mubr.bf16.gmra.mrb[0].mxu0 %v715
      %v760 = vpop.f32.mrb[0].mxu0
      %v761 = vadd.f32 0.0, %v760
      %v762 = vpop.f32.mrb[0].mxu0
      %v763 = vpop.f32.mrb[0].mxu0
      %v764 = vadd.f32 0.0, %v763
      %v765 = vpop.f32.mrb[0].mxu0
      %766 = vmatprep.mubr.bf16.mxu0 0
      %767 = vmatmul.mubr.bf16.gmra.mrb[0].mxu0 %v718
      %v768 = vpop.f32.mrb[0].mxu0
      %v769 = vadd.f32 0.0, %v768
      %v770 = vpop.f32.mrb[0].mxu0
      %v771 = vpop.f32.mrb[0].mxu0
      %v772 = vadd.f32 0.0, %v771
      %v773 = vpop.f32.mrb[0].mxu0
      %774 = vdwg.mxu0
      %775 = vrot.lane.b32.xlu0 %v398, 120
      %v776 = vpop.permute.xlu0 %775
      %777 = vrot.lane.b32.xlu0 %v399, 120
      %v778 = vpop.permute.xlu0 %777
      %779 = vrot.lane.b32.xlu0 %v408, 120
      %v780 = vpop.permute.xlu0 %779
      %781 = vrot.lane.b32.xlu0 %v409, 120
      %v782 = vpop.permute.xlu0 %781
      %v784 = vsel %vm328, %v776, 0
      %v787 = vsel %vm328, %v778, 0
      %v790 = vsel %vm328, %v780, 0
      %v793 = vsel %vm328, %v782, 0
      %795 = vmatprep.subr.bf16.mxu0 0
      %796 = vmatpush1.bf16.xpose.msra.mxu0 %v790
      %797 = vmatprep.subr.bf16.mxu0 0
      %798 = vmatpush1.bf16.xpose.msra.mxu0 %v793
      %799 = vmatprep.subr.bf16.mxu0 0
      %800 = vmatpush1.bf16.xpose.msra.mxu0 0
      %801 = vmatprep.subr.bf16.mxu0 0
      %802 = vmatpush1.bf16.xpose.msra.mxu0 0
      %803 = vmatprep.subr.bf16.mxu0 0
      %804 = vmatpush1.bf16.xpose.msra.mxu0 0
      %805 = vmatprep.subr.bf16.mxu0 0
      %806 = vmatpush1.bf16.xpose.msra.mxu0 0
      %807 = vmatprep.subr.bf16.mxu0 0
      %808 = vmatpush1.bf16.xpose.msra.mxu0 0
      %809 = vmatprep.subr.bf16.mxu0 0
      %810 = vmatpush1.bf16.xpose.msra.mxu0 0
      %811 = vmatprep.subr.bf16.mxu0 0
      %812 = vmatpush1.bf16.xpose.msra.mxu0 0
      %813 = vmatprep.subr.bf16.mxu0 0
      %814 = vmatpush1.bf16.xpose.msra.mxu0 0
      %815 = vmatprep.subr.bf16.mxu0 0
      %816 = vmatpush1.bf16.xpose.msra.mxu0 0
      %817 = vmatprep.subr.bf16.mxu0 0
      %818 = vmatpush1.bf16.xpose.msra.mxu0 0
      %819 = vmatprep.subr.bf16.mxu0 0
      %820 = vmatpush1.bf16.xpose.msra.mxu0 0
      %821 = vmatprep.subr.bf16.mxu0 0
      %822 = vmatpush1.bf16.xpose.msra.mxu0 0
      %823 = vmatprep.subr.bf16.mxu0 0
      %824 = vmatpush1.bf16.xpose.msra.mxu0 0
      %825 = vmatprep.subr.bf16.mxu0 0
      %826 = vmatpush1.bf16.xpose.msra.mxu0 0
      %827 = vmatprep.mubr.bf16.mxu0 0
      %828 = vmatmul.mubr.bf16.gmra.mrb[0].mxu0 %v784
      %v829 = vpop.f32.mrb[0].mxu0
      %v830 = vadd.f32 0.0, %v829
      %v831 = vpop.f32.mrb[0].mxu0
      %v832 = vpop.f32.mrb[0].mxu0
      %v833 = vadd.f32 0.0, %v832
      %v834 = vpop.f32.mrb[0].mxu0
      %835 = vmatprep.mubr.bf16.mxu0 0
      %836 = vmatmul.mubr.bf16.gmra.mrb[0].mxu0 %v787
      %v837 = vpop.f32.mrb[0].mxu0
      %v838 = vadd.f32 0.0, %v837
      %v839 = vpop.f32.mrb[0].mxu0
      %v840 = vpop.f32.mrb[0].mxu0
      %v841 = vadd.f32 0.0, %v840
      %v842 = vpop.f32.mrb[0].mxu0
      %843 = vdwg.mxu0
      %v844 = vmul.f32 %v761, 0.35355338
      %v845 = vmul.f32 %v764, 0.35355338
      %v846 = vmul.f32 %v769, 0.35355338
      %v847 = vmul.f32 %v772, 0.35355338
      %v848 = vmul.f32 %v830, 0.35355338
      %v849 = vmul.f32 %v833, 0.35355338
      %v850 = vmul.f32 %v838, 0.35355338
      %v851 = vmul.f32 %v841, 0.35355338
      %v852 = vsel %vm479, %v844, -inf
      %853 = vmax.xlane.f32.xlu0 %v852
      %v854 = vpop.xlane.xlu0 %853
      %v855 = vsel %vm479, %v845, -inf
      %856 = vmax.xlane.f32.xlu0 %v855
      %v857 = vpop.xlane.xlu0 %856
      %v858 = vsel %vm479, %v846, -inf
      %859 = vmax.xlane.f32.xlu0 %v858
      %v860 = vpop.xlane.xlu0 %859
      %v861 = vsel %vm479, %v847, -inf
      %862 = vmax.xlane.f32.xlu0 %v861
      %v863 = vpop.xlane.xlu0 %862
      %v864 = vsel %vm479, %v848, -inf
      %865 = vmax.xlane.f32.xlu0 %v864
      %v866 = vpop.xlane.xlu0 %865
      %v867 = vsel %vm479, %v849, -inf
      %868 = vmax.xlane.f32.xlu0 %v867
      %v869 = vpop.xlane.xlu0 %868
      %v870 = vsel %vm479, %v850, -inf
      %871 = vmax.xlane.f32.xlu0 %v870
      %v872 = vpop.xlane.xlu0 %871
      %v873 = vsel %vm479, %v851, -inf
      %874 = vmax.xlane.f32.xlu0 %v873
      %v875 = vpop.xlane.xlu0 %874
      %v876 = vsub.f32 %v844, %v854
      %v877 = vsub.f32 %v845, %v857
      %v878 = vsub.f32 %v846, %v860
      %v879 = vsub.f32 %v847, %v863
      %v880 = vsub.f32 %v848, %v866
      %v881 = vsub.f32 %v849, %v869
      %v882 = vsub.f32 %v850, %v872
      %v883 = vsub.f32 %v851, %v875
      %v884 = vmul.f32 %v876, 1.442695
      %v885 = vpow.pop %v884
      %v886 = vmul.f32 %v877, 1.442695
      %v887 = vpow.pop %v886
      %v888 = vmul.f32 %v878, 1.442695
      %v889 = vpow.pop %v888
      %v890 = vmul.f32 %v879, 1.442695
      %v891 = vpow.pop %v890
      %v892 = vmul.f32 %v880, 1.442695
      %v893 = vpow.pop %v892
      %v894 = vmul.f32 %v881, 1.442695
      %v895 = vpow.pop %v894
      %v896 = vmul.f32 %v882, 1.442695
      %v897 = vpow.pop %v896
      %v898 = vmul.f32 %v883, 1.442695
      %v899 = vpow.pop %v898
      %v900 = vsel %vm479, %v885, 0.0
      %901 = vadd.xlane.f32.xlu0 %v900
      %v902 = vpop.xlane.xlu0 %901
      %v903 = vsel %vm479, %v887, 0.0
      %904 = vadd.xlane.f32.xlu0 %v903
      %v905 = vpop.xlane.xlu0 %904
      %v906 = vsel %vm479, %v889, 0.0
      %907 = vadd.xlane.f32.xlu0 %v906
      %v908 = vpop.xlane.xlu0 %907
      %v909 = vsel %vm479, %v891, 0.0
      %910 = vadd.xlane.f32.xlu0 %v909
      %v911 = vpop.xlane.xlu0 %910
      %v912 = vsel %vm479, %v893, 0.0
      %913 = vadd.xlane.f32.xlu0 %v912
      %v914 = vpop.xlane.xlu0 %913
      %v915 = vsel %vm479, %v895, 0.0
      %916 = vadd.xlane.f32.xlu0 %v915
      %v917 = vpop.xlane.xlu0 %916
      %v918 = vsel %vm479, %v897, 0.0
      %919 = vadd.xlane.f32.xlu0 %v918
      %v920 = vpop.xlane.xlu0 %919
      %v921 = vsel %vm479, %v899, 0.0
      %922 = vadd.xlane.f32.xlu0 %v921
      %v923 = vpop.xlane.xlu0 %922
      %v924 = vrcp.pop %v902
      %v925 = vrcp.pop %v905
      %v926 = vrcp.pop %v908
      %v927 = vrcp.pop %v911
      %v928 = vrcp.pop %v914
      %v929 = vrcp.pop %v917
      %v930 = vrcp.pop %v920
      %v931 = vrcp.pop %v923
      %v932 = vmul.f32 %v885, %v924
      %v933 = vmul.f32 %v887, %v925
      %v934 = vmul.f32 %v889, %v926
      %v935 = vmul.f32 %v891, %v927
      %v936 = vmul.f32 %v893, %v928
      %v937 = vmul.f32 %v895, %v929
      %v938 = vmul.f32 %v897, %v930
      %v939 = vmul.f32 %v899, %v931
      %v940 = vpack.c.bf16 %v933, %v932
      %v941 = vpack.c.bf16 %v935, %v934
      %v942 = vpack.c.bf16 %v937, %v936
      %v943 = vpack.c.bf16 %v939, %v938
      %944 = vrot.lane.b32.xlu0 %v580, 120
      %v945 = vpop.permute.xlu0 %944
      %946 = vrot.lane.b32.xlu0 %v581, 120
      %v947 = vpop.permute.xlu0 %946
      %v951 = vsel %vm479, %v940, 0
      %v954 = vsel %vm479, %v941, 0
      %956 = vmatprep.subr.bf16.mxu0 0
      %957 = vmatpush1.bf16.msra.mxu0 %v945
      %958 = vmatprep.subr.bf16.mxu0 0
      %959 = vmatpush1.bf16.msra.mxu0 %v947
      %960 = vmatprep.subr.bf16.mxu0 0
      %961 = vmatpush1.bf16.msra.mxu0 0
      %962 = vmatprep.subr.bf16.mxu0 0
      %963 = vmatpush1.bf16.msra.mxu0 0
      %964 = vmatprep.subr.bf16.mxu0 0
      %965 = vmatpush1.bf16.msra.mxu0 0
      %966 = vmatprep.subr.bf16.mxu0 0
      %967 = vmatpush1.bf16.msra.mxu0 0
      %968 = vmatprep.subr.bf16.mxu0 0
      %969 = vmatpush1.bf16.msra.mxu0 0
      %970 = vmatprep.subr.bf16.mxu0 0
      %971 = vmatpush1.bf16.msra.mxu0 0
      %972 = vmatprep.subr.bf16.mxu0 0
      %973 = vmatpush1.bf16.msra.mxu0 0
      %974 = vmatprep.subr.bf16.mxu0 0
      %975 = vmatpush1.bf16.msra.mxu0 0
      %976 = vmatprep.subr.bf16.mxu0 0
      %977 = vmatpush1.bf16.msra.mxu0 0
      %978 = vmatprep.subr.bf16.mxu0 0
      %979 = vmatpush1.bf16.msra.mxu0 0
      %980 = vmatprep.subr.bf16.mxu0 0
      %981 = vmatpush1.bf16.msra.mxu0 0
      %982 = vmatprep.subr.bf16.mxu0 0
      %983 = vmatpush1.bf16.msra.mxu0 0
      %984 = vmatprep.subr.bf16.mxu0 0
      %985 = vmatpush1.bf16.msra.mxu0 0
      %986 = vmatprep.subr.bf16.mxu0 0
      %987 = vmatpush1.bf16.msra.mxu0 0
      %988 = vmatprep.mubr.bf16.mxu0 0
      %989 = vmatmul.mubr.bf16.gmra.mrb[0].mxu0 %v951
      %v990 = vpop.f32.mrb[0].mxu0
      %v991 = vadd.f32 0.0, %v990
      %v992 = vpop.f32.mrb[0].mxu0
      %v993 = vpop.f32.mrb[0].mxu0
      %v994 = vadd.f32 0.0, %v993
      %v995 = vpop.f32.mrb[0].mxu0
      %996 = vmatprep.mubr.bf16.mxu0 0
      %997 = vmatmul.mubr.bf16.gmra.mrb[0].mxu0 %v954
      %v998 = vpop.f32.mrb[0].mxu0
      %v999 = vadd.f32 0.0, %v998
      %v1000 = vpop.f32.mrb[0].mxu0
      %v1001 = vpop.f32.mrb[0].mxu0
      %v1002 = vadd.f32 0.0, %v1001
      %v1003 = vpop.f32.mrb[0].mxu0
      %1004 = vdwg.mxu0
      %1005 = vrot.lane.b32.xlu0 %v647, 120
      %v1006 = vpop.permute.xlu0 %1005
      %1007 = vrot.lane.b32.xlu0 %v648, 120
      %v1008 = vpop.permute.xlu0 %1007
      %v1012 = vsel %vm479, %v942, 0
      %v1015 = vsel %vm479, %v943, 0
      %1017 = vmatprep.subr.bf16.mxu0 0
      %1018 = vmatpush1.bf16.msra.mxu0 %v1006
      %1019 = vmatprep.subr.bf16.mxu0 0
      %1020 = vmatpush1.bf16.msra.mxu0 %v1008
      %1021 = vmatprep.subr.bf16.mxu0 0
      %1022 = vmatpush1.bf16.msra.mxu0 0
      %1023 = vmatprep.subr.bf16.mxu0 0
      %1024 = vmatpush1.bf16.msra.mxu0 0
      %1025 = vmatprep.subr.bf16.mxu0 0
      %1026 = vmatpush1.bf16.msra.mxu0 0
      %1027 = vmatprep.subr.bf16.mxu0 0
      %1028 = vmatpush1.bf16.msra.mxu0 0
      %1029 = vmatprep.subr.bf16.mxu0 0
      %1030 = vmatpush1.bf16.msra.mxu0 0
      %1031 = vmatprep.subr.bf16.mxu0 0
      %1032 = vmatpush1.bf16.msra.mxu0 0
      %1033 = vmatprep.subr.bf16.mxu0 0
      %1034 = vmatpush1.bf16.msra.mxu0 0
      %1035 = vmatprep.subr.bf16.mxu0 0
      %1036 = vmatpush1.bf16.msra.mxu0 0
      %1037 = vmatprep.subr.bf16.mxu0 0
      %1038 = vmatpush1.bf16.msra.mxu0 0
      %1039 = vmatprep.subr.bf16.mxu0 0
      %1040 = vmatpush1.bf16.msra.mxu0 0
      %1041 = vmatprep.subr.bf16.mxu0 0
      %1042 = vmatpush1.bf16.msra.mxu0 0
      %1043 = vmatprep.subr.bf16.mxu0 0
      %1044 = vmatpush1.bf16.msra.mxu0 0
      %1045 = vmatprep.subr.bf16.mxu0 0
      %1046 = vmatpush1.bf16.msra.mxu0 0
      %1047 = vmatprep.subr.bf16.mxu0 0
      %1048 = vmatpush1.bf16.msra.mxu0 0
      %1049 = vmatprep.mubr.bf16.mxu0 0
      %1050 = vmatmul.mubr.bf16.gmra.mrb[0].mxu0 %v1012
      %v1051 = vpop.f32.mrb[0].mxu0
      %v1052 = vadd.f32 0.0, %v1051
      %v1053 = vpop.f32.mrb[0].mxu0
      %v1054 = vpop.f32.mrb[0].mxu0
      %v1055 = vadd.f32 0.0, %v1054
      %v1056 = vpop.f32.mrb[0].mxu0
      %1057 = vmatprep.mubr.bf16.mxu0 0
      %1058 = vmatmul.mubr.bf16.gmra.mrb[0].mxu0 %v1015
      %v1059 = vpop.f32.mrb[0].mxu0
      %v1060 = vadd.f32 0.0, %v1059
      %v1061 = vpop.f32.mrb[0].mxu0
      %v1062 = vpop.f32.mrb[0].mxu0
      %v1063 = vadd.f32 0.0, %v1062
      %v1064 = vpop.f32.mrb[0].mxu0
      %1065 = vdwg.mxu0
      %1074 = vrot.lane.b32.xlu0 %v991, 8
      %v1075 = vpop.permute.xlu0 %1074
      %1076 = vrot.lane.b32.xlu0 %v994, 8
      %v1077 = vpop.permute.xlu0 %1076
      %1078 = vrot.lane.b32.xlu0 %v999, 8
      %v1079 = vpop.permute.xlu0 %1078
      %1080 = vrot.lane.b32.xlu0 %v1002, 8
      %v1081 = vpop.permute.xlu0 %1080
      %1082 = vrot.lane.b32.xlu0 %v1052, 8
      %v1083 = vpop.permute.xlu0 %1082
      %1084 = vrot.lane.b32.xlu0 %v1055, 8
      %v1085 = vpop.permute.xlu0 %1084
      %1086 = vrot.lane.b32.xlu0 %v1060, 8
      %v1087 = vpop.permute.xlu0 %1086
      %1088 = vrot.lane.b32.xlu0 %v1063, 8
      %v1089 = vpop.permute.xlu0 %1088
      %v1098 = vsel %vm328, %v625, %v1075
      %v1099 = vsel %vm328, %v628, %v1077
      %v1100 = vsel %vm328, %v633, %v1079
      %v1101 = vsel %vm328, %v636, %v1081
      %v1102 = vsel %vm328, %v692, %v1083
      %v1103 = vsel %vm328, %v695, %v1085
      %v1104 = vsel %vm328, %v700, %v1087
      %v1105 = vsel %vm328, %v703, %v1089
      %v1106 = vunpack.c.l.bf16 %v300
      %v1107 = vunpack.c.l.bf16 %v301
      %v1108 = vunpack.c.l.bf16 %v302
      %v1109 = vunpack.c.l.bf16 %v303
      %v1110 = vunpack.c.l.bf16 %v304
      %v1111 = vunpack.c.l.bf16 %v305
      %v1112 = vunpack.c.l.bf16 %v306
      %v1113 = vunpack.c.l.bf16 %v307
      %s1114 = scalar_lea.vmem %s3, 128
      %v1115 = vld [vmem:[%s1114] sm:$0xff]
      %v1116 = vld [vmem:[%s1114 + $0x8] sm:$0xff]
      %v1117 = vld [vmem:[%s1114 + $0x10] sm:$0xff]
      %v1118 = vld [vmem:[%s1114 + $0x18] sm:$0xff]
      %v1119 = vmul.f32 %v1106, %v1115
      %v1120 = vmul.f32 %v1107, %v1116
      %v1121 = vmul.f32 %v1108, %v1117
      %v1122 = vmul.f32 %v1109, %v1118
      %v1123 = vmul.f32 %v1110, %v1115
      %v1124 = vmul.f32 %v1111, %v1116
      %v1125 = vmul.f32 %v1112, %v1117
      %v1126 = vmul.f32 %v1113, %v1118
      %v1127 = vrot.slane %v1106, 7
      %v1128 = vrot.slane %v1110, 7
      %v1129 = vrot.slane %v1107, 7
      %v1130 = vrot.slane %v1111, 7
      %v1131 = vrot.slane %v1108, 7
      %v1132 = vrot.slane %v1112, 7
      %v1133 = vrot.slane %v1109, 7
      %v1134 = vrot.slane %v1113, 7
      %v1135 = vlaneseq
      %v1136 = vshrl.u32 %v1135, 7
      %vm1137 = vcmp.lt.s32.totalorder %v1136, 1
      %v1138 = vsel %vm1137, %v1131, %v1133
      %v1139 = vsel %vm1137, %v1132, %v1134
      %v1140 = vsel %vm1137, %v1129, %v1131
      %v1141 = vsel %vm1137, %v1130, %v1132
      %v1142 = vsel %vm1137, %v1127, %v1129
      %v1143 = vsel %vm1137, %v1128, %v1130
      %v1144 = vsel %vm1137, %v1133, %v1127
      %v1145 = vsel %vm1137, %v1134, %v1128
      %v1146 = vld [vmem:[%s3] sm:$0xff]
      %v1147 = vld [vmem:[%s3 + $0x8] sm:$0xff]
      %v1148 = vld [vmem:[%s3 + $0x10] sm:$0xff]
      %v1149 = vld [vmem:[%s3 + $0x18] sm:$0xff]
      %v1150 = vmul.f32 %v1138, %v1146
      %v1151 = vmul.f32 %v1144, %v1147
      %v1152 = vmul.f32 %v1142, %v1148
      %v1153 = vmul.f32 %v1140, %v1149
      %v1154 = vmul.f32 %v1139, %v1146
      %v1155 = vmul.f32 %v1145, %v1147
      %v1156 = vmul.f32 %v1143, %v1148
      %v1157 = vmul.f32 %v1141, %v1149
      %v1158 = vadd.f32 %v1119, %v1150
      %v1159 = vadd.f32 %v1120, %v1151
      %v1160 = vadd.f32 %v1121, %v1152
      %v1161 = vadd.f32 %v1122, %v1153
      %v1162 = vadd.f32 %v1123, %v1154
      %v1163 = vadd.f32 %v1124, %v1155
      %v1164 = vadd.f32 %v1125, %v1156
      %v1165 = vadd.f32 %v1126, %v1157
      %s1166 = scalar_lea.vmem %s3, 32
      %v1167 = vld [vmem:[%s1166] sm:$0xff]
      %v1168 = vld [vmem:[%s1166 + $0x8] sm:$0xff]
      %v1169 = vld [vmem:[%s1166 + $0x10] sm:$0xff]
      %v1170 = vld [vmem:[%s1166 + $0x18] sm:$0xff]
      %v1171 = vmul.f32 %v1109, %v1167
      %v1172 = vmul.f32 %v1106, %v1168
      %v1173 = vmul.f32 %v1107, %v1169
      %v1174 = vmul.f32 %v1108, %v1170
      %v1175 = vmul.f32 %v1113, %v1167
      %v1176 = vmul.f32 %v1110, %v1168
      %v1177 = vmul.f32 %v1111, %v1169
      %v1178 = vmul.f32 %v1112, %v1170
      %v1179 = vadd.f32 %v1158, %v1171
      %v1180 = vadd.f32 %v1159, %v1172
      %v1181 = vadd.f32 %v1160, %v1173
      %v1182 = vadd.f32 %v1161, %v1174
      %v1183 = vadd.f32 %v1162, %v1175
      %v1184 = vadd.f32 %v1163, %v1176
      %v1185 = vadd.f32 %v1164, %v1177
      %v1186 = vadd.f32 %v1165, %v1178
      %v1187 = vrot.slane %v1106, 1
      %v1188 = vrot.slane %v1110, 1
      %v1189 = vrot.slane %v1107, 1
      %v1190 = vrot.slane %v1111, 1
      %v1191 = vrot.slane %v1108, 1
      %v1192 = vrot.slane %v1112, 1
      %v1193 = vrot.slane %v1109, 1
      %v1194 = vrot.slane %v1113, 1
      %vm1195 = vcmp.lt.s32.totalorder %v1136, 7
      %v1196 = vsel %vm1195, %v1191, %v1193
      %v1197 = vsel %vm1195, %v1192, %v1194
      %v1198 = vsel %vm1195, %v1189, %v1191
      %v1199 = vsel %vm1195, %v1190, %v1192
      %v1200 = vsel %vm1195, %v1187, %v1189
      %v1201 = vsel %vm1195, %v1188, %v1190
      %v1202 = vsel %vm1195, %v1193, %v1187
      %v1203 = vsel %vm1195, %v1194, %v1188
      %s1204 = scalar_lea.vmem %s3, 64
      %v1205 = vld [vmem:[%s1204] sm:$0xff]
      %v1206 = vld [vmem:[%s1204 + $0x8] sm:$0xff]
      %v1207 = vld [vmem:[%s1204 + $0x10] sm:$0xff]
      %v1208 = vld [vmem:[%s1204 + $0x18] sm:$0xff]
      %v1209 = vmul.f32 %v1202, %v1205
      %v1210 = vmul.f32 %v1200, %v1206
      %v1211 = vmul.f32 %v1198, %v1207
      %v1212 = vmul.f32 %v1196, %v1208
      %v1213 = vmul.f32 %v1203, %v1205
      %v1214 = vmul.f32 %v1201, %v1206
      %v1215 = vmul.f32 %v1199, %v1207
      %v1216 = vmul.f32 %v1197, %v1208
      %v1217 = vadd.f32 %v1179, %v1209
      %v1218 = vadd.f32 %v1180, %v1210
      %v1219 = vadd.f32 %v1181, %v1211
      %v1220 = vadd.f32 %v1182, %v1212
      %v1221 = vadd.f32 %v1183, %v1213
      %v1222 = vadd.f32 %v1184, %v1214
      %v1223 = vadd.f32 %v1185, %v1215
      %v1224 = vadd.f32 %v1186, %v1216
      %s1225 = scalar_lea.vmem %s3, 96
      %v1226 = vld [vmem:[%s1225] sm:$0xff]
      %v1227 = vld [vmem:[%s1225 + $0x8] sm:$0xff]
      %v1228 = vld [vmem:[%s1225 + $0x10] sm:$0xff]
      %v1229 = vld [vmem:[%s1225 + $0x18] sm:$0xff]
      %v1230 = vmul.f32 %v1144, %v1226
      %v1231 = vmul.f32 %v1142, %v1227
      %v1232 = vmul.f32 %v1140, %v1228
      %v1233 = vmul.f32 %v1138, %v1229
      %v1234 = vmul.f32 %v1145, %v1226
      %v1235 = vmul.f32 %v1143, %v1227
      %v1236 = vmul.f32 %v1141, %v1228
      %v1237 = vmul.f32 %v1139, %v1229
      %v1238 = vadd.f32 %v1217, %v1230
      %v1239 = vadd.f32 %v1218, %v1231
      %v1240 = vadd.f32 %v1219, %v1232
      %v1241 = vadd.f32 %v1220, %v1233
      %v1242 = vadd.f32 %v1221, %v1234
      %v1243 = vadd.f32 %v1222, %v1235
      %v1244 = vadd.f32 %v1223, %v1236
      %v1245 = vadd.f32 %v1224, %v1237
      %s1246 = scalar_lea.vmem %s3, 160
      %v1247 = vld [vmem:[%s1246] sm:$0xff]
      %v1248 = vld [vmem:[%s1246 + $0x8] sm:$0xff]
      %v1249 = vld [vmem:[%s1246 + $0x10] sm:$0xff]
      %v1250 = vld [vmem:[%s1246 + $0x18] sm:$0xff]
      %v1251 = vmul.f32 %v1200, %v1247
      %v1252 = vmul.f32 %v1198, %v1248
      %v1253 = vmul.f32 %v1196, %v1249
      %v1254 = vmul.f32 %v1202, %v1250
      %v1255 = vmul.f32 %v1201, %v1247
      %v1256 = vmul.f32 %v1199, %v1248
      %v1257 = vmul.f32 %v1197, %v1249
      %v1258 = vmul.f32 %v1203, %v1250
      %v1259 = vadd.f32 %v1238, %v1251
      %v1260 = vadd.f32 %v1239, %v1252
      %v1261 = vadd.f32 %v1240, %v1253
      %v1262 = vadd.f32 %v1241, %v1254
      %v1263 = vadd.f32 %v1242, %v1255
      %v1264 = vadd.f32 %v1243, %v1256
      %v1265 = vadd.f32 %v1244, %v1257
      %v1266 = vadd.f32 %v1245, %v1258
      %s1267 = scalar_lea.vmem %s3, 192
      %v1268 = vld [vmem:[%s1267] sm:$0xff]
      %v1269 = vld [vmem:[%s1267 + $0x8] sm:$0xff]
      %v1270 = vld [vmem:[%s1267 + $0x10] sm:$0xff]
      %v1271 = vld [vmem:[%s1267 + $0x18] sm:$0xff]
      %v1272 = vmul.f32 %v1142, %v1268
      %v1273 = vmul.f32 %v1140, %v1269
      %v1274 = vmul.f32 %v1138, %v1270
      %v1275 = vmul.f32 %v1144, %v1271
      %v1276 = vmul.f32 %v1143, %v1268
      %v1277 = vmul.f32 %v1141, %v1269
      %v1278 = vmul.f32 %v1139, %v1270
      %v1279 = vmul.f32 %v1145, %v1271
      %v1280 = vadd.f32 %v1259, %v1272
      %v1281 = vadd.f32 %v1260, %v1273
      %v1282 = vadd.f32 %v1261, %v1274
      %v1283 = vadd.f32 %v1262, %v1275
      %v1284 = vadd.f32 %v1263, %v1276
      %v1285 = vadd.f32 %v1264, %v1277
      %v1286 = vadd.f32 %v1265, %v1278
      %v1287 = vadd.f32 %v1266, %v1279
      %s1288 = scalar_lea.vmem %s3, 224
      %v1289 = vld [vmem:[%s1288] sm:$0xff]
      %v1290 = vld [vmem:[%s1288 + $0x8] sm:$0xff]
      %v1291 = vld [vmem:[%s1288 + $0x10] sm:$0xff]
      %v1292 = vld [vmem:[%s1288 + $0x18] sm:$0xff]
      %v1293 = vmul.f32 %v1107, %v1289
      %v1294 = vmul.f32 %v1108, %v1290
      %v1295 = vmul.f32 %v1109, %v1291
      %v1296 = vmul.f32 %v1106, %v1292
      %v1297 = vmul.f32 %v1111, %v1289
      %v1298 = vmul.f32 %v1112, %v1290
      %v1299 = vmul.f32 %v1113, %v1291
      %v1300 = vmul.f32 %v1110, %v1292
      %v1301 = vadd.f32 %v1280, %v1293
      %v1302 = vadd.f32 %v1281, %v1294
      %v1303 = vadd.f32 %v1282, %v1295
      %v1304 = vadd.f32 %v1283, %v1296
      %v1305 = vadd.f32 %v1284, %v1297
      %v1306 = vadd.f32 %v1285, %v1298
      %v1307 = vadd.f32 %v1286, %v1299
      %v1308 = vadd.f32 %v1287, %v1300
      %s1309 = scalar_lea.vmem %s3, 256
      %v1310 = vld [vmem:[%s1309] sm:$0xff]
      %v1311 = vld [vmem:[%s1309 + $0x8] sm:$0xff]
      %v1312 = vld [vmem:[%s1309 + $0x10] sm:$0xff]
      %v1313 = vld [vmem:[%s1309 + $0x18] sm:$0xff]
      %v1314 = vmul.f32 %v1198, %v1310
      %v1315 = vmul.f32 %v1196, %v1311
      %v1316 = vmul.f32 %v1202, %v1312
      %v1317 = vmul.f32 %v1200, %v1313
      %v1318 = vmul.f32 %v1199, %v1310
      %v1319 = vmul.f32 %v1197, %v1311
      %v1320 = vmul.f32 %v1203, %v1312
      %v1321 = vmul.f32 %v1201, %v1313
      %v1322 = vadd.f32 %v1301, %v1314
      %v1323 = vadd.f32 %v1302, %v1315
      %v1324 = vadd.f32 %v1303, %v1316
      %v1325 = vadd.f32 %v1304, %v1317
      %v1326 = vadd.f32 %v1305, %v1318
      %v1327 = vadd.f32 %v1306, %v1319
      %v1328 = vadd.f32 %v1307, %v1320
      %v1329 = vadd.f32 %v1308, %v1321
      %v1330 = vld [vmem:[%s4] sm:$0x1]
      %v1332 = vlaneseq
      %v1333 = vshrl.u32 %v1332, 7
      %v1334 = vsub.s32 0, %v1333
      %v1335 = vrot.slane %v1330, %v1334
      %v1337 = vadd.f32 %v1322, %v1335
      %v1338 = vadd.f32 %v1323, %v1335
      %v1339 = vadd.f32 %v1324, %v1335
      %v1340 = vadd.f32 %v1325, %v1335
      %v1341 = vadd.f32 %v1326, %v1335
      %v1342 = vadd.f32 %v1327, %v1335
      %v1343 = vadd.f32 %v1328, %v1335
      %v1344 = vadd.f32 %v1329, %v1335
      %v1345 = vadd.f32 %v1098, %v1337
      %v1346 = vadd.f32 %v1099, %v1338
      %v1347 = vadd.f32 %v1100, %v1339
      %v1348 = vadd.f32 %v1101, %v1340
      %v1349 = vadd.f32 %v1102, %v1341
      %v1350 = vadd.f32 %v1103, %v1342
      %v1351 = vadd.f32 %v1104, %v1343
      %v1352 = vadd.f32 %v1105, %v1344
      %v1353 = vpack.c.bf16 %v1346, %v1345
      %v1354 = vpack.c.bf16 %v1348, %v1347
      %v1355 = vpack.c.bf16 %v1350, %v1349
      %v1356 = vpack.c.bf16 %v1352, %v1351
      %v1361 = vunpack.c.l.b16 %v1353
      %v1362 = vunpack.c.h.b16 %v1353
      %v1363 = vunpack.c.l.b16 %v1354
      %v1364 = vunpack.c.h.b16 %v1354
      %v1365 = vunpack.c.l.b16 %v1355
      %v1366 = vunpack.c.h.b16 %v1355
      %v1367 = vunpack.c.l.b16 %v1356
      %v1368 = vunpack.c.h.b16 %v1356
      %v1369 = vpack.c.b16 %v1361, %v1361
      %v1370 = vpack.c.b16 %v1362, %v1362
      %v1371 = vpack.c.b16 %v1363, %v1363
      %v1372 = vpack.c.b16 %v1364, %v1364
      %v1373 = vpack.c.b16 %v1365, %v1365
      %v1374 = vpack.c.b16 %v1366, %v1366
      %v1375 = vpack.c.b16 %v1367, %v1367
      %v1376 = vpack.c.b16 %v1368, %v1368
      %vm1385 = vcmask 125952
      %1386 = vst.msk [vmem:[%s281] sm:$0xf] %vm1385, %v1369
      %1387 = vst.msk [vmem:[%s281 + $0x4] sm:$0xf] %vm1385, %v1370
      %1388 = vst.msk [vmem:[%s281 + $0x8] sm:$0xf] %vm1385, %v1371
      %1389 = vst.msk [vmem:[%s281 + $0xc] sm:$0xf] %vm1385, %v1372
      %1390 = vst.msk [vmem:[%s281 + $0x10] sm:$0xf] %vm1385, %v1373
      %1391 = vst.msk [vmem:[%s281 + $0x14] sm:$0xf] %vm1385, %v1374
      %1392 = vst.msk [vmem:[%s281 + $0x18] sm:$0xf] %vm1385, %v1375
      %1393 = vst.msk [vmem:[%s281 + $0x1c] sm:$0xf] %vm1385, %v1376
      %s1394 = smul.u32 2, %s16
      %p1395 = scmp.lt.s32.totalorder %s1394, 3
      %s1396 = scalar_select %p1395, %s1394, 3
      %s1397 = smul.addr %s1396, 4
      %s1398 = smul.addr %s1397, 4
      %s1399 = scalar_lea.vmem %s5, %s1398
      // Predicated region
      $region41: #{cswin_block.6} parent=39 // pred_check
        %p1400 = pneg %p154
      $region42: #{cswin_block.6} parent=39 // pred_check_branch
        %1402 = sbr.rel (%p1400) target = $region44
      $region43: #{cswin_block.6} parent=39 // pred_region
        %s1403 = smul.u32 2, %s16
      $region44: #{cswin_block.6} parent=39 // pred_fallthru
        _
    $region40: #{cswin_block.6} parent=5 // pred_fallthru
      _
    %p1404 = scmp.le.s32.totalorder 2, %s11
    // Predicated region
    $region45: #{cswin_block.6} parent=5 // pred_check
      %p1405 = pneg %p1404
    $region46: #{cswin_block.6} parent=5 // pred_check_branch
      %1407 = sbr.rel (%p1405) target = $region48
    $region47: #{cswin_block.6} parent=5 // pred_region
      %s1408 = ssub.s32 %s11, 2
      // Predicated region
      $region49: #{cswin_block.6} parent=47 // pred_check
        %p1409 = pneg %p160
      $region50: #{cswin_block.6} parent=47 // pred_check_branch
        %1411 = sbr.rel (%p1409) target = $region52
      $region51: #{cswin_block.6} parent=47 // pred_region
        %s1412 = smul.u32 2, %s17
        %p1413 = scmp.lt.s32.totalorder %s1412, 3
        %s1414 = scalar_select %p1413, %s1412, 3
        %s1415 = smul.addr %s1414, 4
        %s1416 = smul.addr %s1415, 4
        %s1417 = scalar_lea.vmem %s5, %s1416
      $region52: #{cswin_block.6} parent=47 // pred_fallthru
        _
    $region48: #{cswin_block.6} parent=5 // pred_fallthru
      _
  $region6: #{cswin_block.6} parent=0 // loop_footer
    %s15 = sadd.s32 1, %s11
  $region7: #{cswin_block.6} parent=0 // loop_footer_branch
    %10 = sbr.rel target = $region3
  $region8: #{cswin_block.6} parent=0 // loop_exit
    _

// kernel: cswin_block.5
$region0: #{cswin_block.5}
  #allocation0 [shape = 'u32[]', space=smem, size = 0x4, offset = 0x4, fixed_abs, tag = 'smem constant byte address 0x4 - core index']
  #allocation1 [shape = 'u32[144,128]{1,0:T(1,128)}', space=vmem, size = 0x12000, scoped, tag = 'internal scratch']
  %s0 = inlined_call_operand.vmem [shape: bf16[4,32,16], index: 0, kind: input, shape index: {}]
  %s1 = inlined_call_operand.vmem [shape: bf16[4,32,16], index: 1, kind: input, shape index: {}]
  %s2 = inlined_call_operand.vmem [shape: bf16[4,32,16], index: 2, kind: input, shape index: {}]
  %s3 = inlined_call_operand.vmem [shape: f32[9,32,16], index: 3, kind: input, shape index: {}]
  %s4 = inlined_call_operand.vmem [shape: f32[1,16], index: 4, kind: input, shape index: {}]
  %s5 = inlined_call_operand.vmem [shape: bf16[4,32,16], index: 5, kind: output, shape index: {}]
  %s6 = sld [smem:[#allocation0]]
  $region53: #{cswin_block.5} parent=0
    _
  %s8 = ssub.s32 1, %s6
  %s9 = scalar_select 0, %s8, %s6
  loop: start=0, step=1, limit=4
  $region2: #{cswin_block.5} parent=0 // loop_pre_header
    _
  $region3: #{cswin_block.5} parent=0 // loop_header
    %s11 = sphi 0, %s15
    %p12 = scmp.ge.s32.totalorder %s11, 4
    %s21 = sphi 0, %s23
    %s24 = sphi 0, %s21
    %s25 = sphi 0, %s24
    %s41 = sphi 0, %s25
    %s47 = sphi 0, %s49
    %s50 = sphi 0, %s47
    %s51 = sphi 0, %s50
    %s67 = sphi 0, %s51
    %s73 = sphi 0, %s75
    %s76 = sphi 0, %s73
    %s77 = sphi 0, %s76
    %s93 = sphi 0, %s77
    %s97 = sphi 0, %s97
    %s99 = sphi 0, %s97
    %s100 = sphi 0, %s99
    %s114 = sphi 0, %s100
    %s118 = sphi 0, %s118
    %s120 = sphi 0, %s118
    %s121 = sphi 0, %s120
    %s135 = sphi 0, %s121
    %s141 = sphi 0, %s143
    %s144 = sphi 0, %s141
    %s145 = sphi 0, %s144
    %s161 = sphi 0, %s145
  $region4: #{cswin_block.5} parent=0 // loop_header_branch
    %14 = sbr.rel (%p12) target = $region8
  $region5: #{cswin_block.5} parent=0 // loop_body
    %s16 = ssub.s32 %s11, 1
    %s17 = ssub.s32 %s11, 2
    %s18 = sadd.s32 %s11, 1
    %s19 = ssub.s32 %s11, %s18
    %p20 = scmp.eq.s32.totalorder %s19, 0
    %s22 = sadd.s32 %s21, 1
    %s23 = scalar_select %p20, %s21, %s22
    %p26 = pneg %p20
    %p27 = scmp.eq.s32.totalorder %s11, 1
    %p28 = por %p26, %p27
    %p29 = scmp.ne.s32.totalorder %s21, %s24
    %p30 = scmp.eq.s32.totalorder %s11, 0
    %p31 = por %p29, %p30
    %p32 = scmp.ne.s32.totalorder %s21, %s24
    %p33 = scmp.eq.s32.totalorder %s16, 1
    %p34 = por %p32, %p33
    %p35 = scmp.ne.s32.totalorder %s24, %s25
    %p36 = scmp.eq.s32.totalorder %s16, 0
    %p37 = por %p35, %p36
    %p38 = scmp.ne.s32.totalorder %s24, %s25
    %p39 = scmp.eq.s32.totalorder %s17, 1
    %p40 = por %p38, %p39
    %p42 = scmp.ne.s32.totalorder %s25, %s41
    %p43 = scmp.eq.s32.totalorder %s17, 0
    %p44 = por %p42, %p43
    %s45 = ssub.s32 %s11, %s18
    %p46 = scmp.eq.s32.totalorder %s45, 0
    %s48 = sadd.s32 %s47, 1
    %s49 = scalar_select %p46, %s47, %s48
    %p52 = pneg %p46
    %p53 = scmp.eq.s32.totalorder %s11, 1
    %p54 = por %p52, %p53
    %p55 = scmp.ne.s32.totalorder %s47, %s50
    %p56 = scmp.eq.s32.totalorder %s11, 0
    %p57 = por %p55, %p56
    %p58 = scmp.ne.s32.totalorder %s47, %s50
    %p59 = scmp.eq.s32.totalorder %s16, 1
    %p60 = por %p58, %p59
    %p61 = scmp.ne.s32.totalorder %s50, %s51
    %p62 = scmp.eq.s32.totalorder %s16, 0
    %p63 = por %p61, %p62
    %p64 = scmp.ne.s32.totalorder %s50, %s51
    %p65 = scmp.eq.s32.totalorder %s17, 1
    %p66 = por %p64, %p65
    %p68 = scmp.ne.s32.totalorder %s51, %s67
    %p69 = scmp.eq.s32.totalorder %s17, 0
    %p70 = por %p68, %p69
    %s71 = ssub.s32 %s11, %s18
    %p72 = scmp.eq.s32.totalorder %s71, 0
    %s74 = sadd.s32 %s73, 1
    %s75 = scalar_select %p72, %s73, %s74
    %p78 = pneg %p72
    %p79 = scmp.eq.s32.totalorder %s11, 1
    %p80 = por %p78, %p79
    %p81 = scmp.ne.s32.totalorder %s73, %s76
    %p82 = scmp.eq.s32.totalorder %s11, 0
    %p83 = por %p81, %p82
    %p84 = scmp.ne.s32.totalorder %s73, %s76
    %p85 = scmp.eq.s32.totalorder %s16, 1
    %p86 = por %p84, %p85
    %p87 = scmp.ne.s32.totalorder %s76, %s77
    %p88 = scmp.eq.s32.totalorder %s16, 0
    %p89 = por %p87, %p88
    %p90 = scmp.ne.s32.totalorder %s76, %s77
    %p91 = scmp.eq.s32.totalorder %s17, 1
    %p92 = por %p90, %p91
    %p94 = scmp.ne.s32.totalorder %s77, %s93
    %p95 = scmp.eq.s32.totalorder %s17, 0
    %p96 = por %p94, %p95
    %s98 = sadd.s32 %s97, 1
    %p101 = scmp.eq.s32.totalorder %s11, 1
    %p102 = scmp.ne.s32.totalorder %s97, %s99
    %p103 = scmp.eq.s32.totalorder %s11, 0
    %p104 = por %p102, %p103
    %p105 = scmp.ne.s32.totalorder %s97, %s99
    %p106 = scmp.eq.s32.totalorder %s16, 1
    %p107 = por %p105, %p106
    %p108 = scmp.ne.s32.totalorder %s99, %s100
    %p109 = scmp.eq.s32.totalorder %s16, 0
    %p110 = por %p108, %p109
    %p111 = scmp.ne.s32.totalorder %s99, %s100
    %p112 = scmp.eq.s32.totalorder %s17, 1
    %p113 = por %p111, %p112
    %p115 = scmp.ne.s32.totalorder %s100, %s114
    %p116 = scmp.eq.s32.totalorder %s17, 0
    %p117 = por %p115, %p116
    %s119 = sadd.s32 %s118, 1
    %p122 = scmp.eq.s32.totalorder %s11, 1
    %p123 = scmp.ne.s32.totalorder %s118, %s120
    %p124 = scmp.eq.s32.totalorder %s11, 0
    %p125 = por %p123, %p124
    %p126 = scmp.ne.s32.totalorder %s118, %s120
    %p127 = scmp.eq.s32.totalorder %s16, 1
    %p128 = por %p126, %p127
    %p129 = scmp.ne.s32.totalorder %s120, %s121
    %p130 = scmp.eq.s32.totalorder %s16, 0
    %p131 = por %p129, %p130
    %p132 = scmp.ne.s32.totalorder %s120, %s121
    %p133 = scmp.eq.s32.totalorder %s17, 1
    %p134 = por %p132, %p133
    %p136 = scmp.ne.s32.totalorder %s121, %s135
    %p137 = scmp.eq.s32.totalorder %s17, 0
    %p138 = por %p136, %p137
    %s139 = ssub.s32 %s11, %s18
    %p140 = scmp.eq.s32.totalorder %s139, 0
    %s142 = sadd.s32 %s141, 1
    %s143 = scalar_select %p140, %s141, %s142
    %p146 = pneg %p140
    %p147 = scmp.eq.s32.totalorder %s11, 1
    %p148 = por %p146, %p147
    %p149 = scmp.ne.s32.totalorder %s141, %s144
    %p150 = scmp.eq.s32.totalorder %s11, 0
    %p151 = por %p149, %p150
    %p152 = scmp.ne.s32.totalorder %s141, %s144
    %p153 = scmp.eq.s32.totalorder %s16, 1
    %p154 = por %p152, %p153
    %p155 = scmp.ne.s32.totalorder %s144, %s145
    %p156 = scmp.eq.s32.totalorder %s16, 0
    %p157 = por %p155, %p156
    %p158 = scmp.ne.s32.totalorder %s144, %s145
    %p159 = scmp.eq.s32.totalorder %s17, 1
    %p160 = por %p158, %p159
    %p162 = scmp.ne.s32.totalorder %s145, %s161
    %p163 = scmp.eq.s32.totalorder %s17, 0
    %p164 = por %p162, %p163
    %p165 = scmp.le.s32.totalorder 1, %s11
    %p166 = scmp.lt.s32.totalorder %s11, 3
    %p167 = pnand %p165, %p166
    %p168 = pneg %p167
    // Predicated region
    $region9: #{cswin_block.5} parent=5 // pred_check
      _
    $region10: #{cswin_block.5} parent=5 // pred_check_branch
      %170 = sbr.rel (%p167) target = $region12
    $region11: #{cswin_block.5} parent=5 // pred_region
      %s171 = ssub.s32 %s11, 1
      // Predicated region
      $region13: #{cswin_block.5} parent=11 // pred_check
        %p172 = pneg %p110
      $region14: #{cswin_block.5} parent=11 // pred_check_branch
        %174 = sbr.rel (%p172) target = $region16
      $region15: #{cswin_block.5} parent=11 // pred_region
        _
      $region16: #{cswin_block.5} parent=11 // pred_fallthru
        _
      // Predicated region
      $region17: #{cswin_block.5} parent=11 // pred_check
        %p175 = pneg %p131
      $region18: #{cswin_block.5} parent=11 // pred_check_branch
        %177 = sbr.rel (%p175) target = $region20
      $region19: #{cswin_block.5} parent=11 // pred_region
        _
      $region20: #{cswin_block.5} parent=11 // pred_fallthru
        _
    $region12: #{cswin_block.5} parent=5 // pred_fallthru
      _
    %p178 = scmp.lt.s32.totalorder %s11, 2
    // Predicated region
    $region21: #{cswin_block.5} parent=5 // pred_check
      %p179 = pneg %p178
    $region22: #{cswin_block.5} parent=5 // pred_check_branch
      %181 = sbr.rel (%p179) target = $region24
    $region23: #{cswin_block.5} parent=5 // pred_region
      // Predicated region
      $region25: #{cswin_block.5} parent=23 // pred_check
        %p182 = pneg %p31
      $region26: #{cswin_block.5} parent=23 // pred_check_branch
        %184 = sbr.rel (%p182) target = $region28
      $region27: #{cswin_block.5} parent=23 // pred_region
        %s185 = smul.u32 2, %s11
        %p186 = scmp.lt.s32.totalorder %s185, 3
        %s187 = scalar_select %p186, %s185, 3
        %s188 = smul.addr %s187, 4
        %s189 = smul.addr %s188, 4
        %s190 = scalar_lea.vmem %s0, %s189
        %s191 = smul.u32 2, %s11
      $region28: #{cswin_block.5} parent=23 // pred_fallthru
        _
      // Predicated region
      $region29: #{cswin_block.5} parent=23 // pred_check
        %p192 = pneg %p57
      $region30: #{cswin_block.5} parent=23 // pred_check_branch
        %194 = sbr.rel (%p192) target = $region32
      $region31: #{cswin_block.5} parent=23 // pred_region
        %s195 = smul.u32 2, %s11
        %p196 = scmp.lt.s32.totalorder %s195, 3
        %s197 = scalar_select %p196, %s195, 3
        %s198 = smul.addr %s197, 4
        %s199 = smul.addr %s198, 4
        %s200 = scalar_lea.vmem %s1, %s199
        %s201 = smul.u32 2, %s11
      $region32: #{cswin_block.5} parent=23 // pred_fallthru
        _
      // Predicated region
      $region33: #{cswin_block.5} parent=23 // pred_check
        %p202 = pneg %p83
      $region34: #{cswin_block.5} parent=23 // pred_check_branch
        %204 = sbr.rel (%p202) target = $region36
      $region35: #{cswin_block.5} parent=23 // pred_region
        %s205 = smul.u32 2, %s11
        %p206 = scmp.lt.s32.totalorder %s205, 3
        %s207 = scalar_select %p206, %s205, 3
        %s208 = smul.addr %s207, 4
        %s209 = smul.addr %s208, 4
        %s210 = scalar_lea.vmem %s2, %s209
        %s211 = smul.u32 2, %s11
      $region36: #{cswin_block.5} parent=23 // pred_fallthru
        _
    $region24: #{cswin_block.5} parent=5 // pred_fallthru
      _
    %p212 = scmp.le.s32.totalorder 1, %s11
    %p213 = scmp.lt.s32.totalorder %s11, 3
    %p214 = pnand %p212, %p213
    %p215 = pneg %p214
    // Predicated region
    $region37: #{cswin_block.5} parent=5 // pred_check
      _
    $region38: #{cswin_block.5} parent=5 // pred_check_branch
      %217 = sbr.rel (%p214) target = $region40
    $region39: #{cswin_block.5} parent=5 // pred_region
      %s218 = ssub.s32 %s11, 1
      %s219 = smul.u32 2, %s16
      %p220 = scmp.lt.s32.totalorder %s219, 3
      %s221 = scalar_select %p220, %s219, 3
      %s222 = smul.addr %s221, 4
      %s223 = smul.addr %s222, 4
      %s224 = scalar_lea.vmem %s0, %s223
      %p225 = pneg %p37
      %p226 = pneg %p34
      %s227 = smul.u32 2, %s16
      %p228 = scmp.lt.s32.totalorder %s227, 3
      %s229 = scalar_select %p228, %s227, 3
      %s230 = smul.addr %s229, 4
      %s231 = smul.addr %s230, 4
      %s232 = scalar_lea.vmem %s1, %s231
      %p233 = pneg %p63
      %p234 = pneg %p60
      %s235 = smul.u32 2, %s16
      %p236 = scmp.lt.s32.totalorder %s235, 3
      %s237 = scalar_select %p236, %s235, 3
      %s238 = smul.addr %s237, 4
      %s239 = smul.addr %s238, 4
      %s240 = scalar_lea.vmem %s2, %s239
      %p241 = pneg %p89
      %p242 = pneg %p86
      %p243 = pneg %p110
      %p244 = pneg %p107
      %p245 = pneg %p131
      %p246 = pneg %p128
      %p247 = pneg %p157
      %p248 = pneg %p154
      %s249 = smul.u32 2, %s16
      %p250 = scmp.lt.s32.totalorder %s249, 3
      %s251 = scalar_select %p250, %s249, 3
      %s252 = smul.addr %s251, 4
      %s253 = smul.addr %s252, 4
      %s254 = scalar_lea.vmem %s5, %s253
      %s255 = smul.u32 2, %s16
      %p256 = scmp.lt.s32.totalorder %s255, 3
      %s257 = scalar_select %p256, %s255, 3
      %s258 = smul.addr %s257, 4
      %s259 = smul.addr %s258, 4
      %s260 = scalar_lea.vmem %s0, %s259
      %s261 = smul.u32 2, %s16
      %s262 = smul.u32 2, %s16
      %p263 = scmp.lt.s32.totalorder %s262, 3
      %s264 = scalar_select %p263, %s262, 3
      %s265 = smul.addr %s264, 4
      %s266 = smul.addr %s265, 4
      %s267 = scalar_lea.vmem %s1, %s266
      %s268 = smul.u32 2, %s16
      %s269 = smul.u32 2, %s16
      %p270 = scmp.lt.s32.totalorder %s269, 3
      %s271 = scalar_select %p270, %s269, 3
      %s272 = smul.addr %s271, 4
      %s273 = smul.addr %s272, 4
      %s274 = scalar_lea.vmem %s2, %s273
      %s275 = smul.u32 2, %s16
      %s276 = smul.u32 2, %s16
      %p277 = scmp.lt.s32.totalorder %s276, 3
      %s278 = scalar_select %p277, %s276, 3
      %s279 = smul.addr %s278, 4
      %s280 = smul.addr %s279, 4
      %s281 = scalar_lea.vmem %s5, %s280
      %s282 = smul.u32 2, %s16
      %v284 = vld [vmem:[%s260] sm:$0xf]
      %v285 = vld [vmem:[%s260 + $0x4] sm:$0xf]
      %v286 = vld [vmem:[%s260 + $0x8] sm:$0xf]
      %v287 = vld [vmem:[%s260 + $0xc] sm:$0xf]
      %v288 = vld [vmem:[%s260 + $0x10] sm:$0xf]
      %v289 = vld [vmem:[%s260 + $0x14] sm:$0xf]
      %v290 = vld [vmem:[%s260 + $0x18] sm:$0xf]
      %v291 = vld [vmem:[%s260 + $0x1c] sm:$0xf]
      %v292 = vld [vmem:[%s267] sm:$0xf]
      %v293 = vld [vmem:[%s267 + $0x4] sm:$0xf]
      %v294 = vld [vmem:[%s267 + $0x8] sm:$0xf]
      %v295 = vld [vmem:[%s267 + $0xc] sm:$0xf]
      %v296 = vld [vmem:[%s267 + $0x10] sm:$0xf]
      %v297 = vld [vmem:[%s267 + $0x14] sm:$0xf]
      %v298 = vld [vmem:[%s267 + $0x18] sm:$0xf]
      %v299 = vld [vmem:[%s267 + $0x1c] sm:$0xf]
      %v300 = vld [vmem:[%s274] sm:$0xf]
      %v301 = vld [vmem:[%s274 + $0x4] sm:$0xf]
      %v302 = vld [vmem:[%s274 + $0x8] sm:$0xf]
      %v303 = vld [vmem:[%s274 + $0xc] sm:$0xf]
      %v304 = vld [vmem:[%s274 + $0x10] sm:$0xf]
      %v305 = vld [vmem:[%s274 + $0x14] sm:$0xf]
      %v306 = vld [vmem:[%s274 + $0x18] sm:$0xf]
      %v307 = vld [vmem:[%s274 + $0x1c] sm:$0xf]
      %v312 = vunpack.c.l.b16 %v284
      %v313 = vunpack.c.l.b16 %v285
      %v314 = vunpack.c.l.b16 %v286
      %v315 = vunpack.c.l.b16 %v287
      %v316 = vpack.c.b16 %v313, %v312
      %v317 = vpack.c.b16 %v315, %v314
      %v322 = vunpack.c.l.b16 %v292
      %v323 = vunpack.c.l.b16 %v293
      %v324 = vunpack.c.l.b16 %v294
      %v325 = vunpack.c.l.b16 %v295
      %v326 = vpack.c.b16 %v323, %v322
      %v327 = vpack.c.b16 %v325, %v324
      %vm328 = vcmask 64512
      %v330 = vsel %vm328, %v316, 0
      %v333 = vsel %vm328, %v317, 0
      %v336 = vsel %vm328, %v326, 0
      %v339 = vsel %vm328, %v327, 0
      %341 = vmatprep.subr.bf16.mxu0 0
      %342 = vmatpush1.bf16.xpose.msra.mxu0 %v336
      %343 = vmatprep.subr.bf16.mxu0 0
      %344 = vmatpush1.bf16.xpose.msra.mxu0 %v339
      %345 = vmatprep.subr.bf16.mxu0 0
      %346 = vmatpush1.bf16.xpose.msra.mxu0 0
      %347 = vmatprep.subr.bf16.mxu0 0
      %348 = vmatpush1.bf16.xpose.msra.mxu0 0
      %349 = vmatprep.subr.bf16.mxu0 0
      %350 = vmatpush1.bf16.xpose.msra.mxu0 0
      %351 = vmatprep.subr.bf16.mxu0 0
      %352 = vmatpush1.bf16.xpose.msra.mxu0 0
      %353 = vmatprep.subr.bf16.mxu0 0
      %354 = vmatpush1.bf16.xpose.msra.mxu0 0
      %355 = vmatprep.subr.bf16.mxu0 0
      %356 = vmatpush1.bf16.xpose.msra.mxu0 0
      %357 = vmatprep.subr.bf16.mxu0 0
      %358 = vmatpush1.bf16.xpose.msra.mxu0 0
      %359 = vmatprep.subr.bf16.mxu0 0
      %360 = vmatpush1.bf16.xpose.msra.mxu0 0
      %361 = vmatprep.subr.bf16.mxu0 0
      %362 = vmatpush1.bf16.xpose.msra.mxu0 0
      %363 = vmatprep.subr.bf16.mxu0 0
      %364 = vmatpush1.bf16.xpose.msra.mxu0 0
      %365 = vmatprep.subr.bf16.mxu0 0
      %366 = vmatpush1.bf16.xpose.msra.mxu0 0
      %367 = vmatprep.subr.bf16.mxu0 0
      %368 = vmatpush1.bf16.xpose.msra.mxu0 0
      %369 = vmatprep.subr.bf16.mxu0 0
      %370 = vmatpush1.bf16.xpose.msra.mxu0 0
      %371 = vmatprep.subr.bf16.mxu0 0
      %372 = vmatpush1.bf16.xpose.msra.mxu0 0
      %373 = vmatprep.mubr.bf16.mxu0 0
      %374 = vmatmul.mubr.bf16.gmra.mrb[0].mxu0 %v330
      %v375 = vpop.f32.mrb[0].mxu0
      %v376 = vadd.f32 0.0, %v375
      %v377 = vpop.f32.mrb[0].mxu0
      %v378 = vpop.f32.mrb[0].mxu0
      %v379 = vadd.f32 0.0, %v378
      %v380 = vpop.f32.mrb[0].mxu0
      %381 = vmatprep.mubr.bf16.mxu0 0
      %382 = vmatmul.mubr.bf16.gmra.mrb[0].mxu0 %v333
      %v383 = vpop.f32.mrb[0].mxu0
      %v384 = vadd.f32 0.0, %v383
      %v385 = vpop.f32.mrb[0].mxu0
      %v386 = vpop.f32.mrb[0].mxu0
      %v387 = vadd.f32 0.0, %v386
      %v388 = vpop.f32.mrb[0].mxu0
      %389 = vdwg.mxu0
      %v394 = vunpack.c.l.b16 %v288
      %v395 = vunpack.c.l.b16 %v289
      %v396 = vunpack.c.l.b16 %v290
      %v397 = vunpack.c.l.b16 %v291
      %v398 = vpack.c.b16 %v395, %v394
      %v399 = vpack.c.b16 %v397, %v396
      %v404 = vunpack.c.l.b16 %v296
      %v405 = vunpack.c.l.b16 %v297
      %v406 = vunpack.c.l.b16 %v298
      %v407 = vunpack.c.l.b16 %v299
      %v408 = vpack.c.b16 %v405, %v404
      %v409 = vpack.c.b16 %v407, %v406
      %v411 = vsel %vm328, %v398, 0
      %v414 = vsel %vm328, %v399, 0
      %v417 = vsel %vm328, %v408, 0
      %v420 = vsel %vm328, %v409, 0
      %422 = vmatprep.subr.bf16.mxu0 0
      %423 = vmatpush1.bf16.xpose.msra.mxu0 %v417
      %424 = vmatprep.subr.bf16.mxu0 0
      %425 = vmatpush1.bf16.xpose.msra.mxu0 %v420
      %426 = vmatprep.subr.bf16.mxu0 0
      %427 = vmatpush1.bf16.xpose.msra.mxu0 0
      %428 = vmatprep.subr.bf16.mxu0 0
      %429 = vmatpush1.bf16.xpose.msra.mxu0 0
      %430 = vmatprep.subr.bf16.mxu0 0
      %431 = vmatpush1.bf16.xpose.msra.mxu0 0
      %432 = vmatprep.subr.bf16.mxu0 0
      %433 = vmatpush1.bf16.xpose.msra.mxu0 0
      %434 = vmatprep.subr.bf16.mxu0 0
      %435 = vmatpush1.bf16.xpose.msra.mxu0 0
      %436 = vmatprep.subr.bf16.mxu0 0
      %437 = vmatpush1.bf16.xpose.msra.mxu0 0
      %438 = vmatprep.subr.bf16.mxu0 0
      %439 = vmatpush1.bf16.xpose.msra.mxu0 0
      %440 = vmatprep.subr.bf16.mxu0 0
      %441 = vmatpush1.bf16.xpose.msra.mxu0 0
      %442 = vmatprep.subr.bf16.mxu0 0
      %443 = vmatpush1.bf16.xpose.msra.mxu0 0
      %444 = vmatprep.subr.bf16.mxu0 0
      %445 = vmatpush1.bf16.xpose.msra.mxu0 0
      %446 = vmatprep.subr.bf16.mxu0 0
      %447 = vmatpush1.bf16.xpose.msra.mxu0 0
      %448 = vmatprep.subr.bf16.mxu0 0
      %449 = vmatpush1.bf16.xpose.msra.mxu0 0
      %450 = vmatprep.subr.bf16.mxu0 0
      %451 = vmatpush1.bf16.xpose.msra.mxu0 0
      %452 = vmatprep.subr.bf16.mxu0 0
      %453 = vmatpush1.bf16.xpose.msra.mxu0 0
      %454 = vmatprep.mubr.bf16.mxu0 0
      %455 = vmatmul.mubr.bf16.gmra.mrb[0].mxu0 %v411
      %v456 = vpop.f32.mrb[0].mxu0
      %v457 = vadd.f32 0.0, %v456
      %v458 = vpop.f32.mrb[0].mxu0
      %v459 = vpop.f32.mrb[0].mxu0
      %v460 = vadd.f32 0.0, %v459
      %v461 = vpop.f32.mrb[0].mxu0
      %462 = vmatprep.mubr.bf16.mxu0 0
      %463 = vmatmul.mubr.bf16.gmra.mrb[0].mxu0 %v414
      %v464 = vpop.f32.mrb[0].mxu0
      %v465 = vadd.f32 0.0, %v464
      %v466 = vpop.f32.mrb[0].mxu0
      %v467 = vpop.f32.mrb[0].mxu0
      %v468 = vadd.f32 0.0, %v467
      %v469 = vpop.f32.mrb[0].mxu0
      %470 = vdwg.mxu0
      %v471 = vmul.f32 %v376, 0.35355338
      %v472 = vmul.f32 %v379, 0.35355338
      %v473 = vmul.f32 %v384, 0.35355338
      %v474 = vmul.f32 %v387, 0.35355338
      %v475 = vmul.f32 %v457, 0.35355338
      %v476 = vmul.f32 %v460, 0.35355338
      %v477 = vmul.f32 %v465, 0.35355338
      %v478 = vmul.f32 %v468, 0.35355338
      %vm479 = vcmask 261120
      %v480 = vsel %vm479, %v471, -inf
      %481 = vmax.xlane.f32.xlu0 %v480
      %v482 = vpop.xlane.xlu0 %481
      %v483 = vsel %vm479, %v472, -inf
      %484 = vmax.xlane.f32.xlu0 %v483
      %v485 = vpop.xlane.xlu0 %484
      %v486 = vsel %vm479, %v473, -inf
      %487 = vmax.xlane.f32.xlu0 %v486
      %v488 = vpop.xlane.xlu0 %487
      %v489 = vsel %vm479, %v474, -inf
      %490 = vmax.xlane.f32.xlu0 %v489
      %v491 = vpop.xlane.xlu0 %490
      %v492 = vsel %vm479, %v475, -inf
      %493 = vmax.xlane.f32.xlu0 %v492
      %v494 = vpop.xlane.xlu0 %493
      %v495 = vsel %vm479, %v476, -inf
      %496 = vmax.xlane.f32.xlu0 %v495
      %v497 = vpop.xlane.xlu0 %496
      %v498 = vsel %vm479, %v477, -inf
      %499 = vmax.xlane.f32.xlu0 %v498
      %v500 = vpop.xlane.xlu0 %499
      %v501 = vsel %vm479, %v478, -inf
      %502 = vmax.xlane.f32.xlu0 %v501
      %v503 = vpop.xlane.xlu0 %502
      %v504 = vsub.f32 %v471, %v482
      %v505 = vsub.f32 %v472, %v485
      %v506 = vsub.f32 %v473, %v488
      %v507 = vsub.f32 %v474, %v491
      %v508 = vsub.f32 %v475, %v494
      %v509 = vsub.f32 %v476, %v497
      %v510 = vsub.f32 %v477, %v500
      %v511 = vsub.f32 %v478, %v503
      %v512 = vmul.f32 %v504, 1.442695
      %v513 = vpow.pop %v512
      %v514 = vmul.f32 %v505, 1.442695
      %v515 = vpow.pop %v514
      %v516 = vmul.f32 %v506, 1.442695
      %v517 = vpow.pop %v516
      %v518 = vmul.f32 %v507, 1.442695
      %v519 = vpow.pop %v518
      %v520 = vmul.f32 %v508, 1.442695
      %v521 = vpow.pop %v520
      %v522 = vmul.f32 %v509, 1.442695
      %v523 = vpow.pop %v522
      %v524 = vmul.f32 %v510, 1.442695
      %v525 = vpow.pop %v524
      %v526 = vmul.f32 %v511, 1.442695
      %v527 = vpow.pop %v526
      %v528 = vsel %vm479, %v513, 0.0
      %529 = vadd.xlane.f32.xlu0 %v528
      %v530 = vpop.xlane.xlu0 %529
      %v531 = vsel %vm479, %v515, 0.0
      %532 = vadd.xlane.f32.xlu0 %v531
      %v533 = vpop.xlane.xlu0 %532
      %v534 = vsel %vm479, %v517, 0.0
      %535 = vadd.xlane.f32.xlu0 %v534
      %v536 = vpop.xlane.xlu0 %535
      %v537 = vsel %vm479, %v519, 0.0
      %538 = vadd.xlane.f32.xlu0 %v537
      %v539 = vpop.xlane.xlu0 %538
      %v540 = vsel %vm479, %v521, 0.0
      %541 = vadd.xlane.f32.xlu0 %v540
      %v542 = vpop.xlane.xlu0 %541
      %v543 = vsel %vm479, %v523, 0.0
      %544 = vadd.xlane.f32.xlu0 %v543
      %v545 = vpop.xlane.xlu0 %544
      %v546 = vsel %vm479, %v525, 0.0
      %547 = vadd.xlane.f32.xlu0 %v546
      %v548 = vpop.xlane.xlu0 %547
      %v549 = vsel %vm479, %v527, 0.0
      %550 = vadd.xlane.f32.xlu0 %v549
      %v551 = vpop.xlane.xlu0 %550
      %v552 = vrcp.pop %v530
      %v553 = vrcp.pop %v533
      %v554 = vrcp.pop %v536
      %v555 = vrcp.pop %v539
      %v556 = vrcp.pop %v542
      %v557 = vrcp.pop %v545
      %v558 = vrcp.pop %v548
      %v559 = vrcp.pop %v551
      %v560 = vmul.f32 %v513, %v552
      %v561 = vmul.f32 %v515, %v553
      %v562 = vmul.f32 %v517, %v554
      %v563 = vmul.f32 %v519, %v555
      %v564 = vmul.f32 %v521, %v556
      %v565 = vmul.f32 %v523, %v557
      %v566 = vmul.f32 %v525, %v558
      %v567 = vmul.f32 %v527, %v559
      %v568 = vpack.c.bf16 %v561, %v560
      %v569 = vpack.c.bf16 %v563, %v562
      %v570 = vpack.c.bf16 %v565, %v564
      %v571 = vpack.c.bf16 %v567, %v566
      %v576 = vunpack.c.l.b16 %v300
      %v577 = vunpack.c.l.b16 %v301
      %v578 = vunpack.c.l.b16 %v302
      %v579 = vunpack.c.l.b16 %v303
      %v580 = vpack.c.b16 %v577, %v576
      %v581 = vpack.c.b16 %v579, %v578
      %v585 = vsel %vm479, %v568, 0
      %v588 = vsel %vm479, %v569, 0
      %590 = vmatprep.subr.bf16.mxu0 0
      %591 = vmatpush1.bf16.msra.mxu0 %v580
      %592 = vmatprep.subr.bf16.mxu0 0
      %593 = vmatpush1.bf16.msra.mxu0 %v581
      %594 = vmatprep.subr.bf16.mxu0 0
      %595 = vmatpush1.bf16.msra.mxu0 0
      %596 = vmatprep.subr.bf16.mxu0 0
      %597 = vmatpush1.bf16.msra.mxu0 0
      %598 = vmatprep.subr.bf16.mxu0 0
      %599 = vmatpush1.bf16.msra.mxu0 0
      %600 = vmatprep.subr.bf16.mxu0 0
      %601 = vmatpush1.bf16.msra.mxu0 0
      %602 = vmatprep.subr.bf16.mxu0 0
      %603 = vmatpush1.bf16.msra.mxu0 0
      %604 = vmatprep.subr.bf16.mxu0 0
      %605 = vmatpush1.bf16.msra.mxu0 0
      %606 = vmatprep.subr.bf16.mxu0 0
      %607 = vmatpush1.bf16.msra.mxu0 0
      %608 = vmatprep.subr.bf16.mxu0 0
      %609 = vmatpush1.bf16.msra.mxu0 0
      %610 = vmatprep.subr.bf16.mxu0 0
      %611 = vmatpush1.bf16.msra.mxu0 0
      %612 = vmatprep.subr.bf16.mxu0 0
      %613 = vmatpush1.bf16.msra.mxu0 0
      %614 = vmatprep.subr.bf16.mxu0 0
      %615 = vmatpush1.bf16.msra.mxu0 0
      %616 = vmatprep.subr.bf16.mxu0 0
      %617 = vmatpush1.bf16.msra.mxu0 0
      %618 = vmatprep.subr.bf16.mxu0 0
      %619 = vmatpush1.bf16.msra.mxu0 0
      %620 = vmatprep.subr.bf16.mxu0 0
      %621 = vmatpush1.bf16.msra.mxu0 0
      %622 = vmatprep.mubr.bf16.mxu0 0
      %623 = vmatmul.mubr.bf16.gmra.mrb[0].mxu0 %v585
      %v624 = vpop.f32.mrb[0].mxu0
      %v625 = vadd.f32 0.0, %v624
      %v626 = vpop.f32.mrb[0].mxu0
      %v627 = vpop.f32.mrb[0].mxu0
      %v628 = vadd.f32 0.0, %v627
      %v629 = vpop.f32.mrb[0].mxu0
      %630 = vmatprep.mubr.bf16.mxu0 0
      %631 = vmatmul.mubr.bf16.gmra.mrb[0].mxu0 %v588
      %v632 = vpop.f32.mrb[0].mxu0
      %v633 = vadd.f32 0.0, %v632
      %v634 = vpop.f32.mrb[0].mxu0
      %v635 = vpop.f32.mrb[0].mxu0
      %v636 = vadd.f32 0.0, %v635
      %v637 = vpop.f32.mrb[0].mxu0
      %638 = vdwg.mxu0
      %v643 = vunpack.c.l.b16 %v304
      %v644 = vunpack.c.l.b16 %v305
      %v645 = vunpack.c.l.b16 %v306
      %v646 = vunpack.c.l.b16 %v307
      %v647 = vpack.c.b16 %v644, %v643
      %v648 = vpack.c.b16 %v646, %v645
      %v652 = vsel %vm479, %v570, 0
      %v655 = vsel %vm479, %v571, 0
      %657 = vmatprep.subr.bf16.mxu0 0
      %658 = vmatpush1.bf16.msra.mxu0 %v647
      %659 = vmatprep.subr.bf16.mxu0 0
      %660 = vmatpush1.bf16.msra.mxu0 %v648
      %661 = vmatprep.subr.bf16.mxu0 0
      %662 = vmatpush1.bf16.msra.mxu0 0
      %663 = vmatprep.subr.bf16.mxu0 0
      %664 = vmatpush1.bf16.msra.mxu0 0
      %665 = vmatprep.subr.bf16.mxu0 0
      %666 = vmatpush1.bf16.msra.mxu0 0
      %667 = vmatprep.subr.bf16.mxu0 0
      %668 = vmatpush1.bf16.msra.mxu0 0
      %669 = vmatprep.subr.bf16.mxu0 0
      %670 = vmatpush1.bf16.msra.mxu0 0
      %671 = vmatprep.subr.bf16.mxu0 0
      %672 = vmatpush1.bf16.msra.mxu0 0
      %673 = vmatprep.subr.bf16.mxu0 0
      %674 = vmatpush1.bf16.msra.mxu0 0
      %675 = vmatprep.subr.bf16.mxu0 0
      %676 = vmatpush1.bf16.msra.mxu0 0
      %677 = vmatprep.subr.bf16.mxu0 0
      %678 = vmatpush1.bf16.msra.mxu0 0
      %679 = vmatprep.subr.bf16.mxu0 0
      %680 = vmatpush1.bf16.msra.mxu0 0
      %681 = vmatprep.subr.bf16.mxu0 0
      %682 = vmatpush1.bf16.msra.mxu0 0
      %683 = vmatprep.subr.bf16.mxu0 0
      %684 = vmatpush1.bf16.msra.mxu0 0
      %685 = vmatprep.subr.bf16.mxu0 0
      %686 = vmatpush1.bf16.msra.mxu0 0
      %687 = vmatprep.subr.bf16.mxu0 0
      %688 = vmatpush1.bf16.msra.mxu0 0
      %689 = vmatprep.mubr.bf16.mxu0 0
      %690 = vmatmul.mubr.bf16.gmra.mrb[0].mxu0 %v652
      %v691 = vpop.f32.mrb[0].mxu0
      %v692 = vadd.f32 0.0, %v691
      %v693 = vpop.f32.mrb[0].mxu0
      %v694 = vpop.f32.mrb[0].mxu0
      %v695 = vadd.f32 0.0, %v694
      %v696 = vpop.f32.mrb[0].mxu0
      %697 = vmatprep.mubr.bf16.mxu0 0
      %698 = vmatmul.mubr.bf16.gmra.mrb[0].mxu0 %v655
      %v699 = vpop.f32.mrb[0].mxu0
      %v700 = vadd.f32 0.0, %v699
      %v701 = vpop.f32.mrb[0].mxu0
      %v702 = vpop.f32.mrb[0].mxu0
      %v703 = vadd.f32 0.0, %v702
      %v704 = vpop.f32.mrb[0].mxu0
      %705 = vdwg.mxu0
      %706 = vrot.lane.b32.xlu0 %v316, 120
      %v707 = vpop.permute.xlu0 %706
      %708 = vrot.lane.b32.xlu0 %v317, 120
      %v709 = vpop.permute.xlu0 %708
      %710 = vrot.lane.b32.xlu0 %v326, 120
      %v711 = vpop.permute.xlu0 %710
      %712 = vrot.lane.b32.xlu0 %v327, 120
      %v713 = vpop.permute.xlu0 %712
      %v715 = vsel %vm328, %v707, 0
      %v718 = vsel %vm328, %v709, 0
      %v721 = vsel %vm328, %v711, 0
      %v724 = vsel %vm328, %v713, 0
      %726 = vmatprep.subr.bf16.mxu0 0
      %727 = vmatpush1.bf16.xpose.msra.mxu0 %v721
      %728 = vmatprep.subr.bf16.mxu0 0
      %729 = vmatpush1.bf16.xpose.msra.mxu0 %v724
      %730 = vmatprep.subr.bf16.mxu0 0
      %731 = vmatpush1.bf16.xpose.msra.mxu0 0
      %732 = vmatprep.subr.bf16.mxu0 0
      %733 = vmatpush1.bf16.xpose.msra.mxu0 0
      %734 = vmatprep.subr.bf16.mxu0 0
      %735 = vmatpush1.bf16.xpose.msra.mxu0 0
      %736 = vmatprep.subr.bf16.mxu0 0
      %737 = vmatpush1.bf16.xpose.msra.mxu0 0
      %738 = vmatprep.subr.bf16.mxu0 0
      %739 = vmatpush1.bf16.xpose.msra.mxu0 0
      %740 = vmatprep.subr.bf16.mxu0 0
      %741 = vmatpush1.bf16.xpose.msra.mxu0 0
      %742 = vmatprep.subr.bf16.mxu0 0
      %743 = vmatpush1.bf16.xpose.msra.mxu0 0
      %744 = vmatprep.subr.bf16.mxu0 0
      %745 = vmatpush1.bf16.xpose.msra.mxu0 0
      %746 = vmatprep.subr.bf16.mxu0 0
      %747 = vmatpush1.bf16.xpose.msra.mxu0 0
      %748 = vmatprep.subr.bf16.mxu0 0
      %749 = vmatpush1.bf16.xpose.msra.mxu0 0
      %750 = vmatprep.subr.bf16.mxu0 0
      %751 = vmatpush1.bf16.xpose.msra.mxu0 0
      %752 = vmatprep.subr.bf16.mxu0 0
      %753 = vmatpush1.bf16.xpose.msra.mxu0 0
      %754 = vmatprep.subr.bf16.mxu0 0
      %755 = vmatpush1.bf16.xpose.msra.mxu0 0
      %756 = vmatprep.subr.bf16.mxu0 0
      %757 = vmatpush1.bf16.xpose.msra.mxu0 0
      %758 = vmatprep.mubr.bf16.mxu0 0
      %759 = vmatmul.mubr.bf16.gmra.mrb[0].mxu0 %v715
      %v760 = vpop.f32.mrb[0].mxu0
      %v761 = vadd.f32 0.0, %v760
      %v762 = vpop.f32.mrb[0].mxu0
      %v763 = vpop.f32.mrb[0].mxu0
      %v764 = vadd.f32 0.0, %v763
      %v765 = vpop.f32.mrb[0].mxu0
      %766 = vmatprep.mubr.bf16.mxu0 0
      %767 = vmatmul.mubr.bf16.gmra.mrb[0].mxu0 %v718
      %v768 = vpop.f32.mrb[0].mxu0
      %v769 = vadd.f32 0.0, %v768
      %v770 = vpop.f32.mrb[0].mxu0
      %v771 = vpop.f32.mrb[0].mxu0
      %v772 = vadd.f32 0.0, %v771
      %v773 = vpop.f32.mrb[0].mxu0
      %774 = vdwg.mxu0
      %775 = vrot.lane.b32.xlu0 %v398, 120
      %v776 = vpop.permute.xlu0 %775
      %777 = vrot.lane.b32.xlu0 %v399, 120
      %v778 = vpop.permute.xlu0 %777
      %779 = vrot.lane.b32.xlu0 %v408, 120
      %v780 = vpop.permute.xlu0 %779
      %781 = vrot.lane.b32.xlu0 %v409, 120
      %v782 = vpop.permute.xlu0 %781
      %v784 = vsel %vm328, %v776, 0
      %v787 = vsel %vm328, %v778, 0
      %v790 = vsel %vm328, %v780, 0
      %v793 = vsel %vm328, %v782, 0
      %795 = vmatprep.subr.bf16.mxu0 0
      %796 = vmatpush1.bf16.xpose.msra.mxu0 %v790
      %797 = vmatprep.subr.bf16.mxu0 0
      %798 = vmatpush1.bf16.xpose.msra.mxu0 %v793
      %799 = vmatprep.subr.bf16.mxu0 0
      %800 = vmatpush1.bf16.xpose.msra.mxu0 0
      %801 = vmatprep.subr.bf16.mxu0 0
      %802 = vmatpush1.bf16.xpose.msra.mxu0 0
      %803 = vmatprep.subr.bf16.mxu0 0
      %804 = vmatpush1.bf16.xpose.msra.mxu0 0
      %805 = vmatprep.subr.bf16.mxu0 0
      %806 = vmatpush1.bf16.xpose.msra.mxu0 0
      %807 = vmatprep.subr.bf16.mxu0 0
      %808 = vmatpush1.bf16.xpose.msra.mxu0 0
      %809 = vmatprep.subr.bf16.mxu0 0
      %810 = vmatpush1.bf16.xpose.msra.mxu0 0
      %811 = vmatprep.subr.bf16.mxu0 0
      %812 = vmatpush1.bf16.xpose.msra.mxu0 0
      %813 = vmatprep.subr.bf16.mxu0 0
      %814 = vmatpush1.bf16.xpose.msra.mxu0 0
      %815 = vmatprep.subr.bf16.mxu0 0
      %816 = vmatpush1.bf16.xpose.msra.mxu0 0
      %817 = vmatprep.subr.bf16.mxu0 0
      %818 = vmatpush1.bf16.xpose.msra.mxu0 0
      %819 = vmatprep.subr.bf16.mxu0 0
      %820 = vmatpush1.bf16.xpose.msra.mxu0 0
      %821 = vmatprep.subr.bf16.mxu0 0
      %822 = vmatpush1.bf16.xpose.msra.mxu0 0
      %823 = vmatprep.subr.bf16.mxu0 0
      %824 = vmatpush1.bf16.xpose.msra.mxu0 0
      %825 = vmatprep.subr.bf16.mxu0 0
      %826 = vmatpush1.bf16.xpose.msra.mxu0 0
      %827 = vmatprep.mubr.bf16.mxu0 0
      %828 = vmatmul.mubr.bf16.gmra.mrb[0].mxu0 %v784
      %v829 = vpop.f32.mrb[0].mxu0
      %v830 = vadd.f32 0.0, %v829
      %v831 = vpop.f32.mrb[0].mxu0
      %v832 = vpop.f32.mrb[0].mxu0
      %v833 = vadd.f32 0.0, %v832
      %v834 = vpop.f32.mrb[0].mxu0
      %835 = vmatprep.mubr.bf16.mxu0 0
      %836 = vmatmul.mubr.bf16.gmra.mrb[0].mxu0 %v787
      %v837 = vpop.f32.mrb[0].mxu0
      %v838 = vadd.f32 0.0, %v837
      %v839 = vpop.f32.mrb[0].mxu0
      %v840 = vpop.f32.mrb[0].mxu0
      %v841 = vadd.f32 0.0, %v840
      %v842 = vpop.f32.mrb[0].mxu0
      %843 = vdwg.mxu0
      %v844 = vmul.f32 %v761, 0.35355338
      %v845 = vmul.f32 %v764, 0.35355338
      %v846 = vmul.f32 %v769, 0.35355338
      %v847 = vmul.f32 %v772, 0.35355338
      %v848 = vmul.f32 %v830, 0.35355338
      %v849 = vmul.f32 %v833, 0.35355338
      %v850 = vmul.f32 %v838, 0.35355338
      %v851 = vmul.f32 %v841, 0.35355338
      %v852 = vsel %vm479, %v844, -inf
      %853 = vmax.xlane.f32.xlu0 %v852
      %v854 = vpop.xlane.xlu0 %853
      %v855 = vsel %vm479, %v845, -inf
      %856 = vmax.xlane.f32.xlu0 %v855
      %v857 = vpop.xlane.xlu0 %856
      %v858 = vsel %vm479, %v846, -inf
      %859 = vmax.xlane.f32.xlu0 %v858
      %v860 = vpop.xlane.xlu0 %859
      %v861 = vsel %vm479, %v847, -inf
      %862 = vmax.xlane.f32.xlu0 %v861
      %v863 = vpop.xlane.xlu0 %862
      %v864 = vsel %vm479, %v848, -inf
      %865 = vmax.xlane.f32.xlu0 %v864
      %v866 = vpop.xlane.xlu0 %865
      %v867 = vsel %vm479, %v849, -inf
      %868 = vmax.xlane.f32.xlu0 %v867
      %v869 = vpop.xlane.xlu0 %868
      %v870 = vsel %vm479, %v850, -inf
      %871 = vmax.xlane.f32.xlu0 %v870
      %v872 = vpop.xlane.xlu0 %871
      %v873 = vsel %vm479, %v851, -inf
      %874 = vmax.xlane.f32.xlu0 %v873
      %v875 = vpop.xlane.xlu0 %874
      %v876 = vsub.f32 %v844, %v854
      %v877 = vsub.f32 %v845, %v857
      %v878 = vsub.f32 %v846, %v860
      %v879 = vsub.f32 %v847, %v863
      %v880 = vsub.f32 %v848, %v866
      %v881 = vsub.f32 %v849, %v869
      %v882 = vsub.f32 %v850, %v872
      %v883 = vsub.f32 %v851, %v875
      %v884 = vmul.f32 %v876, 1.442695
      %v885 = vpow.pop %v884
      %v886 = vmul.f32 %v877, 1.442695
      %v887 = vpow.pop %v886
      %v888 = vmul.f32 %v878, 1.442695
      %v889 = vpow.pop %v888
      %v890 = vmul.f32 %v879, 1.442695
      %v891 = vpow.pop %v890
      %v892 = vmul.f32 %v880, 1.442695
      %v893 = vpow.pop %v892
      %v894 = vmul.f32 %v881, 1.442695
      %v895 = vpow.pop %v894
      %v896 = vmul.f32 %v882, 1.442695
      %v897 = vpow.pop %v896
      %v898 = vmul.f32 %v883, 1.442695
      %v899 = vpow.pop %v898
      %v900 = vsel %vm479, %v885, 0.0
      %901 = vadd.xlane.f32.xlu0 %v900
      %v902 = vpop.xlane.xlu0 %901
      %v903 = vsel %vm479, %v887, 0.0
      %904 = vadd.xlane.f32.xlu0 %v903
      %v905 = vpop.xlane.xlu0 %904
      %v906 = vsel %vm479, %v889, 0.0
      %907 = vadd.xlane.f32.xlu0 %v906
      %v908 = vpop.xlane.xlu0 %907
      %v909 = vsel %vm479, %v891, 0.0
      %910 = vadd.xlane.f32.xlu0 %v909
      %v911 = vpop.xlane.xlu0 %910
      %v912 = vsel %vm479, %v893, 0.0
      %913 = vadd.xlane.f32.xlu0 %v912
      %v914 = vpop.xlane.xlu0 %913
      %v915 = vsel %vm479, %v895, 0.0
      %916 = vadd.xlane.f32.xlu0 %v915
      %v917 = vpop.xlane.xlu0 %916
      %v918 = vsel %vm479, %v897, 0.0
      %919 = vadd.xlane.f32.xlu0 %v918
      %v920 = vpop.xlane.xlu0 %919
      %v921 = vsel %vm479, %v899, 0.0
      %922 = vadd.xlane.f32.xlu0 %v921
      %v923 = vpop.xlane.xlu0 %922
      %v924 = vrcp.pop %v902
      %v925 = vrcp.pop %v905
      %v926 = vrcp.pop %v908
      %v927 = vrcp.pop %v911
      %v928 = vrcp.pop %v914
      %v929 = vrcp.pop %v917
      %v930 = vrcp.pop %v920
      %v931 = vrcp.pop %v923
      %v932 = vmul.f32 %v885, %v924
      %v933 = vmul.f32 %v887, %v925
      %v934 = vmul.f32 %v889, %v926
      %v935 = vmul.f32 %v891, %v927
      %v936 = vmul.f32 %v893, %v928
      %v937 = vmul.f32 %v895, %v929
      %v938 = vmul.f32 %v897, %v930
      %v939 = vmul.f32 %v899, %v931
      %v940 = vpack.c.bf16 %v933, %v932
      %v941 = vpack.c.bf16 %v935, %v934
      %v942 = vpack.c.bf16 %v937, %v936
      %v943 = vpack.c.bf16 %v939, %v938
      %944 = vrot.lane.b32.xlu0 %v580, 120
      %v945 = vpop.permute.xlu0 %944
      %946 = vrot.lane.b32.xlu0 %v581, 120
      %v947 = vpop.permute.xlu0 %946
      %v951 = vsel %vm479, %v940, 0
      %v954 = vsel %vm479, %v941, 0
      %956 = vmatprep.subr.bf16.mxu0 0
      %957 = vmatpush1.bf16.msra.mxu0 %v945
      %958 = vmatprep.subr.bf16.mxu0 0
      %959 = vmatpush1.bf16.msra.mxu0 %v947
      %960 = vmatprep.subr.bf16.mxu0 0
      %961 = vmatpush1.bf16.msra.mxu0 0
      %962 = vmatprep.subr.bf16.mxu0 0
      %963 = vmatpush1.bf16.msra.mxu0 0
      %964 = vmatprep.subr.bf16.mxu0 0
      %965 = vmatpush1.bf16.msra.mxu0 0
      %966 = vmatprep.subr.bf16.mxu0 0
      %967 = vmatpush1.bf16.msra.mxu0 0
      %968 = vmatprep.subr.bf16.mxu0 0
      %969 = vmatpush1.bf16.msra.mxu0 0
      %970 = vmatprep.subr.bf16.mxu0 0
      %971 = vmatpush1.bf16.msra.mxu0 0
      %972 = vmatprep.subr.bf16.mxu0 0
      %973 = vmatpush1.bf16.msra.mxu0 0
      %974 = vmatprep.subr.bf16.mxu0 0
      %975 = vmatpush1.bf16.msra.mxu0 0
      %976 = vmatprep.subr.bf16.mxu0 0
      %977 = vmatpush1.bf16.msra.mxu0 0
      %978 = vmatprep.subr.bf16.mxu0 0
      %979 = vmatpush1.bf16.msra.mxu0 0
      %980 = vmatprep.subr.bf16.mxu0 0
      %981 = vmatpush1.bf16.msra.mxu0 0
      %982 = vmatprep.subr.bf16.mxu0 0
      %983 = vmatpush1.bf16.msra.mxu0 0
      %984 = vmatprep.subr.bf16.mxu0 0
      %985 = vmatpush1.bf16.msra.mxu0 0
      %986 = vmatprep.subr.bf16.mxu0 0
      %987 = vmatpush1.bf16.msra.mxu0 0
      %988 = vmatprep.mubr.bf16.mxu0 0
      %989 = vmatmul.mubr.bf16.gmra.mrb[0].mxu0 %v951
      %v990 = vpop.f32.mrb[0].mxu0
      %v991 = vadd.f32 0.0, %v990
      %v992 = vpop.f32.mrb[0].mxu0
      %v993 = vpop.f32.mrb[0].mxu0
      %v994 = vadd.f32 0.0, %v993
      %v995 = vpop.f32.mrb[0].mxu0
      %996 = vmatprep.mubr.bf16.mxu0 0
      %997 = vmatmul.mubr.bf16.gmra.mrb[0].mxu0 %v954
      %v998 = vpop.f32.mrb[0].mxu0
      %v999 = vadd.f32 0.0, %v998
      %v1000 = vpop.f32.mrb[0].mxu0
      %v1001 = vpop.f32.mrb[0].mxu0
      %v1002 = vadd.f32 0.0, %v1001
      %v1003 = vpop.f32.mrb[0].mxu0
      %1004 = vdwg.mxu0
      %1005 = vrot.lane.b32.xlu0 %v647, 120
      %v1006 = vpop.permute.xlu0 %1005
      %1007 = vrot.lane.b32.xlu0 %v648, 120
      %v1008 = vpop.permute.xlu0 %1007
      %v1012 = vsel %vm479, %v942, 0
      %v1015 = vsel %vm479, %v943, 0
      %1017 = vmatprep.subr.bf16.mxu0 0
      %1018 = vmatpush1.bf16.msra.mxu0 %v1006
      %1019 = vmatprep.subr.bf16.mxu0 0
      %1020 = vmatpush1.bf16.msra.mxu0 %v1008
      %1021 = vmatprep.subr.bf16.mxu0 0
      %1022 = vmatpush1.bf16.msra.mxu0 0
      %1023 = vmatprep.subr.bf16.mxu0 0
      %1024 = vmatpush1.bf16.msra.mxu0 0
      %1025 = vmatprep.subr.bf16.mxu0 0
      %1026 = vmatpush1.bf16.msra.mxu0 0
      %1027 = vmatprep.subr.bf16.mxu0 0
      %1028 = vmatpush1.bf16.msra.mxu0 0
      %1029 = vmatprep.subr.bf16.mxu0 0
      %1030 = vmatpush1.bf16.msra.mxu0 0
      %1031 = vmatprep.subr.bf16.mxu0 0
      %1032 = vmatpush1.bf16.msra.mxu0 0
      %1033 = vmatprep.subr.bf16.mxu0 0
      %1034 = vmatpush1.bf16.msra.mxu0 0
      %1035 = vmatprep.subr.bf16.mxu0 0
      %1036 = vmatpush1.bf16.msra.mxu0 0
      %1037 = vmatprep.subr.bf16.mxu0 0
      %1038 = vmatpush1.bf16.msra.mxu0 0
      %1039 = vmatprep.subr.bf16.mxu0 0
      %1040 = vmatpush1.bf16.msra.mxu0 0
      %1041 = vmatprep.subr.bf16.mxu0 0
      %1042 = vmatpush1.bf16.msra.mxu0 0
      %1043 = vmatprep.subr.bf16.mxu0 0
      %1044 = vmatpush1.bf16.msra.mxu0 0
      %1045 = vmatprep.subr.bf16.mxu0 0
      %1046 = vmatpush1.bf16.msra.mxu0 0
      %1047 = vmatprep.subr.bf16.mxu0 0
      %1048 = vmatpush1.bf16.msra.mxu0 0
      %1049 = vmatprep.mubr.bf16.mxu0 0
      %1050 = vmatmul.mubr.bf16.gmra.mrb[0].mxu0 %v1012
      %v1051 = vpop.f32.mrb[0].mxu0
      %v1052 = vadd.f32 0.0, %v1051
      %v1053 = vpop.f32.mrb[0].mxu0
      %v1054 = vpop.f32.mrb[0].mxu0
      %v1055 = vadd.f32 0.0, %v1054
      %v1056 = vpop.f32.mrb[0].mxu0
      %1057 = vmatprep.mubr.bf16.mxu0 0
      %1058 = vmatmul.mubr.bf16.gmra.mrb[0].mxu0 %v1015
      %v1059 = vpop.f32.mrb[0].mxu0
      %v1060 = vadd.f32 0.0, %v1059
      %v1061 = vpop.f32.mrb[0].mxu0
      %v1062 = vpop.f32.mrb[0].mxu0
      %v1063 = vadd.f32 0.0, %v1062
      %v1064 = vpop.f32.mrb[0].mxu0
      %1065 = vdwg.mxu0
      %1074 = vrot.lane.b32.xlu0 %v991, 8
      %v1075 = vpop.permute.xlu0 %1074
      %1076 = vrot.lane.b32.xlu0 %v994, 8
      %v1077 = vpop.permute.xlu0 %1076
      %1078 = vrot.lane.b32.xlu0 %v999, 8
      %v1079 = vpop.permute.xlu0 %1078
      %1080 = vrot.lane.b32.xlu0 %v1002, 8
      %v1081 = vpop.permute.xlu0 %1080
      %1082 = vrot.lane.b32.xlu0 %v1052, 8
      %v1083 = vpop.permute.xlu0 %1082
      %1084 = vrot.lane.b32.xlu0 %v1055, 8
      %v1085 = vpop.permute.xlu0 %1084
      %1086 = vrot.lane.b32.xlu0 %v1060, 8
      %v1087 = vpop.permute.xlu0 %1086
      %1088 = vrot.lane.b32.xlu0 %v1063, 8
      %v1089 = vpop.permute.xlu0 %1088
      %v1098 = vsel %vm328, %v625, %v1075
      %v1099 = vsel %vm328, %v628, %v1077
      %v1100 = vsel %vm328, %v633, %v1079
      %v1101 = vsel %vm328, %v636, %v1081
      %v1102 = vsel %vm328, %v692, %v1083
      %v1103 = vsel %vm328, %v695, %v1085
      %v1104 = vsel %vm328, %v700, %v1087
      %v1105 = vsel %vm328, %v703, %v1089
      %v1106 = vunpack.c.l.bf16 %v300
      %v1107 = vunpack.c.l.bf16 %v301
      %v1108 = vunpack.c.l.bf16 %v302
      %v1109 = vunpack.c.l.bf16 %v303
      %v1110 = vunpack.c.l.bf16 %v304
      %v1111 = vunpack.c.l.bf16 %v305
      %v1112 = vunpack.c.l.bf16 %v306
      %v1113 = vunpack.c.l.bf16 %v307
      %s1114 = scalar_lea.vmem %s3, 128
      %v1115 = vld [vmem:[%s1114] sm:$0xff]
      %v1116 = vld [vmem:[%s1114 + $0x8] sm:$0xff]
      %v1117 = vld [vmem:[%s1114 + $0x10] sm:$0xff]
      %v1118 = vld [vmem:[%s1114 + $0x18] sm:$0xff]
      %v1119 = vmul.f32 %v1106, %v1115
      %v1120 = vmul.f32 %v1107, %v1116
      %v1121 = vmul.f32 %v1108, %v1117
      %v1122 = vmul.f32 %v1109, %v1118
      %v1123 = vmul.f32 %v1110, %v1115
      %v1124 = vmul.f32 %v1111, %v1116
      %v1125 = vmul.f32 %v1112, %v1117
      %v1126 = vmul.f32 %v1113, %v1118
      %v1127 = vrot.slane %v1106, 3
      %v1128 = vrot.slane %v1110, 3
      %v1129 = vrot.slane %v1107, 3
      %v1130 = vrot.slane %v1111, 3
      %v1131 = vrot.slane %v1108, 3
      %v1132 = vrot.slane %v1112, 3
      %v1133 = vrot.slane %v1109, 3
      %v1134 = vrot.slane %v1113, 3
      %v1135 = vlaneseq
      %v1136 = vshrl.u32 %v1135, 7
      %vm1137 = vcmp.lt.s32.totalorder %v1136, 5
      %v1138 = vsel %vm1137, %v1131, %v1133
      %v1139 = vsel %vm1137, %v1132, %v1134
      %v1140 = vsel %vm1137, %v1129, %v1131
      %v1141 = vsel %vm1137, %v1130, %v1132
      %v1142 = vsel %vm1137, %v1127, %v1129
      %v1143 = vsel %vm1137, %v1128, %v1130
      %v1144 = vsel %vm1137, %v1133, %v1127
      %v1145 = vsel %vm1137, %v1134, %v1128
      %v1146 = vld [vmem:[%s3] sm:$0xff]
      %v1147 = vld [vmem:[%s3 + $0x8] sm:$0xff]
      %v1148 = vld [vmem:[%s3 + $0x10] sm:$0xff]
      %v1149 = vld [vmem:[%s3 + $0x18] sm:$0xff]
      %v1150 = vmul.f32 %v1144, %v1146
      %v1151 = vmul.f32 %v1142, %v1147
      %v1152 = vmul.f32 %v1140, %v1148
      %v1153 = vmul.f32 %v1138, %v1149
      %v1154 = vmul.f32 %v1145, %v1146
      %v1155 = vmul.f32 %v1143, %v1147
      %v1156 = vmul.f32 %v1141, %v1148
      %v1157 = vmul.f32 %v1139, %v1149
      %v1158 = vadd.f32 %v1119, %v1150
      %v1159 = vadd.f32 %v1120, %v1151
      %v1160 = vadd.f32 %v1121, %v1152
      %v1161 = vadd.f32 %v1122, %v1153
      %v1162 = vadd.f32 %v1123, %v1154
      %v1163 = vadd.f32 %v1124, %v1155
      %v1164 = vadd.f32 %v1125, %v1156
      %v1165 = vadd.f32 %v1126, %v1157
      %v1166 = vrot.slane %v1106, 4
      %v1167 = vrot.slane %v1110, 4
      %v1168 = vrot.slane %v1107, 4
      %v1169 = vrot.slane %v1111, 4
      %v1170 = vrot.slane %v1108, 4
      %v1171 = vrot.slane %v1112, 4
      %v1172 = vrot.slane %v1109, 4
      %v1173 = vrot.slane %v1113, 4
      %vm1174 = vcmp.lt.s32.totalorder %v1136, 4
      %v1175 = vsel %vm1174, %v1170, %v1172
      %v1176 = vsel %vm1174, %v1171, %v1173
      %v1177 = vsel %vm1174, %v1168, %v1170
      %v1178 = vsel %vm1174, %v1169, %v1171
      %v1179 = vsel %vm1174, %v1166, %v1168
      %v1180 = vsel %vm1174, %v1167, %v1169
      %v1181 = vsel %vm1174, %v1172, %v1166
      %v1182 = vsel %vm1174, %v1173, %v1167
      %s1183 = scalar_lea.vmem %s3, 32
      %v1184 = vld [vmem:[%s1183] sm:$0xff]
      %v1185 = vld [vmem:[%s1183 + $0x8] sm:$0xff]
      %v1186 = vld [vmem:[%s1183 + $0x10] sm:$0xff]
      %v1187 = vld [vmem:[%s1183 + $0x18] sm:$0xff]
      %v1188 = vmul.f32 %v1181, %v1184
      %v1189 = vmul.f32 %v1179, %v1185
      %v1190 = vmul.f32 %v1177, %v1186
      %v1191 = vmul.f32 %v1175, %v1187
      %v1192 = vmul.f32 %v1182, %v1184
      %v1193 = vmul.f32 %v1180, %v1185
      %v1194 = vmul.f32 %v1178, %v1186
      %v1195 = vmul.f32 %v1176, %v1187
      %v1196 = vadd.f32 %v1158, %v1188
      %v1197 = vadd.f32 %v1159, %v1189
      %v1198 = vadd.f32 %v1160, %v1190
      %v1199 = vadd.f32 %v1161, %v1191
      %v1200 = vadd.f32 %v1162, %v1192
      %v1201 = vadd.f32 %v1163, %v1193
      %v1202 = vadd.f32 %v1164, %v1194
      %v1203 = vadd.f32 %v1165, %v1195
      %v1204 = vrot.slane %v1106, 5
      %v1205 = vrot.slane %v1110, 5
      %v1206 = vrot.slane %v1107, 5
      %v1207 = vrot.slane %v1111, 5
      %v1208 = vrot.slane %v1108, 5
      %v1209 = vrot.slane %v1112, 5
      %v1210 = vrot.slane %v1109, 5
      %v1211 = vrot.slane %v1113, 5
      %vm1212 = vcmp.lt.s32.totalorder %v1136, 3
      %v1213 = vsel %vm1212, %v1208, %v1210
      %v1214 = vsel %vm1212, %v1209, %v1211
      %v1215 = vsel %vm1212, %v1206, %v1208
      %v1216 = vsel %vm1212, %v1207, %v1209
      %v1217 = vsel %vm1212, %v1204, %v1206
      %v1218 = vsel %vm1212, %v1205, %v1207
      %v1219 = vsel %vm1212, %v1210, %v1204
      %v1220 = vsel %vm1212, %v1211, %v1205
      %s1221 = scalar_lea.vmem %s3, 64
      %v1222 = vld [vmem:[%s1221] sm:$0xff]
      %v1223 = vld [vmem:[%s1221 + $0x8] sm:$0xff]
      %v1224 = vld [vmem:[%s1221 + $0x10] sm:$0xff]
      %v1225 = vld [vmem:[%s1221 + $0x18] sm:$0xff]
      %v1226 = vmul.f32 %v1219, %v1222
      %v1227 = vmul.f32 %v1217, %v1223
      %v1228 = vmul.f32 %v1215, %v1224
      %v1229 = vmul.f32 %v1213, %v1225
      %v1230 = vmul.f32 %v1220, %v1222
      %v1231 = vmul.f32 %v1218, %v1223
      %v1232 = vmul.f32 %v1216, %v1224
      %v1233 = vmul.f32 %v1214, %v1225
      %v1234 = vadd.f32 %v1196, %v1226
      %v1235 = vadd.f32 %v1197, %v1227
      %v1236 = vadd.f32 %v1198, %v1228
      %v1237 = vadd.f32 %v1199, %v1229
      %v1238 = vadd.f32 %v1200, %v1230
      %v1239 = vadd.f32 %v1201, %v1231
      %v1240 = vadd.f32 %v1202, %v1232
      %v1241 = vadd.f32 %v1203, %v1233
      %v1242 = vrot.slane %v1106, 7
      %v1243 = vrot.slane %v1110, 7
      %v1244 = vrot.slane %v1107, 7
      %v1245 = vrot.slane %v1111, 7
      %v1246 = vrot.slane %v1108, 7
      %v1247 = vrot.slane %v1112, 7
      %v1248 = vrot.slane %v1109, 7
      %v1249 = vrot.slane %v1113, 7
      %vm1250 = vcmp.lt.s32.totalorder %v1136, 1
      %v1251 = vsel %vm1250, %v1246, %v1248
      %v1252 = vsel %vm1250, %v1247, %v1249
      %v1253 = vsel %vm1250, %v1244, %v1246
      %v1254 = vsel %vm1250, %v1245, %v1247
      %v1255 = vsel %vm1250, %v1242, %v1244
      %v1256 = vsel %vm1250, %v1243, %v1245
      %v1257 = vsel %vm1250, %v1248, %v1242
      %v1258 = vsel %vm1250, %v1249, %v1243
      %s1259 = scalar_lea.vmem %s3, 96
      %v1260 = vld [vmem:[%s1259] sm:$0xff]
      %v1261 = vld [vmem:[%s1259 + $0x8] sm:$0xff]
      %v1262 = vld [vmem:[%s1259 + $0x10] sm:$0xff]
      %v1263 = vld [vmem:[%s1259 + $0x18] sm:$0xff]
      %v1264 = vmul.f32 %v1257, %v1260
      %v1265 = vmul.f32 %v1255, %v1261
      %v1266 = vmul.f32 %v1253, %v1262
      %v1267 = vmul.f32 %v1251, %v1263
      %v1268 = vmul.f32 %v1258, %v1260
      %v1269 = vmul.f32 %v1256, %v1261
      %v1270 = vmul.f32 %v1254, %v1262
      %v1271 = vmul.f32 %v1252, %v1263
      %v1272 = vadd.f32 %v1234, %v1264
      %v1273 = vadd.f32 %v1235, %v1265
      %v1274 = vadd.f32 %v1236, %v1266
      %v1275 = vadd.f32 %v1237, %v1267
      %v1276 = vadd.f32 %v1238, %v1268
      %v1277 = vadd.f32 %v1239, %v1269
      %v1278 = vadd.f32 %v1240, %v1270
      %v1279 = vadd.f32 %v1241, %v1271
      %v1280 = vrot.slane %v1106, 1
      %v1281 = vrot.slane %v1110, 1
      %v1282 = vrot.slane %v1107, 1
      %v1283 = vrot.slane %v1111, 1
      %v1284 = vrot.slane %v1108, 1
      %v1285 = vrot.slane %v1112, 1
      %v1286 = vrot.slane %v1109, 1
      %v1287 = vrot.slane %v1113, 1
      %vm1288 = vcmp.lt.s32.totalorder %v1136, 7
      %v1289 = vsel %vm1288, %v1284, %v1286
      %v1290 = vsel %vm1288, %v1285, %v1287
      %v1291 = vsel %vm1288, %v1282, %v1284
      %v1292 = vsel %vm1288, %v1283, %v1285
      %v1293 = vsel %vm1288, %v1280, %v1282
      %v1294 = vsel %vm1288, %v1281, %v1283
      %v1295 = vsel %vm1288, %v1286, %v1280
      %v1296 = vsel %vm1288, %v1287, %v1281
      %s1297 = scalar_lea.vmem %s3, 160
      %v1298 = vld [vmem:[%s1297] sm:$0xff]
      %v1299 = vld [vmem:[%s1297 + $0x8] sm:$0xff]
      %v1300 = vld [vmem:[%s1297 + $0x10] sm:$0xff]
      %v1301 = vld [vmem:[%s1297 + $0x18] sm:$0xff]
      %v1302 = vmul.f32 %v1293, %v1298
      %v1303 = vmul.f32 %v1291, %v1299
      %v1304 = vmul.f32 %v1289, %v1300
      %v1305 = vmul.f32 %v1295, %v1301
      %v1306 = vmul.f32 %v1294, %v1298
      %v1307 = vmul.f32 %v1292, %v1299
      %v1308 = vmul.f32 %v1290, %v1300
      %v1309 = vmul.f32 %v1296, %v1301
      %v1310 = vadd.f32 %v1272, %v1302
      %v1311 = vadd.f32 %v1273, %v1303
      %v1312 = vadd.f32 %v1274, %v1304
      %v1313 = vadd.f32 %v1275, %v1305
      %v1314 = vadd.f32 %v1276, %v1306
      %v1315 = vadd.f32 %v1277, %v1307
      %v1316 = vadd.f32 %v1278, %v1308
      %v1317 = vadd.f32 %v1279, %v1309
      %s1318 = scalar_lea.vmem %s3, 192
      %v1319 = vld [vmem:[%s1318] sm:$0xff]
      %v1320 = vld [vmem:[%s1318 + $0x8] sm:$0xff]
      %v1321 = vld [vmem:[%s1318 + $0x10] sm:$0xff]
      %v1322 = vld [vmem:[%s1318 + $0x18] sm:$0xff]
      %v1323 = vmul.f32 %v1142, %v1319
      %v1324 = vmul.f32 %v1140, %v1320
      %v1325 = vmul.f32 %v1138, %v1321
      %v1326 = vmul.f32 %v1144, %v1322
      %v1327 = vmul.f32 %v1143, %v1319
      %v1328 = vmul.f32 %v1141, %v1320
      %v1329 = vmul.f32 %v1139, %v1321
      %v1330 = vmul.f32 %v1145, %v1322
      %v1331 = vadd.f32 %v1310, %v1323
      %v1332 = vadd.f32 %v1311, %v1324
      %v1333 = vadd.f32 %v1312, %v1325
      %v1334 = vadd.f32 %v1313, %v1326
      %v1335 = vadd.f32 %v1314, %v1327
      %v1336 = vadd.f32 %v1315, %v1328
      %v1337 = vadd.f32 %v1316, %v1329
      %v1338 = vadd.f32 %v1317, %v1330
      %s1339 = scalar_lea.vmem %s3, 224
      %v1340 = vld [vmem:[%s1339] sm:$0xff]
      %v1341 = vld [vmem:[%s1339 + $0x8] sm:$0xff]
      %v1342 = vld [vmem:[%s1339 + $0x10] sm:$0xff]
      %v1343 = vld [vmem:[%s1339 + $0x18] sm:$0xff]
      %v1344 = vmul.f32 %v1179, %v1340
      %v1345 = vmul.f32 %v1177, %v1341
      %v1346 = vmul.f32 %v1175, %v1342
      %v1347 = vmul.f32 %v1181, %v1343
      %v1348 = vmul.f32 %v1180, %v1340
      %v1349 = vmul.f32 %v1178, %v1341
      %v1350 = vmul.f32 %v1176, %v1342
      %v1351 = vmul.f32 %v1182, %v1343
      %v1352 = vadd.f32 %v1331, %v1344
      %v1353 = vadd.f32 %v1332, %v1345
      %v1354 = vadd.f32 %v1333, %v1346
      %v1355 = vadd.f32 %v1334, %v1347
      %v1356 = vadd.f32 %v1335, %v1348
      %v1357 = vadd.f32 %v1336, %v1349
      %v1358 = vadd.f32 %v1337, %v1350
      %v1359 = vadd.f32 %v1338, %v1351
      %s1360 = scalar_lea.vmem %s3, 256
      %v1361 = vld [vmem:[%s1360] sm:$0xff]
      %v1362 = vld [vmem:[%s1360 + $0x8] sm:$0xff]
      %v1363 = vld [vmem:[%s1360 + $0x10] sm:$0xff]
      %v1364 = vld [vmem:[%s1360 + $0x18] sm:$0xff]
      %v1365 = vmul.f32 %v1217, %v1361
      %v1366 = vmul.f32 %v1215, %v1362
      %v1367 = vmul.f32 %v1213, %v1363
      %v1368 = vmul.f32 %v1219, %v1364
      %v1369 = vmul.f32 %v1218, %v1361
      %v1370 = vmul.f32 %v1216, %v1362
      %v1371 = vmul.f32 %v1214, %v1363
      %v1372 = vmul.f32 %v1220, %v1364
      %v1373 = vadd.f32 %v1352, %v1365
      %v1374 = vadd.f32 %v1353, %v1366
      %v1375 = vadd.f32 %v1354, %v1367
      %v1376 = vadd.f32 %v1355, %v1368
      %v1377 = vadd.f32 %v1356, %v1369
      %v1378 = vadd.f32 %v1357, %v1370
      %v1379 = vadd.f32 %v1358, %v1371
      %v1380 = vadd.f32 %v1359, %v1372
      %v1381 = vld [vmem:[%s4] sm:$0x1]
      %v1383 = vlaneseq
      %v1384 = vshrl.u32 %v1383, 7
      %v1385 = vsub.s32 0, %v1384
      %v1386 = vrot.slane %v1381, %v1385
      %v1388 = vadd.f32 %v1373, %v1386
      %v1389 = vadd.f32 %v1374, %v1386
      %v1390 = vadd.f32 %v1375, %v1386
      %v1391 = vadd.f32 %v1376, %v1386
      %v1392 = vadd.f32 %v1377, %v1386
      %v1393 = vadd.f32 %v1378, %v1386
      %v1394 = vadd.f32 %v1379, %v1386
      %v1395 = vadd.f32 %v1380, %v1386
      %v1396 = vadd.f32 %v1098, %v1388
      %v1397 = vadd.f32 %v1099, %v1389
      %v1398 = vadd.f32 %v1100, %v1390
      %v1399 = vadd.f32 %v1101, %v1391
      %v1400 = vadd.f32 %v1102, %v1392
      %v1401 = vadd.f32 %v1103, %v1393
      %v1402 = vadd.f32 %v1104, %v1394
      %v1403 = vadd.f32 %v1105, %v1395
      %v1404 = vpack.c.bf16 %v1397, %v1396
      %v1405 = vpack.c.bf16 %v1399, %v1398
      %v1406 = vpack.c.bf16 %v1401, %v1400
      %v1407 = vpack.c.bf16 %v1403, %v1402
      %v1412 = vunpack.c.l.b16 %v1404
      %v1413 = vunpack.c.h.b16 %v1404
      %v1414 = vunpack.c.l.b16 %v1405
      %v1415 = vunpack.c.h.b16 %v1405
      %v1416 = vunpack.c.l.b16 %v1406
      %v1417 = vunpack.c.h.b16 %v1406
      %v1418 = vunpack.c.l.b16 %v1407
      %v1419 = vunpack.c.h.b16 %v1407
      %v1420 = vpack.c.b16 %v1412, %v1412
      %v1421 = vpack.c.b16 %v1413, %v1413
      %v1422 = vpack.c.b16 %v1414, %v1414
      %v1423 = vpack.c.b16 %v1415, %v1415
      %v1424 = vpack.c.b16 %v1416, %v1416
      %v1425 = vpack.c.b16 %v1417, %v1417
      %v1426 = vpack.c.b16 %v1418, %v1418
      %v1427 = vpack.c.b16 %v1419, %v1419
      %vm1436 = vcmask 125952
      %1437 = vst.msk [vmem:[%s281] sm:$0xf] %vm1436, %v1420
      %1438 = vst.msk [vmem:[%s281 + $0x4] sm:$0xf] %vm1436, %v1421
      %1439 = vst.msk [vmem:[%s281 + $0x8] sm:$0xf] %vm1436, %v1422
      %1440 = vst.msk [vmem:[%s281 + $0xc] sm:$0xf] %vm1436, %v1423
      %1441 = vst.msk [vmem:[%s281 + $0x10] sm:$0xf] %vm1436, %v1424
      %1442 = vst.msk [vmem:[%s281 + $0x14] sm:$0xf] %vm1436, %v1425
      %1443 = vst.msk [vmem:[%s281 + $0x18] sm:$0xf] %vm1436, %v1426
      %1444 = vst.msk [vmem:[%s281 + $0x1c] sm:$0xf] %vm1436, %v1427
      %s1445 = smul.u32 2, %s16
      %p1446 = scmp.lt.s32.totalorder %s1445, 3
      %s1447 = scalar_select %p1446, %s1445, 3
      %s1448 = smul.addr %s1447, 4
      %s1449 = smul.addr %s1448, 4
      %s1450 = scalar_lea.vmem %s5, %s1449
      // Predicated region
      $region41: #{cswin_block.5} parent=39 // pred_check
        %p1451 = pneg %p154
      $region42: #{cswin_block.5} parent=39 // pred_check_branch
        %1453 = sbr.rel (%p1451) target = $region44
      $region43: #{cswin_block.5} parent=39 // pred_region
        %s1454 = smul.u32 2, %s16
      $region44: #{cswin_block.5} parent=39 // pred_fallthru
        _
    $region40: #{cswin_block.5} parent=5 // pred_fallthru
      _
    %p1455 = scmp.le.s32.totalorder 2, %s11
    // Predicated region
    $region45: #{cswin_block.5} parent=5 // pred_check
      %p1456 = pneg %p1455
    $region46: #{cswin_block.5} parent=5 // pred_check_branch
      %1458 = sbr.rel (%p1456) target = $region48
    $region47: #{cswin_block.5} parent=5 // pred_region
      %s1459 = ssub.s32 %s11, 2
      // Predicated region
      $region49: #{cswin_block.5} parent=47 // pred_check
        %p1460 = pneg %p160
      $region50: #{cswin_block.5} parent=47 // pred_check_branch
        %1462 = sbr.rel (%p1460) target = $region52
      $region51: #{cswin_block.5} parent=47 // pred_region
        %s1463 = smul.u32 2, %s17
        %p1464 = scmp.lt.s32.totalorder %s1463, 3
        %s1465 = scalar_select %p1464, %s1463, 3
        %s1466 = smul.addr %s1465, 4
        %s1467 = smul.addr %s1466, 4
        %s1468 = scalar_lea.vmem %s5, %s1467
      $region52: #{cswin_block.5} parent=47 // pred_fallthru
        _
    $region48: #{cswin_block.5} parent=5 // pred_fallthru
      _
  $region6: #{cswin_block.5} parent=0 // loop_footer
    %s15 = sadd.s32 1, %s11
  $region7: #{cswin_block.5} parent=0 // loop_footer_branch
    %10 = sbr.rel target = $region3
  $region8: #{cswin_block.5} parent=0 // loop_exit
    _

// kernel: cswin_block.7
$region0: #{cswin_block.7}
  #allocation0 [shape = 'u32[]', space=smem, size = 0x4, offset = 0x4, fixed_abs, tag = 'smem constant byte address 0x4 - core index']
  #allocation1 [shape = 'u32[144,128]{1,0:T(1,128)}', space=vmem, size = 0x12000, scoped, tag = 'internal scratch']
  %s0 = inlined_call_operand.vmem [shape: bf16[128,16], index: 0, kind: input, shape index: {}]
  %s1 = inlined_call_operand.vmem [shape: bf16[128,16], index: 1, kind: input, shape index: {}]
  %s2 = inlined_call_operand.vmem [shape: bf16[32,32], index: 2, kind: input, shape index: {}]
  %s3 = inlined_call_operand.vmem [shape: f32[1,32], index: 3, kind: input, shape index: {}]
  %s4 = inlined_call_operand.vmem [shape: f32[1,32], index: 4, kind: input, shape index: {}]
  %s5 = inlined_call_operand.vmem [shape: f32[1,32], index: 5, kind: input, shape index: {}]
  %s6 = inlined_call_operand.vmem [shape: bf16[32,128], index: 6, kind: input, shape index: {}]
  %s7 = inlined_call_operand.vmem [shape: f32[1,128], index: 7, kind: input, shape index: {}]
  %s8 = inlined_call_operand.vmem [shape: bf16[128,32], index: 8, kind: input, shape index: {}]
  %s9 = inlined_call_operand.vmem [shape: f32[1,32], index: 9, kind: input, shape index: {}]
  %s10 = inlined_call_operand.vmem [shape: f32[128,32], index: 10, kind: output, shape index: {}]
  %s11 = sld [smem:[#allocation0]]
  $region50: #{cswin_block.7} parent=0
    _
  %s13 = ssub.s32 1, %s11
  %s14 = scalar_select 0, %s13, %s11
  // Predicated region
  $region2: #{cswin_block.7} parent=0 // pred_check
    _
  $region3: #{cswin_block.7} parent=0 // pred_check_branch
    %16 = sbr.rel (0) target = $region5
  $region4: #{cswin_block.7} parent=0 // pred_region
    _
  $region5: #{cswin_block.7} parent=0 // pred_fallthru
    _
  // Predicated region
  $region6: #{cswin_block.7} parent=0 // pred_check
    _
  $region7: #{cswin_block.7} parent=0 // pred_check_branch
    %18 = sbr.rel (0) target = $region9
  $region8: #{cswin_block.7} parent=0 // pred_region
    _
  $region9: #{cswin_block.7} parent=0 // pred_fallthru
    _
  // Predicated region
  $region10: #{cswin_block.7} parent=0 // pred_check
    _
  $region11: #{cswin_block.7} parent=0 // pred_check_branch
    %20 = sbr.rel (0) target = $region13
  $region12: #{cswin_block.7} parent=0 // pred_region
    _
  $region13: #{cswin_block.7} parent=0 // pred_fallthru
    _
  // Predicated region
  $region14: #{cswin_block.7} parent=0 // pred_check
    _
  $region15: #{cswin_block.7} parent=0 // pred_check_branch
    %22 = sbr.rel (0) target = $region17
  $region16: #{cswin_block.7} parent=0 // pred_region
    _
  $region17: #{cswin_block.7} parent=0 // pred_fallthru
    _
  // Predicated region
  $region18: #{cswin_block.7} parent=0 // pred_check
    _
  $region19: #{cswin_block.7} parent=0 // pred_check_branch
    %24 = sbr.rel (0) target = $region21
  $region20: #{cswin_block.7} parent=0 // pred_region
    _
  $region21: #{cswin_block.7} parent=0 // pred_fallthru
    _
  // Predicated region
  $region22: #{cswin_block.7} parent=0 // pred_check
    _
  $region23: #{cswin_block.7} parent=0 // pred_check_branch
    %26 = sbr.rel (0) target = $region25
  $region24: #{cswin_block.7} parent=0 // pred_region
    _
  $region25: #{cswin_block.7} parent=0 // pred_fallthru
    _
  // Predicated region
  $region26: #{cswin_block.7} parent=0 // pred_check
    _
  $region27: #{cswin_block.7} parent=0 // pred_check_branch
    %28 = sbr.rel (0) target = $region29
  $region28: #{cswin_block.7} parent=0 // pred_region
    _
  $region29: #{cswin_block.7} parent=0 // pred_fallthru
    _
  // Predicated region
  $region30: #{cswin_block.7} parent=0 // pred_check
    _
  $region31: #{cswin_block.7} parent=0 // pred_check_branch
    %30 = sbr.rel (0) target = $region33
  $region32: #{cswin_block.7} parent=0 // pred_region
    _
  $region33: #{cswin_block.7} parent=0 // pred_fallthru
    _
  // Predicated region
  $region34: #{cswin_block.7} parent=0 // pred_check
    _
  $region35: #{cswin_block.7} parent=0 // pred_check_branch
    %32 = sbr.rel (0) target = $region37
  $region36: #{cswin_block.7} parent=0 // pred_region
    _
  $region37: #{cswin_block.7} parent=0 // pred_fallthru
    _
  // Predicated region
  $region38: #{cswin_block.7} parent=0 // pred_check
    _
  $region39: #{cswin_block.7} parent=0 // pred_check_branch
    %34 = sbr.rel (0) target = $region41
  $region40: #{cswin_block.7} parent=0 // pred_region
    _
  $region41: #{cswin_block.7} parent=0 // pred_fallthru
    _
  %v36 = vld [vmem:[%s0] sm:$0xf]
  %v37 = vld [vmem:[%s0 + $0x4] sm:$0xf]
  %v38 = vld [vmem:[%s0 + $0x8] sm:$0xf]
  %v39 = vld [vmem:[%s0 + $0xc] sm:$0xf]
  %v40 = vld [vmem:[%s0 + $0x10] sm:$0xf]
  %v41 = vld [vmem:[%s0 + $0x14] sm:$0xf]
  %v42 = vld [vmem:[%s0 + $0x18] sm:$0xf]
  %v43 = vld [vmem:[%s0 + $0x1c] sm:$0xf]
  %v44 = vld [vmem:[%s0 + $0x20] sm:$0xf]
  %v45 = vld [vmem:[%s0 + $0x24] sm:$0xf]
  %v46 = vld [vmem:[%s0 + $0x28] sm:$0xf]
  %v47 = vld [vmem:[%s0 + $0x2c] sm:$0xf]
  %v48 = vld [vmem:[%s0 + $0x30] sm:$0xf]
  %v49 = vld [vmem:[%s0 + $0x34] sm:$0xf]
  %v50 = vld [vmem:[%s0 + $0x38] sm:$0xf]
  %v51 = vld [vmem:[%s0 + $0x3c] sm:$0xf]
  %v52 = vld [vmem:[%s1] sm:$0xf]
  %v53 = vld [vmem:[%s1 + $0x4] sm:$0xf]
  %v54 = vld [vmem:[%s1 + $0x8] sm:$0xf]
  %v55 = vld [vmem:[%s1 + $0xc] sm:$0xf]
  %v56 = vld [vmem:[%s1 + $0x10] sm:$0xf]
  %v57 = vld [vmem:[%s1 + $0x14] sm:$0xf]
  %v58 = vld [vmem:[%s1 + $0x18] sm:$0xf]
  %v59 = vld [vmem:[%s1 + $0x1c] sm:$0xf]
  %v60 = vld [vmem:[%s1 + $0x20] sm:$0xf]
  %v61 = vld [vmem:[%s1 + $0x24] sm:$0xf]
  %v62 = vld [vmem:[%s1 + $0x28] sm:$0xf]
  %v63 = vld [vmem:[%s1 + $0x2c] sm:$0xf]
  %v64 = vld [vmem:[%s1 + $0x30] sm:$0xf]
  %v65 = vld [vmem:[%s1 + $0x34] sm:$0xf]
  %v66 = vld [vmem:[%s1 + $0x38] sm:$0xf]
  %v67 = vld [vmem:[%s1 + $0x3c] sm:$0xf]
  %v84 = vunpack.c.l.b16 %v36
  %v85 = vunpack.c.l.b16 %v37
  %v86 = vunpack.c.l.b16 %v38
  %v87 = vunpack.c.l.b16 %v39
  %v88 = vunpack.c.l.b16 %v40
  %v89 = vunpack.c.l.b16 %v41
  %v90 = vunpack.c.l.b16 %v42
  %v91 = vunpack.c.l.b16 %v43
  %v92 = vunpack.c.l.b16 %v44
  %v93 = vunpack.c.l.b16 %v45
  %v94 = vunpack.c.l.b16 %v46
  %v95 = vunpack.c.l.b16 %v47
  %v96 = vunpack.c.l.b16 %v48
  %v97 = vunpack.c.l.b16 %v49
  %v98 = vunpack.c.l.b16 %v50
  %v99 = vunpack.c.l.b16 %v51
  %v100 = vpack.c.b16 %v85, %v84
  %v101 = vpack.c.b16 %v87, %v86
  %v102 = vpack.c.b16 %v89, %v88
  %v103 = vpack.c.b16 %v91, %v90
  %v104 = vpack.c.b16 %v93, %v92
  %v105 = vpack.c.b16 %v95, %v94
  %v106 = vpack.c.b16 %v97, %v96
  %v107 = vpack.c.b16 %v99, %v98
  %v124 = vunpack.c.l.b16 %v52
  %v125 = vunpack.c.l.b16 %v53
  %v126 = vunpack.c.l.b16 %v54
  %v127 = vunpack.c.l.b16 %v55
  %v128 = vunpack.c.l.b16 %v56
  %v129 = vunpack.c.l.b16 %v57
  %v130 = vunpack.c.l.b16 %v58
  %v131 = vunpack.c.l.b16 %v59
  %v132 = vunpack.c.l.b16 %v60
  %v133 = vunpack.c.l.b16 %v61
  %v134 = vunpack.c.l.b16 %v62
  %v135 = vunpack.c.l.b16 %v63
  %v136 = vunpack.c.l.b16 %v64
  %v137 = vunpack.c.l.b16 %v65
  %v138 = vunpack.c.l.b16 %v66
  %v139 = vunpack.c.l.b16 %v67
  %v140 = vpack.c.b16 %v125, %v124
  %v141 = vpack.c.b16 %v127, %v126
  %v142 = vpack.c.b16 %v129, %v128
  %v143 = vpack.c.b16 %v131, %v130
  %v144 = vpack.c.b16 %v133, %v132
  %v145 = vpack.c.b16 %v135, %v134
  %v146 = vpack.c.b16 %v137, %v136
  %v147 = vpack.c.b16 %v139, %v138
  %148 = vrot.lane.b32.xlu0 %v140, 16
  %v149 = vpop.permute.xlu0 %148
  %150 = vrot.lane.b32.xlu0 %v141, 16
  %v151 = vpop.permute.xlu0 %150
  %152 = vrot.lane.b32.xlu0 %v142, 16
  %v153 = vpop.permute.xlu0 %152
  %154 = vrot.lane.b32.xlu0 %v143, 16
  %v155 = vpop.permute.xlu0 %154
  %156 = vrot.lane.b32.xlu0 %v144, 16
  %v157 = vpop.permute.xlu0 %156
  %158 = vrot.lane.b32.xlu0 %v145, 16
  %v159 = vpop.permute.xlu0 %158
  %160 = vrot.lane.b32.xlu0 %v146, 16
  %v161 = vpop.permute.xlu0 %160
  %162 = vrot.lane.b32.xlu0 %v147, 16
  %v163 = vpop.permute.xlu0 %162
  %vm164 = vcmask 130048
  %v167 = vsel %vm164, %v100, %v149
  %v171 = vsel %vm164, %v101, %v151
  %v175 = vsel %vm164, %v102, %v153
  %v179 = vsel %vm164, %v103, %v155
  %v183 = vsel %vm164, %v104, %v157
  %v187 = vsel %vm164, %v105, %v159
  %v191 = vsel %vm164, %v106, %v161
  %v195 = vsel %vm164, %v107, %v163
  %v197 = vunpack.c.l.bf16 %v167
  %v198 = vunpack.c.h.bf16 %v167
  %v199 = vunpack.c.l.bf16 %v171
  %v200 = vunpack.c.h.bf16 %v171
  %v201 = vunpack.c.l.bf16 %v175
  %v202 = vunpack.c.h.bf16 %v175
  %v203 = vunpack.c.l.bf16 %v179
  %v204 = vunpack.c.h.bf16 %v179
  %v205 = vunpack.c.l.bf16 %v183
  %v206 = vunpack.c.h.bf16 %v183
  %v207 = vunpack.c.l.bf16 %v187
  %v208 = vunpack.c.h.bf16 %v187
  %v209 = vunpack.c.l.bf16 %v191
  %v210 = vunpack.c.h.bf16 %v191
  %v211 = vunpack.c.l.bf16 %v195
  %v212 = vunpack.c.h.bf16 %v195
  %v213 = vld [vmem:[%s2] sm:$0xf]
  %v214 = vld [vmem:[%s2 + $0x4] sm:$0xf]
  %v215 = vld [vmem:[%s2 + $0x8] sm:$0xf]
  %v216 = vld [vmem:[%s2 + $0xc] sm:$0xf]
  %v221 = vunpack.c.l.b16 %v213
  %v222 = vunpack.c.l.b16 %v214
  %v223 = vunpack.c.l.b16 %v215
  %v224 = vunpack.c.l.b16 %v216
  %v225 = vpack.c.b16 %v222, %v221
  %v226 = vpack.c.b16 %v224, %v223
  %vm229 = vcmask 261120
  %v230 = vsel %vm229, %v167, 0
  %v232 = vsel %vm229, %v171, 0
  %v234 = vsel %vm229, %v175, 0
  %v236 = vsel %vm229, %v179, 0
  %v238 = vsel %vm229, %v183, 0
  %v240 = vsel %vm229, %v187, 0
  %v242 = vsel %vm229, %v191, 0
  %v244 = vsel %vm229, %v195, 0
  %246 = vmatprep.subr.bf16.mxu0 0
  %247 = vmatpush1.bf16.msra.mxu0 %v225
  %248 = vmatprep.subr.bf16.mxu0 0
  %249 = vmatpush1.bf16.msra.mxu0 %v226
  %250 = vmatprep.subr.bf16.mxu0 0
  %251 = vmatpush1.bf16.msra.mxu0 0
  %252 = vmatprep.subr.bf16.mxu0 0
  %253 = vmatpush1.bf16.msra.mxu0 0
  %254 = vmatprep.subr.bf16.mxu0 0
  %255 = vmatpush1.bf16.msra.mxu0 0
  %256 = vmatprep.subr.bf16.mxu0 0
  %257 = vmatpush1.bf16.msra.mxu0 0
  %258 = vmatprep.subr.bf16.mxu0 0
  %259 = vmatpush1.bf16.msra.mxu0 0
  %260 = vmatprep.subr.bf16.mxu0 0
  %261 = vmatpush1.bf16.msra.mxu0 0
  %262 = vmatprep.subr.bf16.mxu0 0
  %263 = vmatpush1.bf16.msra.mxu0 0
  %264 = vmatprep.subr.bf16.mxu0 0
  %265 = vmatpush1.bf16.msra.mxu0 0
  %266 = vmatprep.subr.bf16.mxu0 0
  %267 = vmatpush1.bf16.msra.mxu0 0
  %268 = vmatprep.subr.bf16.mxu0 0
  %269 = vmatpush1.bf16.msra.mxu0 0
  %270 = vmatprep.subr.bf16.mxu0 0
  %271 = vmatpush1.bf16.msra.mxu0 0
  %272 = vmatprep.subr.bf16.mxu0 0
  %273 = vmatpush1.bf16.msra.mxu0 0
  %274 = vmatprep.subr.bf16.mxu0 0
  %275 = vmatpush1.bf16.msra.mxu0 0
  %276 = vmatprep.subr.bf16.mxu0 0
  %277 = vmatpush1.bf16.msra.mxu0 0
  %278 = vmatprep.mubr.bf16.mxu0 0
  %279 = vmatmul.mubr.bf16.gmra.mrb[0].mxu0 %v230
  %v280 = vpop.f32.mrb[0].mxu0
  %v281 = vadd.f32 0.0, %v280
  %v282 = vpop.f32.mrb[0].mxu0
  %v283 = vpop.f32.mrb[0].mxu0
  %v284 = vadd.f32 0.0, %v283
  %v285 = vpop.f32.mrb[0].mxu0
  %286 = vmatprep.mubr.bf16.mxu0 0
  %287 = vmatmul.mubr.bf16.gmra.mrb[0].mxu0 %v232
  %v288 = vpop.f32.mrb[0].mxu0
  %v289 = vadd.f32 0.0, %v288
  %v290 = vpop.f32.mrb[0].mxu0
  %v291 = vpop.f32.mrb[0].mxu0
  %v292 = vadd.f32 0.0, %v291
  %v293 = vpop.f32.mrb[0].mxu0
  %294 = vmatprep.mubr.bf16.mxu0 0
  %295 = vmatmul.mubr.bf16.gmra.mrb[0].mxu0 %v234
  %v296 = vpop.f32.mrb[0].mxu0
  %v297 = vadd.f32 0.0, %v296
  %v298 = vpop.f32.mrb[0].mxu0
  %v299 = vpop.f32.mrb[0].mxu0
  %v300 = vadd.f32 0.0, %v299
  %v301 = vpop.f32.mrb[0].mxu0
  %302 = vmatprep.mubr.bf16.mxu0 0
  %303 = vmatmul.mubr.bf16.gmra.mrb[0].mxu0 %v236
  %v304 = vpop.f32.mrb[0].mxu0
  %v305 = vadd.f32 0.0, %v304
  %v306 = vpop.f32.mrb[0].mxu0
  %v307 = vpop.f32.mrb[0].mxu0
  %v308 = vadd.f32 0.0, %v307
  %v309 = vpop.f32.mrb[0].mxu0
  %310 = vmatprep.mubr.bf16.mxu0 0
  %311 = vmatmul.mubr.bf16.gmra.mrb[0].mxu0 %v238
  %v312 = vpop.f32.mrb[0].mxu0
  %v313 = vadd.f32 0.0, %v312
  %v314 = vpop.f32.mrb[0].mxu0
  %v315 = vpop.f32.mrb[0].mxu0
  %v316 = vadd.f32 0.0, %v315
  %v317 = vpop.f32.mrb[0].mxu0
  %318 = vmatprep.mubr.bf16.mxu0 0
  %319 = vmatmul.mubr.bf16.gmra.mrb[0].mxu0 %v240
  %v320 = vpop.f32.mrb[0].mxu0
  %v321 = vadd.f32 0.0, %v320
  %v322 = vpop.f32.mrb[0].mxu0
  %v323 = vpop.f32.mrb[0].mxu0
  %v324 = vadd.f32 0.0, %v323
  %v325 = vpop.f32.mrb[0].mxu0
  %326 = vmatprep.mubr.bf16.mxu0 0
  %327 = vmatmul.mubr.bf16.gmra.mrb[0].mxu0 %v242
  %v328 = vpop.f32.mrb[0].mxu0
  %v329 = vadd.f32 0.0, %v328
  %v330 = vpop.f32.mrb[0].mxu0
  %v331 = vpop.f32.mrb[0].mxu0
  %v332 = vadd.f32 0.0, %v331
  %v333 = vpop.f32.mrb[0].mxu0
  %334 = vmatprep.mubr.bf16.mxu0 0
  %335 = vmatmul.mubr.bf16.gmra.mrb[0].mxu0 %v244
  %v336 = vpop.f32.mrb[0].mxu0
  %v337 = vadd.f32 0.0, %v336
  %v338 = vpop.f32.mrb[0].mxu0
  %v339 = vpop.f32.mrb[0].mxu0
  %v340 = vadd.f32 0.0, %v339
  %v341 = vpop.f32.mrb[0].mxu0
  %342 = vdwg.mxu0
  %v343 = vadd.f32 %v197, %v281
  %v344 = vadd.f32 %v198, %v284
  %v345 = vadd.f32 %v199, %v289
  %v346 = vadd.f32 %v200, %v292
  %v347 = vadd.f32 %v201, %v297
  %v348 = vadd.f32 %v202, %v300
  %v349 = vadd.f32 %v203, %v305
  %v350 = vadd.f32 %v204, %v308
  %v351 = vadd.f32 %v205, %v313
  %v352 = vadd.f32 %v206, %v316
  %v353 = vadd.f32 %v207, %v321
  %v354 = vadd.f32 %v208, %v324
  %v355 = vadd.f32 %v209, %v329
  %v356 = vadd.f32 %v210, %v332
  %v357 = vadd.f32 %v211, %v337
  %v358 = vadd.f32 %v212, %v340
  %v359 = vld [vmem:[%s3] sm:$0x1]
  %v361 = vlaneseq
  %v362 = vshrl.u32 %v361, 7
  %v363 = vsub.s32 0, %v362
  %v364 = vrot.slane %v359, %v363
  %v366 = vadd.f32 %v343, %v364
  %v367 = vadd.f32 %v344, %v364
  %v368 = vadd.f32 %v345, %v364
  %v369 = vadd.f32 %v346, %v364
  %v370 = vadd.f32 %v347, %v364
  %v371 = vadd.f32 %v348, %v364
  %v372 = vadd.f32 %v349, %v364
  %v373 = vadd.f32 %v350, %v364
  %v374 = vadd.f32 %v351, %v364
  %v375 = vadd.f32 %v352, %v364
  %v376 = vadd.f32 %v353, %v364
  %v377 = vadd.f32 %v354, %v364
  %v378 = vadd.f32 %v355, %v364
  %v379 = vadd.f32 %v356, %v364
  %v380 = vadd.f32 %v357, %v364
  %v381 = vadd.f32 %v358, %v364
  %v382 = vsel %vm229, %v366, 0.0
  %383 = vadd.xlane.f32.xlu0 %v382
  %v384 = vpop.xlane.xlu0 %383
  %v385 = vsel %vm229, %v367, 0.0
  %386 = vadd.xlane.f32.xlu0 %v385
  %v387 = vpop.xlane.xlu0 %386
  %v388 = vsel %vm229, %v368, 0.0
  %389 = vadd.xlane.f32.xlu0 %v388
  %v390 = vpop.xlane.xlu0 %389
  %v391 = vsel %vm229, %v369, 0.0
  %392 = vadd.xlane.f32.xlu0 %v391
  %v393 = vpop.xlane.xlu0 %392
  %v394 = vsel %vm229, %v370, 0.0
  %395 = vadd.xlane.f32.xlu0 %v394
  %v396 = vpop.xlane.xlu0 %395
  %v397 = vsel %vm229, %v371, 0.0
  %398 = vadd.xlane.f32.xlu0 %v397
  %v399 = vpop.xlane.xlu0 %398
  %v400 = vsel %vm229, %v372, 0.0
  %401 = vadd.xlane.f32.xlu0 %v400
  %v402 = vpop.xlane.xlu0 %401
  %v403 = vsel %vm229, %v373, 0.0
  %404 = vadd.xlane.f32.xlu0 %v403
  %v405 = vpop.xlane.xlu0 %404
  %v406 = vsel %vm229, %v374, 0.0
  %407 = vadd.xlane.f32.xlu0 %v406
  %v408 = vpop.xlane.xlu0 %407
  %v409 = vsel %vm229, %v375, 0.0
  %410 = vadd.xlane.f32.xlu0 %v409
  %v411 = vpop.xlane.xlu0 %410
  %v412 = vsel %vm229, %v376, 0.0
  %413 = vadd.xlane.f32.xlu0 %v412
  %v414 = vpop.xlane.xlu0 %413
  %v415 = vsel %vm229, %v377, 0.0
  %416 = vadd.xlane.f32.xlu0 %v415
  %v417 = vpop.xlane.xlu0 %416
  %v418 = vsel %vm229, %v378, 0.0
  %419 = vadd.xlane.f32.xlu0 %v418
  %v420 = vpop.xlane.xlu0 %419
  %v421 = vsel %vm229, %v379, 0.0
  %422 = vadd.xlane.f32.xlu0 %v421
  %v423 = vpop.xlane.xlu0 %422
  %v424 = vsel %vm229, %v380, 0.0
  %425 = vadd.xlane.f32.xlu0 %v424
  %v426 = vpop.xlane.xlu0 %425
  %v427 = vsel %vm229, %v381, 0.0
  %428 = vadd.xlane.f32.xlu0 %v427
  %v429 = vpop.xlane.xlu0 %428
  %v430 = vrcp.pop 32.0
  %v431 = vmul.f32 %v384, %v430
  %v432 = vmul.f32 %v387, %v430
  %v433 = vmul.f32 %v390, %v430
  %v434 = vmul.f32 %v393, %v430
  %v435 = vmul.f32 %v396, %v430
  %v436 = vmul.f32 %v399, %v430
  %v437 = vmul.f32 %v402, %v430
  %v438 = vmul.f32 %v405, %v430
  %v439 = vmul.f32 %v408, %v430
  %v440 = vmul.f32 %v411, %v430
  %v441 = vmul.f32 %v414, %v430
  %v442 = vmul.f32 %v417, %v430
  %v443 = vmul.f32 %v420, %v430
  %v444 = vmul.f32 %v423, %v430
  %v445 = vmul.f32 %v426, %v430
  %v446 = vmul.f32 %v429, %v430
  %v447 = vsub.f32 %v366, %v431
  %v448 = vsub.f32 %v367, %v432
  %v449 = vsub.f32 %v368, %v433
  %v450 = vsub.f32 %v369, %v434
  %v451 = vsub.f32 %v370, %v435
  %v452 = vsub.f32 %v371, %v436
  %v453 = vsub.f32 %v372, %v437
  %v454 = vsub.f32 %v373, %v438
  %v455 = vsub.f32 %v374, %v439
  %v456 = vsub.f32 %v375, %v440
  %v457 = vsub.f32 %v376, %v441
  %v458 = vsub.f32 %v377, %v442
  %v459 = vsub.f32 %v378, %v443
  %v460 = vsub.f32 %v379, %v444
  %v461 = vsub.f32 %v380, %v445
  %v462 = vsub.f32 %v381, %v446
  %v463 = vmul.f32 %v447, %v447
  %v464 = vmul.f32 %v448, %v448
  %v465 = vmul.f32 %v449, %v449
  %v466 = vmul.f32 %v450, %v450
  %v467 = vmul.f32 %v451, %v451
  %v468 = vmul.f32 %v452, %v452
  %v469 = vmul.f32 %v453, %v453
  %v470 = vmul.f32 %v454, %v454
  %v471 = vmul.f32 %v455, %v455
  %v472 = vmul.f32 %v456, %v456
  %v473 = vmul.f32 %v457, %v457
  %v474 = vmul.f32 %v458, %v458
  %v475 = vmul.f32 %v459, %v459
  %v476 = vmul.f32 %v460, %v460
  %v477 = vmul.f32 %v461, %v461
  %v478 = vmul.f32 %v462, %v462
  %v479 = vsel %vm229, %v463, 0.0
  %480 = vadd.xlane.f32.xlu0 %v479
  %v481 = vpop.xlane.xlu0 %480
  %v482 = vsel %vm229, %v464, 0.0
  %483 = vadd.xlane.f32.xlu0 %v482
  %v484 = vpop.xlane.xlu0 %483
  %v485 = vsel %vm229, %v465, 0.0
  %486 = vadd.xlane.f32.xlu0 %v485
  %v487 = vpop.xlane.xlu0 %486
  %v488 = vsel %vm229, %v466, 0.0
  %489 = vadd.xlane.f32.xlu0 %v488
  %v490 = vpop.xlane.xlu0 %489
  %v491 = vsel %vm229, %v467, 0.0
  %492 = vadd.xlane.f32.xlu0 %v491
  %v493 = vpop.xlane.xlu0 %492
  %v494 = vsel %vm229, %v468, 0.0
  %495 = vadd.xlane.f32.xlu0 %v494
  %v496 = vpop.xlane.xlu0 %495
  %v497 = vsel %vm229, %v469, 0.0
  %498 = vadd.xlane.f32.xlu0 %v497
  %v499 = vpop.xlane.xlu0 %498
  %v500 = vsel %vm229, %v470, 0.0
  %501 = vadd.xlane.f32.xlu0 %v500
  %v502 = vpop.xlane.xlu0 %501
  %v503 = vsel %vm229, %v471, 0.0
  %504 = vadd.xlane.f32.xlu0 %v503
  %v505 = vpop.xlane.xlu0 %504
  %v506 = vsel %vm229, %v472, 0.0
  %507 = vadd.xlane.f32.xlu0 %v506
  %v508 = vpop.xlane.xlu0 %507
  %v509 = vsel %vm229, %v473, 0.0
  %510 = vadd.xlane.f32.xlu0 %v509
  %v511 = vpop.xlane.xlu0 %510
  %v512 = vsel %vm229, %v474, 0.0
  %513 = vadd.xlane.f32.xlu0 %v512
  %v514 = vpop.xlane.xlu0 %513
  %v515 = vsel %vm229, %v475, 0.0
  %516 = vadd.xlane.f32.xlu0 %v515
  %v517 = vpop.xlane.xlu0 %516
  %v518 = vsel %vm229, %v476, 0.0
  %519 = vadd.xlane.f32.xlu0 %v518
  %v520 = vpop.xlane.xlu0 %519
  %v521 = vsel %vm229, %v477, 0.0
  %522 = vadd.xlane.f32.xlu0 %v521
  %v523 = vpop.xlane.xlu0 %522
  %v524 = vsel %vm229, %v478, 0.0
  %525 = vadd.xlane.f32.xlu0 %v524
  %v526 = vpop.xlane.xlu0 %525
  %v527 = vmul.f32 %v481, %v430
  %v528 = vmul.f32 %v484, %v430
  %v529 = vmul.f32 %v487, %v430
  %v530 = vmul.f32 %v490, %v430
  %v531 = vmul.f32 %v493, %v430
  %v532 = vmul.f32 %v496, %v430
  %v533 = vmul.f32 %v499, %v430
  %v534 = vmul.f32 %v502, %v430
  %v535 = vmul.f32 %v505, %v430
  %v536 = vmul.f32 %v508, %v430
  %v537 = vmul.f32 %v511, %v430
  %v538 = vmul.f32 %v514, %v430
  %v539 = vmul.f32 %v517, %v430
  %v540 = vmul.f32 %v520, %v430
  %v541 = vmul.f32 %v523, %v430
  %v542 = vmul.f32 %v526, %v430
  %v543 = vadd.f32 %v527, 1e-05
  %v544 = vadd.f32 %v528, 1e-05
  %v545 = vadd.f32 %v529, 1e-05
  %v546 = vadd.f32 %v530, 1e-05
  %v547 = vadd.f32 %v531, 1e-05
  %v548 = vadd.f32 %v532, 1e-05
  %v549 = vadd.f32 %v533, 1e-05
  %v550 = vadd.f32 %v534, 1e-05
  %v551 = vadd.f32 %v535, 1e-05
  %v552 = vadd.f32 %v536, 1e-05
  %v553 = vadd.f32 %v537, 1e-05
  %v554 = vadd.f32 %v538, 1e-05
  %v555 = vadd.f32 %v539, 1e-05
  %v556 = vadd.f32 %v540, 1e-05
  %v557 = vadd.f32 %v541, 1e-05
  %v558 = vadd.f32 %v542, 1e-05
  %v559 = vrsqrt.pop %v543
  %v560 = vrsqrt.pop %v544
  %v561 = vrsqrt.pop %v545
  %v562 = vrsqrt.pop %v546
  %v563 = vrsqrt.pop %v547
  %v564 = vrsqrt.pop %v548
  %v565 = vrsqrt.pop %v549
  %v566 = vrsqrt.pop %v550
  %v567 = vrsqrt.pop %v551
  %v568 = vrsqrt.pop %v552
  %v569 = vrsqrt.pop %v553
  %v570 = vrsqrt.pop %v554
  %v571 = vrsqrt.pop %v555
  %v572 = vrsqrt.pop %v556
  %v573 = vrsqrt.pop %v557
  %v574 = vrsqrt.pop %v558
  %v575 = vmul.f32 %v447, %v559
  %v576 = vmul.f32 %v448, %v560
  %v577 = vmul.f32 %v449, %v561
  %v578 = vmul.f32 %v450, %v562
  %v579 = vmul.f32 %v451, %v563
  %v580 = vmul.f32 %v452, %v564
  %v581 = vmul.f32 %v453, %v565
  %v582 = vmul.f32 %v454, %v566
  %v583 = vmul.f32 %v455, %v567
  %v584 = vmul.f32 %v456, %v568
  %v585 = vmul.f32 %v457, %v569
  %v586 = vmul.f32 %v458, %v570
  %v587 = vmul.f32 %v459, %v571
  %v588 = vmul.f32 %v460, %v572
  %v589 = vmul.f32 %v461, %v573
  %v590 = vmul.f32 %v462, %v574
  %v591 = vld [vmem:[%s4] sm:$0x1]
  %v593 = vlaneseq
  %v594 = vshrl.u32 %v593, 7
  %v595 = vsub.s32 0, %v594
  %v596 = vrot.slane %v591, %v595
  %v598 = vmul.f32 %v575, %v596
  %v599 = vmul.f32 %v576, %v596
  %v600 = vmul.f32 %v577, %v596
  %v601 = vmul.f32 %v578, %v596
  %v602 = vmul.f32 %v579, %v596
  %v603 = vmul.f32 %v580, %v596
  %v604 = vmul.f32 %v581, %v596
  %v605 = vmul.f32 %v582, %v596
  %v606 = vmul.f32 %v583, %v596
  %v607 = vmul.f32 %v584, %v596
  %v608 = vmul.f32 %v585, %v596
  %v609 = vmul.f32 %v586, %v596
  %v610 = vmul.f32 %v587, %v596
  %v611 = vmul.f32 %v588, %v596
  %v612 = vmul.f32 %v589, %v596
  %v613 = vmul.f32 %v590, %v596
  %v614 = vld [vmem:[%s5] sm:$0x1]
  %v616 = vlaneseq
  %v617 = vshrl.u32 %v616, 7
  %v618 = vsub.s32 0, %v617
  %v619 = vrot.slane %v614, %v618
  %v621 = vadd.f32 %v598, %v619
  %v622 = vadd.f32 %v599, %v619
  %v623 = vadd.f32 %v600, %v619
  %v624 = vadd.f32 %v601, %v619
  %v625 = vadd.f32 %v602, %v619
  %v626 = vadd.f32 %v603, %v619
  %v627 = vadd.f32 %v604, %v619
  %v628 = vadd.f32 %v605, %v619
  %v629 = vadd.f32 %v606, %v619
  %v630 = vadd.f32 %v607, %v619
  %v631 = vadd.f32 %v608, %v619
  %v632 = vadd.f32 %v609, %v619
  %v633 = vadd.f32 %v610, %v619
  %v634 = vadd.f32 %v611, %v619
  %v635 = vadd.f32 %v612, %v619
  %v636 = vadd.f32 %v613, %v619
  %v637 = vpack.c.bf16 %v622, %v621
  %v638 = vpack.c.bf16 %v624, %v623
  %v639 = vpack.c.bf16 %v626, %v625
  %v640 = vpack.c.bf16 %v628, %v627
  %v641 = vpack.c.bf16 %v630, %v629
  %v642 = vpack.c.bf16 %v632, %v631
  %v643 = vpack.c.bf16 %v634, %v633
  %v644 = vpack.c.bf16 %v636, %v635
  %v645 = vld [vmem:[%s6] sm:$0xf]
  %v646 = vld [vmem:[%s6 + $0x4] sm:$0xf]
  %v647 = vld [vmem:[%s6 + $0x8] sm:$0xf]
  %v648 = vld [vmem:[%s6 + $0xc] sm:$0xf]
  %v649 = vld [vmem:[%s7] sm:$0x1]
  %v651 = vlaneseq
  %v652 = vshrl.u32 %v651, 7
  %v653 = vsub.s32 0, %v652
  %v654 = vrot.slane %v649, %v653
  %v660 = vunpack.c.l.b16 %v645
  %v661 = vunpack.c.l.b16 %v646
  %v662 = vunpack.c.l.b16 %v647
  %v663 = vunpack.c.l.b16 %v648
  %v664 = vpack.c.b16 %v661, %v660
  %v665 = vpack.c.b16 %v663, %v662
  %v669 = vsel %vm229, %v637, 0
  %v672 = vsel %vm229, %v638, 0
  %v675 = vsel %vm229, %v639, 0
  %v678 = vsel %vm229, %v640, 0
  %v681 = vsel %vm229, %v641, 0
  %v684 = vsel %vm229, %v642, 0
  %v687 = vsel %vm229, %v643, 0
  %v690 = vsel %vm229, %v644, 0
  %692 = vmatprep.subr.bf16.mxu0 0
  %693 = vmatpush1.bf16.msra.mxu0 %v664
  %694 = vmatprep.subr.bf16.mxu0 0
  %695 = vmatpush1.bf16.msra.mxu0 %v665
  %696 = vmatprep.subr.bf16.mxu0 0
  %697 = vmatpush1.bf16.msra.mxu0 0
  %698 = vmatprep.subr.bf16.mxu0 0
  %699 = vmatpush1.bf16.msra.mxu0 0
  %700 = vmatprep.subr.bf16.mxu0 0
  %701 = vmatpush1.bf16.msra.mxu0 0
  %702 = vmatprep.subr.bf16.mxu0 0
  %703 = vmatpush1.bf16.msra.mxu0 0
  %704 = vmatprep.subr.bf16.mxu0 0
  %705 = vmatpush1.bf16.msra.mxu0 0
  %706 = vmatprep.subr.bf16.mxu0 0
  %707 = vmatpush1.bf16.msra.mxu0 0
  %708 = vmatprep.subr.bf16.mxu0 0
  %709 = vmatpush1.bf16.msra.mxu0 0
  %710 = vmatprep.subr.bf16.mxu0 0
  %711 = vmatpush1.bf16.msra.mxu0 0
  %712 = vmatprep.subr.bf16.mxu0 0
  %713 = vmatpush1.bf16.msra.mxu0 0
  %714 = vmatprep.subr.bf16.mxu0 0
  %715 = vmatpush1.bf16.msra.mxu0 0
  %716 = vmatprep.subr.bf16.mxu0 0
  %717 = vmatpush1.bf16.msra.mxu0 0
  %718 = vmatprep.subr.bf16.mxu0 0
  %719 = vmatpush1.bf16.msra.mxu0 0
  %720 = vmatprep.subr.bf16.mxu0 0
  %721 = vmatpush1.bf16.msra.mxu0 0
  %722 = vmatprep.subr.bf16.mxu0 0
  %723 = vmatpush1.bf16.msra.mxu0 0
  %724 = vmatprep.mubr.bf16.mxu0 0
  %725 = vmatmul.mubr.bf16.gmra.mrb[0].mxu0 %v669
  %v726 = vpop.f32.mrb[0].mxu0
  %v727 = vadd.f32 %v654, %v726
  %v728 = vpop.f32.mrb[0].mxu0
  %v729 = vpop.f32.mrb[0].mxu0
  %v730 = vadd.f32 %v654, %v729
  %v731 = vpop.f32.mrb[0].mxu0
  %732 = vmatprep.mubr.bf16.mxu0 0
  %733 = vmatmul.mubr.bf16.gmra.mrb[0].mxu0 %v672
  %v734 = vpop.f32.mrb[0].mxu0
  %v735 = vadd.f32 %v654, %v734
  %v736 = vpop.f32.mrb[0].mxu0
  %v737 = vpop.f32.mrb[0].mxu0
  %v738 = vadd.f32 %v654, %v737
  %v739 = vpop.f32.mrb[0].mxu0
  %740 = vmatprep.mubr.bf16.mxu0 0
  %741 = vmatmul.mubr.bf16.gmra.mrb[0].mxu0 %v675
  %v742 = vpop.f32.mrb[0].mxu0
  %v743 = vadd.f32 %v654, %v742
  %v744 = vpop.f32.mrb[0].mxu0
  %v745 = vpop.f32.mrb[0].mxu0
  %v746 = vadd.f32 %v654, %v745
  %v747 = vpop.f32.mrb[0].mxu0
  %748 = vmatprep.mubr.bf16.mxu0 0
  %749 = vmatmul.mubr.bf16.gmra.mrb[0].mxu0 %v678
  %v750 = vpop.f32.mrb[0].mxu0
  %v751 = vadd.f32 %v654, %v750
  %v752 = vpop.f32.mrb[0].mxu0
  %v753 = vpop.f32.mrb[0].mxu0
  %v754 = vadd.f32 %v654, %v753
  %v755 = vpop.f32.mrb[0].mxu0
  %756 = vmatprep.mubr.bf16.mxu0 0
  %757 = vmatmul.mubr.bf16.gmra.mrb[0].mxu0 %v681
  %v758 = vpop.f32.mrb[0].mxu0
  %v759 = vadd.f32 %v654, %v758
  %v760 = vpop.f32.mrb[0].mxu0
  %v761 = vpop.f32.mrb[0].mxu0
  %v762 = vadd.f32 %v654, %v761
  %v763 = vpop.f32.mrb[0].mxu0
  %764 = vmatprep.mubr.bf16.mxu0 0
  %765 = vmatmul.mubr.bf16.gmra.mrb[0].mxu0 %v684
  %v766 = vpop.f32.mrb[0].mxu0
  %v767 = vadd.f32 %v654, %v766
  %v768 = vpop.f32.mrb[0].mxu0
  %v769 = vpop.f32.mrb[0].mxu0
  %v770 = vadd.f32 %v654, %v769
  %v771 = vpop.f32.mrb[0].mxu0
  %772 = vmatprep.mubr.bf16.mxu0 0
  %773 = vmatmul.mubr.bf16.gmra.mrb[0].mxu0 %v687
  %v774 = vpop.f32.mrb[0].mxu0
  %v775 = vadd.f32 %v654, %v774
  %v776 = vpop.f32.mrb[0].mxu0
  %v777 = vpop.f32.mrb[0].mxu0
  %v778 = vadd.f32 %v654, %v777
  %v779 = vpop.f32.mrb[0].mxu0
  %780 = vmatprep.mubr.bf16.mxu0 0
  %781 = vmatmul.mubr.bf16.gmra.mrb[0].mxu0 %v690
  %v782 = vpop.f32.mrb[0].mxu0
  %v783 = vadd.f32 %v654, %v782
  %v784 = vpop.f32.mrb[0].mxu0
  %v785 = vpop.f32.mrb[0].mxu0
  %v786 = vadd.f32 %v654, %v785
  %v787 = vpop.f32.mrb[0].mxu0
  %788 = vdwg.mxu0
  %v789 = vmul.f32 %v727, %v727
  %v790 = vmul.f32 %v730, %v730
  %v791 = vmul.f32 %v735, %v735
  %v792 = vmul.f32 %v738, %v738
  %v793 = vmul.f32 %v743, %v743
  %v794 = vmul.f32 %v746, %v746
  %v795 = vmul.f32 %v751, %v751
  %v796 = vmul.f32 %v754, %v754
  %v797 = vmul.f32 %v759, %v759
  %v798 = vmul.f32 %v762, %v762
  %v799 = vmul.f32 %v767, %v767
  %v800 = vmul.f32 %v770, %v770
  %v801 = vmul.f32 %v775, %v775
  %v802 = vmul.f32 %v778, %v778
  %v803 = vmul.f32 %v783, %v783
  %v804 = vmul.f32 %v786, %v786
  %v805 = vmul.f32 %v727, %v789
  %v806 = vmul.f32 %v730, %v790
  %v807 = vmul.f32 %v735, %v791
  %v808 = vmul.f32 %v738, %v792
  %v809 = vmul.f32 %v743, %v793
  %v810 = vmul.f32 %v746, %v794
  %v811 = vmul.f32 %v751, %v795
  %v812 = vmul.f32 %v754, %v796
  %v813 = vmul.f32 %v759, %v797
  %v814 = vmul.f32 %v762, %v798
  %v815 = vmul.f32 %v767, %v799
  %v816 = vmul.f32 %v770, %v800
  %v817 = vmul.f32 %v775, %v801
  %v818 = vmul.f32 %v778, %v802
  %v819 = vmul.f32 %v783, %v803
  %v820 = vmul.f32 %v786, %v804
  %v821 = vmul.f32 %v805, 0.044715
  %v822 = vmul.f32 %v806, 0.044715
  %v823 = vmul.f32 %v807, 0.044715
  %v824 = vmul.f32 %v808, 0.044715
  %v825 = vmul.f32 %v809, 0.044715
  %v826 = vmul.f32 %v810, 0.044715
  %v827 = vmul.f32 %v811, 0.044715
  %v828 = vmul.f32 %v812, 0.044715
  %v829 = vmul.f32 %v813, 0.044715
  %v830 = vmul.f32 %v814, 0.044715
  %v831 = vmul.f32 %v815, 0.044715
  %v832 = vmul.f32 %v816, 0.044715
  %v833 = vmul.f32 %v817, 0.044715
  %v834 = vmul.f32 %v818, 0.044715
  %v835 = vmul.f32 %v819, 0.044715
  %v836 = vmul.f32 %v820, 0.044715
  %v837 = vadd.f32 %v727, %v821
  %v838 = vadd.f32 %v730, %v822
  %v839 = vadd.f32 %v735, %v823
  %v840 = vadd.f32 %v738, %v824
  %v841 = vadd.f32 %v743, %v825
  %v842 = vadd.f32 %v746, %v826
  %v843 = vadd.f32 %v751, %v827
  %v844 = vadd.f32 %v754, %v828
  %v845 = vadd.f32 %v759, %v829
  %v846 = vadd.f32 %v762, %v830
  %v847 = vadd.f32 %v767, %v831
  %v848 = vadd.f32 %v770, %v832
  %v849 = vadd.f32 %v775, %v833
  %v850 = vadd.f32 %v778, %v834
  %v851 = vadd.f32 %v783, %v835
  %v852 = vadd.f32 %v786, %v836
  %v853 = vmul.f32 %v837, 0.7978846
  %v854 = vmul.f32 %v838, 0.7978846
  %v855 = vmul.f32 %v839, 0.7978846
  %v856 = vmul.f32 %v840, 0.7978846
  %v857 = vmul.f32 %v841, 0.7978846
  %v858 = vmul.f32 %v842, 0.7978846
  %v859 = vmul.f32 %v843, 0.7978846
  %v860 = vmul.f32 %v844, 0.7978846
  %v861 = vmul.f32 %v845, 0.7978846
  %v862 = vmul.f32 %v846, 0.7978846
  %v863 = vmul.f32 %v847, 0.7978846
  %v864 = vmul.f32 %v848, 0.7978846
  %v865 = vmul.f32 %v849, 0.7978846
  %v866 = vmul.f32 %v850, 0.7978846
  %v867 = vmul.f32 %v851, 0.7978846
  %v868 = vmul.f32 %v852, 0.7978846
  %v869 = vtanh.pop %v853
  %v870 = vtanh.pop %v854
  %v871 = vtanh.pop %v855
  %v872 = vtanh.pop %v856
  %v873 = vtanh.pop %v857
  %v874 = vtanh.pop %v858
  %v875 = vtanh.pop %v859
  %v876 = vtanh.pop %v860
  %v877 = vtanh.pop %v861
  %v878 = vtanh.pop %v862
  %v879 = vtanh.pop %v863
  %v880 = vtanh.pop %v864
  %v881 = vtanh.pop %v865
  %v882 = vtanh.pop %v866
  %v883 = vtanh.pop %v867
  %v884 = vtanh.pop %v868
  %v885 = vadd.f32 %v869, 1.0
  %v886 = vadd.f32 %v870, 1.0
  %v887 = vadd.f32 %v871, 1.0
  %v888 = vadd.f32 %v872, 1.0
  %v889 = vadd.f32 %v873, 1.0
  %v890 = vadd.f32 %v874, 1.0
  %v891 = vadd.f32 %v875, 1.0
  %v892 = vadd.f32 %v876, 1.0
  %v893 = vadd.f32 %v877, 1.0
  %v894 = vadd.f32 %v878, 1.0
  %v895 = vadd.f32 %v879, 1.0
  %v896 = vadd.f32 %v880, 1.0
  %v897 = vadd.f32 %v881, 1.0
  %v898 = vadd.f32 %v882, 1.0
  %v899 = vadd.f32 %v883, 1.0
  %v900 = vadd.f32 %v884, 1.0
  %v901 = vmul.f32 %v885, 0.5
  %v902 = vmul.f32 %v886, 0.5
  %v903 = vmul.f32 %v887, 0.5
  %v904 = vmul.f32 %v888, 0.5
  %v905 = vmul.f32 %v889, 0.5
  %v906 = vmul.f32 %v890, 0.5
  %v907 = vmul.f32 %v891, 0.5
  %v908 = vmul.f32 %v892, 0.5
  %v909 = vmul.f32 %v893, 0.5
  %v910 = vmul.f32 %v894, 0.5
  %v911 = vmul.f32 %v895, 0.5
  %v912 = vmul.f32 %v896, 0.5
  %v913 = vmul.f32 %v897, 0.5
  %v914 = vmul.f32 %v898, 0.5
  %v915 = vmul.f32 %v899, 0.5
  %v916 = vmul.f32 %v900, 0.5
  %v917 = vmul.f32 %v727, %v901
  %v918 = vmul.f32 %v730, %v902
  %v919 = vmul.f32 %v735, %v903
  %v920 = vmul.f32 %v738, %v904
  %v921 = vmul.f32 %v743, %v905
  %v922 = vmul.f32 %v746, %v906
  %v923 = vmul.f32 %v751, %v907
  %v924 = vmul.f32 %v754, %v908
  %v925 = vmul.f32 %v759, %v909
  %v926 = vmul.f32 %v762, %v910
  %v927 = vmul.f32 %v767, %v911
  %v928 = vmul.f32 %v770, %v912
  %v929 = vmul.f32 %v775, %v913
  %v930 = vmul.f32 %v778, %v914
  %v931 = vmul.f32 %v783, %v915
  %v932 = vmul.f32 %v786, %v916
  %v933 = vpack.c.bf16 %v918, %v917
  %v934 = vpack.c.bf16 %v920, %v919
  %v935 = vpack.c.bf16 %v922, %v921
  %v936 = vpack.c.bf16 %v924, %v923
  %v937 = vpack.c.bf16 %v926, %v925
  %v938 = vpack.c.bf16 %v928, %v927
  %v939 = vpack.c.bf16 %v930, %v929
  %v940 = vpack.c.bf16 %v932, %v931
  %v941 = vld [vmem:[%s8] sm:$0xf]
  %v942 = vld [vmem:[%s8 + $0x4] sm:$0xf]
  %v943 = vld [vmem:[%s8 + $0x8] sm:$0xf]
  %v944 = vld [vmem:[%s8 + $0xc] sm:$0xf]
  %v945 = vld [vmem:[%s8 + $0x10] sm:$0xf]
  %v946 = vld [vmem:[%s8 + $0x14] sm:$0xf]
  %v947 = vld [vmem:[%s8 + $0x18] sm:$0xf]
  %v948 = vld [vmem:[%s8 + $0x1c] sm:$0xf]
  %v949 = vld [vmem:[%s8 + $0x20] sm:$0xf]
  %v950 = vld [vmem:[%s8 + $0x24] sm:$0xf]
  %v951 = vld [vmem:[%s8 + $0x28] sm:$0xf]
  %v952 = vld [vmem:[%s8 + $0x2c] sm:$0xf]
  %v953 = vld [vmem:[%s8 + $0x30] sm:$0xf]
  %v954 = vld [vmem:[%s8 + $0x34] sm:$0xf]
  %v955 = vld [vmem:[%s8 + $0x38] sm:$0xf]
  %v956 = vld [vmem:[%s8 + $0x3c] sm:$0xf]
  %v973 = vunpack.c.l.b16 %v941
  %v974 = vunpack.c.l.b16 %v942
  %v975 = vunpack.c.l.b16 %v943
  %v976 = vunpack.c.l.b16 %v944
  %v977 = vunpack.c.l.b16 %v945
  %v978 = vunpack.c.l.b16 %v946
  %v979 = vunpack.c.l.b16 %v947
  %v980 = vunpack.c.l.b16 %v948
  %v981 = vunpack.c.l.b16 %v949
  %v982 = vunpack.c.l.b16 %v950
  %v983 = vunpack.c.l.b16 %v951
  %v984 = vunpack.c.l.b16 %v952
  %v985 = vunpack.c.l.b16 %v953
  %v986 = vunpack.c.l.b16 %v954
  %v987 = vunpack.c.l.b16 %v955
  %v988 = vunpack.c.l.b16 %v956
  %v989 = vpack.c.b16 %v974, %v973
  %v990 = vpack.c.b16 %v976, %v975
  %v991 = vpack.c.b16 %v978, %v977
  %v992 = vpack.c.b16 %v980, %v979
  %v993 = vpack.c.b16 %v982, %v981
  %v994 = vpack.c.b16 %v984, %v983
  %v995 = vpack.c.b16 %v986, %v985
  %v996 = vpack.c.b16 %v988, %v987
  %1005 = vmatprep.subr.bf16.mxu0 0
  %1006 = vmatpush1.bf16.msra.mxu0 %v989
  %1007 = vmatprep.subr.bf16.mxu0 0
  %1008 = vmatpush1.bf16.msra.mxu0 %v990
  %1009 = vmatprep.subr.bf16.mxu0 0
  %1010 = vmatpush1.bf16.msra.mxu0 %v991
  %1011 = vmatprep.subr.bf16.mxu0 0
  %1012 = vmatpush1.bf16.msra.mxu0 %v992
  %1013 = vmatprep.subr.bf16.mxu0 0
  %1014 = vmatpush1.bf16.msra.mxu0 %v993
  %1015 = vmatprep.subr.bf16.mxu0 0
  %1016 = vmatpush1.bf16.msra.mxu0 %v994
  %1017 = vmatprep.subr.bf16.mxu0 0
  %1018 = vmatpush1.bf16.msra.mxu0 %v995
  %1019 = vmatprep.subr.bf16.mxu0 0
  %1020 = vmatpush1.bf16.msra.mxu0 %v996
  %1021 = vmatprep.subr.bf16.mxu0 0
  %1022 = vmatpush1.bf16.msra.mxu0 0
  %1023 = vmatprep.subr.bf16.mxu0 0
  %1024 = vmatpush1.bf16.msra.mxu0 0
  %1025 = vmatprep.subr.bf16.mxu0 0
  %1026 = vmatpush1.bf16.msra.mxu0 0
  %1027 = vmatprep.subr.bf16.mxu0 0
  %1028 = vmatpush1.bf16.msra.mxu0 0
  %1029 = vmatprep.subr.bf16.mxu0 0
  %1030 = vmatpush1.bf16.msra.mxu0 0
  %1031 = vmatprep.subr.bf16.mxu0 0
  %1032 = vmatpush1.bf16.msra.mxu0 0
  %1033 = vmatprep.subr.bf16.mxu0 0
  %1034 = vmatpush1.bf16.msra.mxu0 0
  %1035 = vmatprep.subr.bf16.mxu0 0
  %1036 = vmatpush1.bf16.msra.mxu0 0
  %1037 = vmatprep.mubr.bf16.mxu0 0
  %1038 = vmatmul.mubr.bf16.gmra.mrb[0].mxu0 %v933
  %v1039 = vpop.f32.mrb[0].mxu0
  %v1040 = vadd.f32 0.0, %v1039
  %v1041 = vpop.f32.mrb[0].mxu0
  %v1042 = vpop.f32.mrb[0].mxu0
  %v1043 = vadd.f32 0.0, %v1042
  %v1044 = vpop.f32.mrb[0].mxu0
  %1045 = vmatprep.mubr.bf16.mxu0 0
  %1046 = vmatmul.mubr.bf16.gmra.mrb[0].mxu0 %v934
  %v1047 = vpop.f32.mrb[0].mxu0
  %v1048 = vadd.f32 0.0, %v1047
  %v1049 = vpop.f32.mrb[0].mxu0
  %v1050 = vpop.f32.mrb[0].mxu0
  %v1051 = vadd.f32 0.0, %v1050
  %v1052 = vpop.f32.mrb[0].mxu0
  %1053 = vmatprep.mubr.bf16.mxu0 0
  %1054 = vmatmul.mubr.bf16.gmra.mrb[0].mxu0 %v935
  %v1055 = vpop.f32.mrb[0].mxu0
  %v1056 = vadd.f32 0.0, %v1055
  %v1057 = vpop.f32.mrb[0].mxu0
  %v1058 = vpop.f32.mrb[0].mxu0
  %v1059 = vadd.f32 0.0, %v1058
  %v1060 = vpop.f32.mrb[0].mxu0
  %1061 = vmatprep.mubr.bf16.mxu0 0
  %1062 = vmatmul.mubr.bf16.gmra.mrb[0].mxu0 %v936
  %v1063 = vpop.f32.mrb[0].mxu0
  %v1064 = vadd.f32 0.0, %v1063
  %v1065 = vpop.f32.mrb[0].mxu0
  %v1066 = vpop.f32.mrb[0].mxu0
  %v1067 = vadd.f32 0.0, %v1066
  %v1068 = vpop.f32.mrb[0].mxu0
  %1069 = vmatprep.mubr.bf16.mxu0 0
  %1070 = vmatmul.mubr.bf16.gmra.mrb[0].mxu0 %v937
  %v1071 = vpop.f32.mrb[0].mxu0
  %v1072 = vadd.f32 0.0, %v1071
  %v1073 = vpop.f32.mrb[0].mxu0
  %v1074 = vpop.f32.mrb[0].mxu0
  %v1075 = vadd.f32 0.0, %v1074
  %v1076 = vpop.f32.mrb[0].mxu0
  %1077 = vmatprep.mubr.bf16.mxu0 0
  %1078 = vmatmul.mubr.bf16.gmra.mrb[0].mxu0 %v938
  %v1079 = vpop.f32.mrb[0].mxu0
  %v1080 = vadd.f32 0.0, %v1079
  %v1081 = vpop.f32.mrb[0].mxu0
  %v1082 = vpop.f32.mrb[0].mxu0
  %v1083 = vadd.f32 0.0, %v1082
  %v1084 = vpop.f32.mrb[0].mxu0
  %1085 = vmatprep.mubr.bf16.mxu0 0
  %1086 = vmatmul.mubr.bf16.gmra.mrb[0].mxu0 %v939
  %v1087 = vpop.f32.mrb[0].mxu0
  %v1088 = vadd.f32 0.0, %v1087
  %v1089 = vpop.f32.mrb[0].mxu0
  %v1090 = vpop.f32.mrb[0].mxu0
  %v1091 = vadd.f32 0.0, %v1090
  %v1092 = vpop.f32.mrb[0].mxu0
  %1093 = vmatprep.mubr.bf16.mxu0 0
  %1094 = vmatmul.mubr.bf16.gmra.mrb[0].mxu0 %v940
  %v1095 = vpop.f32.mrb[0].mxu0
  %v1096 = vadd.f32 0.0, %v1095
  %v1097 = vpop.f32.mrb[0].mxu0
  %v1098 = vpop.f32.mrb[0].mxu0
  %v1099 = vadd.f32 0.0, %v1098
  %v1100 = vpop.f32.mrb[0].mxu0
  %1101 = vdwg.mxu0
  %v1102 = vadd.f32 %v366, %v1040
  %v1103 = vadd.f32 %v367, %v1043
  %v1104 = vadd.f32 %v368, %v1048
  %v1105 = vadd.f32 %v369, %v1051
  %v1106 = vadd.f32 %v370, %v1056
  %v1107 = vadd.f32 %v371, %v1059
  %v1108 = vadd.f32 %v372, %v1064
  %v1109 = vadd.f32 %v373, %v1067
  %v1110 = vadd.f32 %v374, %v1072
  %v1111 = vadd.f32 %v375, %v1075
  %v1112 = vadd.f32 %v376, %v1080
  %v1113 = vadd.f32 %v377, %v1083
  %v1114 = vadd.f32 %v378, %v1088
  %v1115 = vadd.f32 %v379, %v1091
  %v1116 = vadd.f32 %v380, %v1096
  %v1117 = vadd.f32 %v381, %v1099
  %v1118 = vld [vmem:[%s9] sm:$0x1]
  %v1120 = vlaneseq
  %v1121 = vshrl.u32 %v1120, 7
  %v1122 = vsub.s32 0, %v1121
  %v1123 = vrot.slane %v1118, %v1122
  %v1125 = vadd.f32 %v1102, %v1123
  %v1126 = vadd.f32 %v1103, %v1123
  %v1127 = vadd.f32 %v1104, %v1123
  %v1128 = vadd.f32 %v1105, %v1123
  %v1129 = vadd.f32 %v1106, %v1123
  %v1130 = vadd.f32 %v1107, %v1123
  %v1131 = vadd.f32 %v1108, %v1123
  %v1132 = vadd.f32 %v1109, %v1123
  %v1133 = vadd.f32 %v1110, %v1123
  %v1134 = vadd.f32 %v1111, %v1123
  %v1135 = vadd.f32 %v1112, %v1123
  %v1136 = vadd.f32 %v1113, %v1123
  %v1137 = vadd.f32 %v1114, %v1123
  %v1138 = vadd.f32 %v1115, %v1123
  %v1139 = vadd.f32 %v1116, %v1123
  %v1140 = vadd.f32 %v1117, %v1123
  %1141 = vst.msk [vmem:[%s10] sm:$0xff] %vm229, %v1125
  %1142 = vst.msk [vmem:[%s10 + $0x8] sm:$0xff] %vm229, %v1126
  %1143 = vst.msk [vmem:[%s10 + $0x10] sm:$0xff] %vm229, %v1127
  %1144 = vst.msk [vmem:[%s10 + $0x18] sm:$0xff] %vm229, %v1128
  %1145 = vst.msk [vmem:[%s10 + $0x20] sm:$0xff] %vm229, %v1129
  %1146 = vst.msk [vmem:[%s10 + $0x28] sm:$0xff] %vm229, %v1130
  %1147 = vst.msk [vmem:[%s10 + $0x30] sm:$0xff] %vm229, %v1131
  %1148 = vst.msk [vmem:[%s10 + $0x38] sm:$0xff] %vm229, %v1132
  %1149 = vst.msk [vmem:[%s10 + $0x40] sm:$0xff] %vm229, %v1133
  %1150 = vst.msk [vmem:[%s10 + $0x48] sm:$0xff] %vm229, %v1134
  %1151 = vst.msk [vmem:[%s10 + $0x50] sm:$0xff] %vm229, %v1135
  %1152 = vst.msk [vmem:[%s10 + $0x58] sm:$0xff] %vm229, %v1136
  %1153 = vst.msk [vmem:[%s10 + $0x60] sm:$0xff] %vm229, %v1137
  %1154 = vst.msk [vmem:[%s10 + $0x68] sm:$0xff] %vm229, %v1138
  %1155 = vst.msk [vmem:[%s10 + $0x70] sm:$0xff] %vm229, %v1139
  %1156 = vst.msk [vmem:[%s10 + $0x78] sm:$0xff] %vm229, %v1140
  // Predicated region
  $region42: #{cswin_block.7} parent=0 // pred_check
    _
  $region43: #{cswin_block.7} parent=0 // pred_check_branch
    %1158 = sbr.rel (0) target = $region45
  $region44: #{cswin_block.7} parent=0 // pred_region
    _
  $region45: #{cswin_block.7} parent=0 // pred_fallthru
    _
  // Predicated region
  $region46: #{cswin_block.7} parent=0 // pred_check
    _
  $region47: #{cswin_block.7} parent=0 // pred_check_branch
    %1160 = sbr.rel (0) target = $region49
  $region48: #{cswin_block.7} parent=0 // pred_region
    _
  $region49: #{cswin_block.7} parent=0 // pred_fallthru
    _

</llo_original>
